<compile_context>
chip_gen: v7x
topology: tpu7x:2x2x1
jax: 0.10.0
libtpu: 0.0.40
codegen_flags: <defaults>
</compile_context>

<pallas_src>
import functools

import jax
import jax.numpy as jnp
from jax.experimental import pallas as pl
from jax.experimental.pallas import tpu as pltpu


def gru_chunk_kernel(x_ref,     # (T, H)  f32  pre-gathered embeddings for this chunk
                     h0_ref,    # (1, H)  f32  initial hidden state (resident)
                     wih_ref,   # (H, 3H) f32  W_ih^T (resident)
                     whh_ref,   # (H, 3H) f32  W_hh^T (resident)
                     bih_ref,   # (1, 3H) f32  b_ih (resident)
                     bhh_ref,   # (1, 3H) f32  b_hh (resident)
                     out_ref,   # (T, H)  f32  hidden state after each step of the chunk
                     h_scr):    # VMEM (1, H) f32  hidden-state carry across chunks
    T, H = out_ref.shape
    c = pl.program_id(0)

    @pl.when(c == 0)
    def _init():
        h_scr[...] = h0_ref[...]

    # ---- Phase 1 (hoisted, off the serial path): GI for all T steps at once. ----
    # (T, H) @ (H, 3H) -> (T, 3H); gate order along the last axis is [r | z | n].
    gi = jnp.dot(x_ref[...], wih_ref[...],
                 preferred_element_type=jnp.float32) + bih_ref[...]

    # ---- Phase 2 (serial recurrence): only h @ W_hh^T remains per step. ----
    h = h_scr[...]                      # (1, H)
    whh = whh_ref[...]                  # (H, 3H)
    bhh = bhh_ref[...]                  # (1, 3H)

    n_groups = T // 8                   # store output in full 8-sublane groups
    for g in range(n_groups):
        group_rows = []
        for i in range(8):
            t = g * 8 + i
            gh = jnp.dot(h, whh, preferred_element_type=jnp.float32) + bhh  # (1, 3H)
            gi_t = gi[t:t + 1, :]                                           # (1, 3H)
            # torch.nn.GRU gate math, gate order [r, z, n]:
            r = jax.nn.sigmoid(gi_t[:, 0:H] + gh[:, 0:H])
            z = jax.nn.sigmoid(gi_t[:, H:2 * H] + gh[:, H:2 * H])
            n = jnp.tanh(gi_t[:, 2 * H:3 * H] + r * gh[:, 2 * H:3 * H])
            h = (1.0 - z) * n + z * h                                       # (1, H)
            group_rows.append(h)
        out_ref[g * 8:(g + 1) * 8, :] = jnp.concatenate(group_rows, axis=0)

    h_scr[...] = h


def pack_params(emb, w_ih, w_hh, b_ih, b_hh):
    """PyTorch-layout parameters -> kernel layout (all f32 for torch parity).

    emb  : (V, H)   nn.Embedding.weight
    w_ih : (3H, H)  nn.GRU.weight_ih_l0 (rows ordered [r, z, n])
    w_hh : (3H, H)  nn.GRU.weight_hh_l0
    b_ih : (3H,)    nn.GRU.bias_ih_l0
    b_hh : (3H,)    nn.GRU.bias_hh_l0
    """
    H = emb.shape[1]
    return {
        "emb":   jnp.asarray(emb, jnp.float32),
        "w_ihT": jnp.asarray(w_ih, jnp.float32).T,                 # (H, 3H)
        "w_hhT": jnp.asarray(w_hh, jnp.float32).T,                 # (H, 3H)
        "b_ih":  jnp.asarray(b_ih, jnp.float32).reshape(1, 3 * H),
        "b_hh":  jnp.asarray(b_hh, jnp.float32).reshape(1, 3 * H),
    }


@functools.partial(jax.jit, static_argnames=("chunk",))
def _encode_sequence(x_seq, hidden0, w_ihT, w_hhT, b_ih, b_hh, *, chunk):
    """Run the GRU over a whole (L, H) embedded sequence in one kernel launch."""
    L, H = x_seq.shape
    assert H % 128 == 0, "hidden_size must be a multiple of 128 (lane alignment)"
    assert chunk % 8 == 0, "chunk must be a multiple of 8 (sublane alignment)"

    L_pad = pl.cdiv(L, chunk) * chunk            # pad so every chunk is full
    x_pad = jnp.pad(x_seq, ((0, L_pad - L), (0, 0)))
    n_chunks = L_pad // chunk

    out = pl.pallas_call(
        gru_chunk_kernel,
        out_shape=jax.ShapeDtypeStruct((L_pad, H), jnp.float32),
        grid=(n_chunks,),
        in_specs=[
            pl.BlockSpec((chunk, H), lambda c: (c, 0)),       # x chunk (streamed)
            pl.BlockSpec((1, H), lambda c: (0, 0)),           # h0      (resident)
            pl.BlockSpec((H, 3 * H), lambda c: (0, 0)),       # W_ih^T  (resident)
            pl.BlockSpec((H, 3 * H), lambda c: (0, 0)),       # W_hh^T  (resident)
            pl.BlockSpec((1, 3 * H), lambda c: (0, 0)),       # b_ih    (resident)
            pl.BlockSpec((1, 3 * H), lambda c: (0, 0)),       # b_hh    (resident)
        ],
        out_specs=pl.BlockSpec((chunk, H), lambda c: (c, 0)), # tiled along L
        scratch_shapes=[pltpu.VMEM((1, H), jnp.float32)],     # hidden carry
        compiler_params=pltpu.CompilerParams(
            # Time chunks are a true recurrence -> sequential ("arbitrary").
            # TODO(synk): with a batch dimension, prepend a "parallel" axis.
            dimension_semantics=("arbitrary",),
            vmem_limit_bytes=64 * 1024 * 1024,
        ),
    )(x_pad, hidden0.reshape(1, H), w_ihT, w_hhT, b_ih, b_hh)
    return out


def encoder_rnn_encode_sequence(token_ids, hidden0, params, chunk=16):
    """Encode a whole token sequence; returns (outputs (L,1,H), final hidden (1,1,H)).

    Equivalent to calling EncoderRNN.forward once per token and stacking outputs.
    """
    H = hidden0.shape[-1]
    ids = jnp.asarray(token_ids, jnp.int32).reshape(-1)
    L = ids.shape[0]
    # Embedding row gather pre-computed in the wrapper (no per-step data-dependent DMA).
    x_seq = jnp.take(params["emb"], ids, axis=0)              # (L, H) f32
    out = _encode_sequence(x_seq, hidden0, params["w_ihT"], params["w_hhT"],
                           params["b_ih"], params["b_hh"], chunk=chunk)
    outputs = out[:L]
    return outputs.reshape(L, 1, H), outputs[L - 1].reshape(1, 1, H)


def encoder_rnn_forward(token_id, hidden, params):
    """Equivalent of EncoderRNN.forward(input, hidden) for a single token."""
    H = hidden.shape[-1]
    ids = jnp.asarray(token_id, jnp.int32).reshape(1)
    x_seq = jnp.take(params["emb"], ids, axis=0)              # (1, H)
    out = _encode_sequence(x_seq, hidden, params["w_ihT"], params["w_hhT"],
                           params["b_ih"], params["b_hh"], chunk=8)
    h_new = out[0].reshape(1, 1, H)
    return h_new, h_new


def _reference_encode(token_ids, hidden0, emb, w_ih, w_hh, b_ih, b_hh):
    """Pure-JAX f32 reference with torch.nn.GRU semantics (Precision.HIGHEST)."""
    dot = functools.partial(jnp.dot, precision=jax.lax.Precision.HIGHEST)
    H = hidden0.shape[-1]
    h = hidden0.reshape(1, H).astype(jnp.float32)
    outs = []
    for t in range(token_ids.shape[0]):
        x = emb[token_ids[t]][None, :]
        gi = dot(x, w_ih.T) + b_ih[None, :]
        gh = dot(h, w_hh.T) + b_hh[None, :]
        r = jax.nn.sigmoid(gi[:, 0:H] + gh[:, 0:H])
        z = jax.nn.sigmoid(gi[:, H:2 * H] + gh[:, H:2 * H])
        n = jnp.tanh(gi[:, 2 * H:3 * H] + r * gh[:, 2 * H:3 * H])
        h = (1.0 - z) * n + z * h
        outs.append(h)
    return jnp.concatenate(outs, axis=0), h


if __name__ == "__main__":
    vocab_size = 32        # toy vocabulary (input_size)
    hidden_size = 256      # matches the original module (multiple of 128)
    seq_len = 24           # not a multiple of the chunk -> exercises padding
    chunk = 16             # timesteps per grid step

    key = jax.random.PRNGKey(0)
    k_emb, k_wih, k_whh, k_bih, k_bhh, k_ids = jax.random.split(key, 6)

    bound = 1.0 / jnp.sqrt(hidden_size)
    # PyTorch-native layouts: nn.Embedding ~ N(0,1); nn.GRU ~ U(-1/sqrt(H), 1/sqrt(H))
    emb = jax.random.normal(k_emb, (vocab_size, hidden_size), jnp.float32)
    w_ih = jax.random.uniform(k_wih, (3 * hidden_size, hidden_size), jnp.float32, -bound, bound)
    w_hh = jax.random.uniform(k_whh, (3 * hidden_size, hidden_size), jnp.float32, -bound, bound)
    b_ih = jax.random.uniform(k_bih, (3 * hidden_size,), jnp.float32, -bound, bound)
    b_hh = jax.random.uniform(k_bhh, (3 * hidden_size,), jnp.float32, -bound, bound)

    params = pack_params(emb, w_ih, w_hh, b_ih, b_hh)

    token_ids = jax.random.randint(k_ids, (seq_len,), 0, vocab_size, dtype=jnp.int32)
    hidden0 = jnp.zeros((1, 1, hidden_size), jnp.float32)   # EncoderRNN.initHidden()

    # Optimized path: the whole sequence in one kernel launch.
    outputs, hidden = encoder_rnn_encode_sequence(token_ids, hidden0, params, chunk=chunk)
    outputs = jax.block_until_ready(outputs)
    hidden = jax.block_until_ready(hidden)

    # f32 reference (torch GRU semantics) -> addresses the bf16-parity concern.
    ref_out, ref_hid = _reference_encode(token_ids, hidden0, emb, w_ih, w_hh, b_ih, b_hh)
    assert outputs.shape == (seq_len, 1, hidden_size)
    assert hidden.shape == (1, 1, hidden_size)
    assert jnp.allclose(outputs.reshape(seq_len, hidden_size), ref_out, rtol=2e-3, atol=2e-3)
    assert jnp.allclose(hidden.reshape(1, hidden_size), ref_hid, rtol=2e-3, atol=2e-3)

    # Single-step interface parity with EncoderRNN.forward(input, hidden).
    out1, hid1 = encoder_rnn_forward(token_ids[0], hidden0, params)
    out1 = jax.block_until_ready(out1)
    assert out1.shape == (1, 1, hidden_size) and hid1.shape == (1, 1, hidden_size)
    assert jnp.allclose(out1.reshape(1, hidden_size), ref_out[:1], rtol=2e-3, atol=2e-3)

    print("KERNEL_OK")
</pallas_src>

<mosaic_0001>
module attributes {stable_mosaic.version = 11 : i64} {
  func.func @gru_chunk_kernel(%arg0: i32, %arg1: memref<16x256xf32, #tpu.memory_space<vmem>>, %arg2: memref<1x256xf32, #tpu.memory_space<vmem>>, %arg3: memref<256x768xf32, #tpu.memory_space<vmem>>, %arg4: memref<256x768xf32, #tpu.memory_space<vmem>>, %arg5: memref<1x768xf32, #tpu.memory_space<vmem>>, %arg6: memref<1x768xf32, #tpu.memory_space<vmem>>, %arg7: memref<16x256xf32, #tpu.memory_space<vmem>>, %arg8: memref<1x256xf32, #tpu.memory_space<vmem>>) attributes {dimension_semantics = [#tpu.dimension_semantics<arbitrary>], iteration_bounds = array<i64: 2>, scalar_prefetch = 0 : i64, scratch_operands = 1 : i64, tpu.core_type = #tpu.core_type<tc>, window_params = [{transform_indices = @transform_0, window_bounds = array<i64: 16, 256>}, {pipeline_mode = #tpu.pipeline_mode<synchronous>, transform_indices = @transform_1, window_bounds = array<i64: 1, 256>}, {pipeline_mode = #tpu.pipeline_mode<synchronous>, transform_indices = @transform_2, window_bounds = array<i64: 256, 768>}, {pipeline_mode = #tpu.pipeline_mode<synchronous>, transform_indices = @transform_3, window_bounds = array<i64: 256, 768>}, {pipeline_mode = #tpu.pipeline_mode<synchronous>, transform_indices = @transform_4, window_bounds = array<i64: 1, 768>}, {pipeline_mode = #tpu.pipeline_mode<synchronous>, transform_indices = @transform_5, window_bounds = array<i64: 1, 768>}, {transform_indices = @transform_6, window_bounds = array<i64: 16, 256>}]} {
    %c0_i32 = arith.constant 0 : i32
    %0 = arith.cmpi eq, %arg0, %c0_i32 : i32
    %1 = arith.extui %0 : i1 to i32
    %c0_i32_0 = arith.constant 0 : i32
    %2 = arith.cmpi ne, %1, %c0_i32_0 : i32
    scf.if %2 {
      %c0_81 = arith.constant 0 : index
      %c0_82 = arith.constant 0 : index
      %481 = vector.load %arg2[%c0_81, %c0_82] : memref<1x256xf32, #tpu.memory_space<vmem>>, vector<1x256xf32>
      %c0_83 = arith.constant 0 : index
      %c0_84 = arith.constant 0 : index
      %482 = vector.load %arg8[%c0_83, %c0_84] : memref<1x256xf32, #tpu.memory_space<vmem>>, vector<1x256xf32>
      tpu.vector_store %arg8[%c0_83, %c0_84], %481 {strides = array<i32>} : memref<1x256xf32, #tpu.memory_space<vmem>>, vector<1x256xf32>,
    } else {
    }
    %c0 = arith.constant 0 : index
    %c0_1 = arith.constant 0 : index
    %3 = vector.load %arg1[%c0, %c0_1] : memref<16x256xf32, #tpu.memory_space<vmem>>, vector<16x256xf32>
    %c0_2 = arith.constant 0 : index
    %c0_3 = arith.constant 0 : index
    %4 = vector.load %arg3[%c0_2, %c0_3] : memref<256x768xf32, #tpu.memory_space<vmem>>, vector<256x768xf32>
    %cst = arith.constant dense<0.000000e+00> : vector<16x768xf32>
    %5 = tpu.matmul %3, %4, %cst {dimension_numbers = #tpu.dot_dimension_numbers<[1], [0], [0], [1], [0, 0, 1, 1], [], []>} : vector<16x256xf32>, vector<256x768xf32>, vector<16x768xf32> -> vector<16x768xf32>
    %c0_4 = arith.constant 0 : index
    %c0_5 = arith.constant 0 : index
    %6 = vector.load %arg5[%c0_4, %c0_5] : memref<1x768xf32, #tpu.memory_space<vmem>>, vector<1x768xf32>
    %7 = vector.broadcast %6 : vector<1x768xf32> to vector<16x768xf32>
    %8 = arith.addf %5, %7 : vector<16x768xf32>
    %c0_6 = arith.constant 0 : index
    %c0_7 = arith.constant 0 : index
    %9 = vector.load %arg8[%c0_6, %c0_7] : memref<1x256xf32, #tpu.memory_space<vmem>>, vector<1x256xf32>
    %c0_8 = arith.constant 0 : index
    %c0_9 = arith.constant 0 : index
    %10 = vector.load %arg4[%c0_8, %c0_9] : memref<256x768xf32, #tpu.memory_space<vmem>>, vector<256x768xf32>
    %c0_10 = arith.constant 0 : index
    %c0_11 = arith.constant 0 : index
    %11 = vector.load %arg6[%c0_10, %c0_11] : memref<1x768xf32, #tpu.memory_space<vmem>>, vector<1x768xf32>
    %cst_12 = arith.constant dense<0.000000e+00> : vector<1x768xf32>
    %12 = tpu.matmul %9, %10, %cst_12 {dimension_numbers = #tpu.dot_dimension_numbers<[1], [0], [0], [1], [0, 0, 1, 1], [], []>} : vector<1x256xf32>, vector<256x768xf32>, vector<1x768xf32> -> vector<1x768xf32>
    %13 = arith.addf %12, %11 : vector<1x768xf32>
    %14 = vector.extract_strided_slice %8 {offsets = [0, 0], sizes = [1, 768], strides = [1, 1]} : vector<16x768xf32> to vector<1x768xf32>
    %15 = vector.extract_strided_slice %14 {offsets = [0, 0], sizes = [1, 256], strides = [1, 1]} : vector<1x768xf32> to vector<1x256xf32>
    %16 = vector.extract_strided_slice %13 {offsets = [0, 0], sizes = [1, 256], strides = [1, 1]} : vector<1x768xf32> to vector<1x256xf32>
    %17 = arith.addf %15, %16 : vector<1x256xf32>
    %18 = arith.negf %17 : vector<1x256xf32>
    %19 = math.exp %18 : vector<1x256xf32>
    %cst_13 = arith.constant 1.000000e+00 : f32
    %20 = vector.broadcast %cst_13 : f32 to vector<1x256xf32>
    %21 = arith.addf %20, %19 : vector<1x256xf32>
    %22 = arith.divf %20, %21 : vector<1x256xf32>
    %23 = vector.extract_strided_slice %14 {offsets = [0, 256], sizes = [1, 256], strides = [1, 1]} : vector<1x768xf32> to vector<1x256xf32>
    %24 = vector.extract_strided_slice %13 {offsets = [0, 256], sizes = [1, 256], strides = [1, 1]} : vector<1x768xf32> to vector<1x256xf32>
    %25 = arith.addf %23, %24 : vector<1x256xf32>
    %26 = arith.negf %25 : vector<1x256xf32>
    %27 = math.exp %26 : vector<1x256xf32>
    %cst_14 = arith.constant 1.000000e+00 : f32
    %28 = vector.broadcast %cst_14 : f32 to vector<1x256xf32>
    %29 = arith.addf %28, %27 : vector<1x256xf32>
    %30 = arith.divf %28, %29 : vector<1x256xf32>
    %31 = vector.extract_strided_slice %14 {offsets = [0, 512], sizes = [1, 256], strides = [1, 1]} : vector<1x768xf32> to vector<1x256xf32>
    %32 = vector.extract_strided_slice %13 {offsets = [0, 512], sizes = [1, 256], strides = [1, 1]} : vector<1x768xf32> to vector<1x256xf32>
    %33 = arith.mulf %22, %32 : vector<1x256xf32>
    %34 = arith.addf %31, %33 : vector<1x256xf32>
    %35 = math.tanh %34 : vector<1x256xf32>
    %cst_15 = arith.constant 1.000000e+00 : f32
    %36 = vector.broadcast %cst_15 : f32 to vector<1x256xf32>
    %37 = arith.subf %36, %30 : vector<1x256xf32>
    %38 = arith.mulf %37, %35 : vector<1x256xf32>
    %39 = arith.mulf %30, %9 : vector<1x256xf32>
    %40 = arith.addf %38, %39 : vector<1x256xf32>
    %cst_16 = arith.constant dense<0.000000e+00> : vector<1x768xf32>
    %41 = tpu.matmul %40, %10, %cst_16 {dimension_numbers = #tpu.dot_dimension_numbers<[1], [0], [0], [1], [0, 0, 1, 1], [], []>} : vector<1x256xf32>, vector<256x768xf32>, vector<1x768xf32> -> vector<1x768xf32>
    %42 = arith.addf %41, %11 : vector<1x768xf32>
    %43 = vector.extract_strided_slice %8 {offsets = [1, 0], sizes = [1, 768], strides = [1, 1]} : vector<16x768xf32> to vector<1x768xf32>
    %44 = vector.extract_strided_slice %43 {offsets = [0, 0], sizes = [1, 256], strides = [1, 1]} : vector<1x768xf32> to vector<1x256xf32>
    %45 = vector.extract_strided_slice %42 {offsets = [0, 0], sizes = [1, 256], strides = [1, 1]} : vector<1x768xf32> to vector<1x256xf32>
    %46 = arith.addf %44, %45 : vector<1x256xf32>
    %47 = arith.negf %46 : vector<1x256xf32>
    %48 = math.exp %47 : vector<1x256xf32>
    %cst_17 = arith.constant 1.000000e+00 : f32
    %49 = vector.broadcast %cst_17 : f32 to vector<1x256xf32>
    %50 = arith.addf %49, %48 : vector<1x256xf32>
    %51 = arith.divf %49, %50 : vector<1x256xf32>
    %52 = vector.extract_strided_slice %43 {offsets = [0, 256], sizes = [1, 256], strides = [1, 1]} : vector<1x768xf32> to vector<1x256xf32>
    %53 = vector.extract_strided_slice %42 {offsets = [0, 256], sizes = [1, 256], strides = [1, 1]} : vector<1x768xf32> to vector<1x256xf32>
    %54 = arith.addf %52, %53 : vector<1x256xf32>
    %55 = arith.negf %54 : vector<1x256xf32>
    %56 = math.exp %55 : vector<1x256xf32>
    %cst_18 = arith.constant 1.000000e+00 : f32
    %57 = vector.broadcast %cst_18 : f32 to vector<1x256xf32>
    %58 = arith.addf %57, %56 : vector<1x256xf32>
    %59 = arith.divf %57, %58 : vector<1x256xf32>
    %60 = vector.extract_strided_slice %43 {offsets = [0, 512], sizes = [1, 256], strides = [1, 1]} : vector<1x768xf32> to vector<1x256xf32>
    %61 = vector.extract_strided_slice %42 {offsets = [0, 512], sizes = [1, 256], strides = [1, 1]} : vector<1x768xf32> to vector<1x256xf32>
    %62 = arith.mulf %51, %61 : vector<1x256xf32>
    %63 = arith.addf %60, %62 : vector<1x256xf32>
    %64 = math.tanh %63 : vector<1x256xf32>
    %cst_19 = arith.constant 1.000000e+00 : f32
    %65 = vector.broadcast %cst_19 : f32 to vector<1x256xf32>
    %66 = arith.subf %65, %59 : vector<1x256xf32>
    %67 = arith.mulf %66, %64 : vector<1x256xf32>
    %68 = arith.mulf %59, %40 : vector<1x256xf32>
    %69 = arith.addf %67, %68 : vector<1x256xf32>
    %cst_20 = arith.constant dense<0.000000e+00> : vector<1x768xf32>
    %70 = tpu.matmul %69, %10, %cst_20 {dimension_numbers = #tpu.dot_dimension_numbers<[1], [0], [0], [1], [0, 0, 1, 1], [], []>} : vector<1x256xf32>, vector<256x768xf32>, vector<1x768xf32> -> vector<1x768xf32>
    %71 = arith.addf %70, %11 : vector<1x768xf32>
    %72 = vector.extract_strided_slice %8 {offsets = [2, 0], sizes = [1, 768], strides = [1, 1]} : vector<16x768xf32> to vector<1x768xf32>
    %73 = vector.extract_strided_slice %72 {offsets = [0, 0], sizes = [1, 256], strides = [1, 1]} : vector<1x768xf32> to vector<1x256xf32>
    %74 = vector.extract_strided_slice %71 {offsets = [0, 0], sizes = [1, 256], strides = [1, 1]} : vector<1x768xf32> to vector<1x256xf32>
    %75 = arith.addf %73, %74 : vector<1x256xf32>
    %76 = arith.negf %75 : vector<1x256xf32>
    %77 = math.exp %76 : vector<1x256xf32>
    %cst_21 = arith.constant 1.000000e+00 : f32
    %78 = vector.broadcast %cst_21 : f32 to vector<1x256xf32>
    %79 = arith.addf %78, %77 : vector<1x256xf32>
    %80 = arith.divf %78, %79 : vector<1x256xf32>
    %81 = vector.extract_strided_slice %72 {offsets = [0, 256], sizes = [1, 256], strides = [1, 1]} : vector<1x768xf32> to vector<1x256xf32>
    %82 = vector.extract_strided_slice %71 {offsets = [0, 256], sizes = [1, 256], strides = [1, 1]} : vector<1x768xf32> to vector<1x256xf32>
    %83 = arith.addf %81, %82 : vector<1x256xf32>
    %84 = arith.negf %83 : vector<1x256xf32>
    %85 = math.exp %84 : vector<1x256xf32>
    %cst_22 = arith.constant 1.000000e+00 : f32
    %86 = vector.broadcast %cst_22 : f32 to vector<1x256xf32>
    %87 = arith.addf %86, %85 : vector<1x256xf32>
    %88 = arith.divf %86, %87 : vector<1x256xf32>
    %89 = vector.extract_strided_slice %72 {offsets = [0, 512], sizes = [1, 256], strides = [1, 1]} : vector<1x768xf32> to vector<1x256xf32>
    %90 = vector.extract_strided_slice %71 {offsets = [0, 512], sizes = [1, 256], strides = [1, 1]} : vector<1x768xf32> to vector<1x256xf32>
    %91 = arith.mulf %80, %90 : vector<1x256xf32>
    %92 = arith.addf %89, %91 : vector<1x256xf32>
    %93 = math.tanh %92 : vector<1x256xf32>
    %cst_23 = arith.constant 1.000000e+00 : f32
    %94 = vector.broadcast %cst_23 : f32 to vector<1x256xf32>
    %95 = arith.subf %94, %88 : vector<1x256xf32>
    %96 = arith.mulf %95, %93 : vector<1x256xf32>
    %97 = arith.mulf %88, %69 : vector<1x256xf32>
    %98 = arith.addf %96, %97 : vector<1x256xf32>
    %cst_24 = arith.constant dense<0.000000e+00> : vector<1x768xf32>
    %99 = tpu.matmul %98, %10, %cst_24 {dimension_numbers = #tpu.dot_dimension_numbers<[1], [0], [0], [1], [0, 0, 1, 1], [], []>} : vector<1x256xf32>, vector<256x768xf32>, vector<1x768xf32> -> vector<1x768xf32>
    %100 = arith.addf %99, %11 : vector<1x768xf32>
    %101 = vector.extract_strided_slice %8 {offsets = [3, 0], sizes = [1, 768], strides = [1, 1]} : vector<16x768xf32> to vector<1x768xf32>
    %102 = vector.extract_strided_slice %101 {offsets = [0, 0], sizes = [1, 256], strides = [1, 1]} : vector<1x768xf32> to vector<1x256xf32>
    %103 = vector.extract_strided_slice %100 {offsets = [0, 0], sizes = [1, 256], strides = [1, 1]} : vector<1x768xf32> to vector<1x256xf32>
    %104 = arith.addf %102, %103 : vector<1x256xf32>
    %105 = arith.negf %104 : vector<1x256xf32>
    %106 = math.exp %105 : vector<1x256xf32>
    %cst_25 = arith.constant 1.000000e+00 : f32
    %107 = vector.broadcast %cst_25 : f32 to vector<1x256xf32>
    %108 = arith.addf %107, %106 : vector<1x256xf32>
    %109 = arith.divf %107, %108 : vector<1x256xf32>
    %110 = vector.extract_strided_slice %101 {offsets = [0, 256], sizes = [1, 256], strides = [1, 1]} : vector<1x768xf32> to vector<1x256xf32>
    %111 = vector.extract_strided_slice %100 {offsets = [0, 256], sizes = [1, 256], strides = [1, 1]} : vector<1x768xf32> to vector<1x256xf32>
    %112 = arith.addf %110, %111 : vector<1x256xf32>
    %113 = arith.negf %112 : vector<1x256xf32>
    %114 = math.exp %113 : vector<1x256xf32>
    %cst_26 = arith.constant 1.000000e+00 : f32
    %115 = vector.broadcast %cst_26 : f32 to vector<1x256xf32>
    %116 = arith.addf %115, %114 : vector<1x256xf32>
    %117 = arith.divf %115, %116 : vector<1x256xf32>
    %118 = vector.extract_strided_slice %101 {offsets = [0, 512], sizes = [1, 256], strides = [1, 1]} : vector<1x768xf32> to vector<1x256xf32>
    %119 = vector.extract_strided_slice %100 {offsets = [0, 512], sizes = [1, 256], strides = [1, 1]} : vector<1x768xf32> to vector<1x256xf32>
    %120 = arith.mulf %109, %119 : vector<1x256xf32>
    %121 = arith.addf %118, %120 : vector<1x256xf32>
    %122 = math.tanh %121 : vector<1x256xf32>
    %cst_27 = arith.constant 1.000000e+00 : f32
    %123 = vector.broadcast %cst_27 : f32 to vector<1x256xf32>
    %124 = arith.subf %123, %117 : vector<1x256xf32>
    %125 = arith.mulf %124, %122 : vector<1x256xf32>
    %126 = arith.mulf %117, %98 : vector<1x256xf32>
    %127 = arith.addf %125, %126 : vector<1x256xf32>
    %cst_28 = arith.constant dense<0.000000e+00> : vector<1x768xf32>
    %128 = tpu.matmul %127, %10, %cst_28 {dimension_numbers = #tpu.dot_dimension_numbers<[1], [0], [0], [1], [0, 0, 1, 1], [], []>} : vector<1x256xf32>, vector<256x768xf32>, vector<1x768xf32> -> vector<1x768xf32>
    %129 = arith.addf %128, %11 : vector<1x768xf32>
    %130 = vector.extract_strided_slice %8 {offsets = [4, 0], sizes = [1, 768], strides = [1, 1]} : vector<16x768xf32> to vector<1x768xf32>
    %131 = vector.extract_strided_slice %130 {offsets = [0, 0], sizes = [1, 256], strides = [1, 1]} : vector<1x768xf32> to vector<1x256xf32>
    %132 = vector.extract_strided_slice %129 {offsets = [0, 0], sizes = [1, 256], strides = [1, 1]} : vector<1x768xf32> to vector<1x256xf32>
    %133 = arith.addf %131, %132 : vector<1x256xf32>
    %134 = arith.negf %133 : vector<1x256xf32>
    %135 = math.exp %134 : vector<1x256xf32>
    %cst_29 = arith.constant 1.000000e+00 : f32
    %136 = vector.broadcast %cst_29 : f32 to vector<1x256xf32>
    %137 = arith.addf %136, %135 : vector<1x256xf32>
    %138 = arith.divf %136, %137 : vector<1x256xf32>
    %139 = vector.extract_strided_slice %130 {offsets = [0, 256], sizes = [1, 256], strides = [1, 1]} : vector<1x768xf32> to vector<1x256xf32>
    %140 = vector.extract_strided_slice %129 {offsets = [0, 256], sizes = [1, 256], strides = [1, 1]} : vector<1x768xf32> to vector<1x256xf32>
    %141 = arith.addf %139, %140 : vector<1x256xf32>
    %142 = arith.negf %141 : vector<1x256xf32>
    %143 = math.exp %142 : vector<1x256xf32>
    %cst_30 = arith.constant 1.000000e+00 : f32
    %144 = vector.broadcast %cst_30 : f32 to vector<1x256xf32>
    %145 = arith.addf %144, %143 : vector<1x256xf32>
    %146 = arith.divf %144, %145 : vector<1x256xf32>
    %147 = vector.extract_strided_slice %130 {offsets = [0, 512], sizes = [1, 256], strides = [1, 1]} : vector<1x768xf32> to vector<1x256xf32>
    %148 = vector.extract_strided_slice %129 {offsets = [0, 512], sizes = [1, 256], strides = [1, 1]} : vector<1x768xf32> to vector<1x256xf32>
    %149 = arith.mulf %138, %148 : vector<1x256xf32>
    %150 = arith.addf %147, %149 : vector<1x256xf32>
    %151 = math.tanh %150 : vector<1x256xf32>
    %cst_31 = arith.constant 1.000000e+00 : f32
    %152 = vector.broadcast %cst_31 : f32 to vector<1x256xf32>
    %153 = arith.subf %152, %146 : vector<1x256xf32>
    %154 = arith.mulf %153, %151 : vector<1x256xf32>
    %155 = arith.mulf %146, %127 : vector<1x256xf32>
    %156 = arith.addf %154, %155 : vector<1x256xf32>
    %cst_32 = arith.constant dense<0.000000e+00> : vector<1x768xf32>
    %157 = tpu.matmul %156, %10, %cst_32 {dimension_numbers = #tpu.dot_dimension_numbers<[1], [0], [0], [1], [0, 0, 1, 1], [], []>} : vector<1x256xf32>, vector<256x768xf32>, vector<1x768xf32> -> vector<1x768xf32>
    %158 = arith.addf %157, %11 : vector<1x768xf32>
    %159 = vector.extract_strided_slice %8 {offsets = [5, 0], sizes = [1, 768], strides = [1, 1]} : vector<16x768xf32> to vector<1x768xf32>
    %160 = vector.extract_strided_slice %159 {offsets = [0, 0], sizes = [1, 256], strides = [1, 1]} : vector<1x768xf32> to vector<1x256xf32>
    %161 = vector.extract_strided_slice %158 {offsets = [0, 0], sizes = [1, 256], strides = [1, 1]} : vector<1x768xf32> to vector<1x256xf32>
    %162 = arith.addf %160, %161 : vector<1x256xf32>
    %163 = arith.negf %162 : vector<1x256xf32>
    %164 = math.exp %163 : vector<1x256xf32>
    %cst_33 = arith.constant 1.000000e+00 : f32
    %165 = vector.broadcast %cst_33 : f32 to vector<1x256xf32>
    %166 = arith.addf %165, %164 : vector<1x256xf32>
    %167 = arith.divf %165, %166 : vector<1x256xf32>
    %168 = vector.extract_strided_slice %159 {offsets = [0, 256], sizes = [1, 256], strides = [1, 1]} : vector<1x768xf32> to vector<1x256xf32>
    %169 = vector.extract_strided_slice %158 {offsets = [0, 256], sizes = [1, 256], strides = [1, 1]} : vector<1x768xf32> to vector<1x256xf32>
    %170 = arith.addf %168, %169 : vector<1x256xf32>
    %171 = arith.negf %170 : vector<1x256xf32>
    %172 = math.exp %171 : vector<1x256xf32>
    %cst_34 = arith.constant 1.000000e+00 : f32
    %173 = vector.broadcast %cst_34 : f32 to vector<1x256xf32>
    %174 = arith.addf %173, %172 : vector<1x256xf32>
    %175 = arith.divf %173, %174 : vector<1x256xf32>
    %176 = vector.extract_strided_slice %159 {offsets = [0, 512], sizes = [1, 256], strides = [1, 1]} : vector<1x768xf32> to vector<1x256xf32>
    %177 = vector.extract_strided_slice %158 {offsets = [0, 512], sizes = [1, 256], strides = [1, 1]} : vector<1x768xf32> to vector<1x256xf32>
    %178 = arith.mulf %167, %177 : vector<1x256xf32>
    %179 = arith.addf %176, %178 : vector<1x256xf32>
    %180 = math.tanh %179 : vector<1x256xf32>
    %cst_35 = arith.constant 1.000000e+00 : f32
    %181 = vector.broadcast %cst_35 : f32 to vector<1x256xf32>
    %182 = arith.subf %181, %175 : vector<1x256xf32>
    %183 = arith.mulf %182, %180 : vector<1x256xf32>
    %184 = arith.mulf %175, %156 : vector<1x256xf32>
    %185 = arith.addf %183, %184 : vector<1x256xf32>
    %cst_36 = arith.constant dense<0.000000e+00> : vector<1x768xf32>
    %186 = tpu.matmul %185, %10, %cst_36 {dimension_numbers = #tpu.dot_dimension_numbers<[1], [0], [0], [1], [0, 0, 1, 1], [], []>} : vector<1x256xf32>, vector<256x768xf32>, vector<1x768xf32> -> vector<1x768xf32>
    %187 = arith.addf %186, %11 : vector<1x768xf32>
    %188 = vector.extract_strided_slice %8 {offsets = [6, 0], sizes = [1, 768], strides = [1, 1]} : vector<16x768xf32> to vector<1x768xf32>
    %189 = vector.extract_strided_slice %188 {offsets = [0, 0], sizes = [1, 256], strides = [1, 1]} : vector<1x768xf32> to vector<1x256xf32>
    %190 = vector.extract_strided_slice %187 {offsets = [0, 0], sizes = [1, 256], strides = [1, 1]} : vector<1x768xf32> to vector<1x256xf32>
    %191 = arith.addf %189, %190 : vector<1x256xf32>
    %192 = arith.negf %191 : vector<1x256xf32>
    %193 = math.exp %192 : vector<1x256xf32>
    %cst_37 = arith.constant 1.000000e+00 : f32
    %194 = vector.broadcast %cst_37 : f32 to vector<1x256xf32>
    %195 = arith.addf %194, %193 : vector<1x256xf32>
    %196 = arith.divf %194, %195 : vector<1x256xf32>
    %197 = vector.extract_strided_slice %188 {offsets = [0, 256], sizes = [1, 256], strides = [1, 1]} : vector<1x768xf32> to vector<1x256xf32>
    %198 = vector.extract_strided_slice %187 {offsets = [0, 256], sizes = [1, 256], strides = [1, 1]} : vector<1x768xf32> to vector<1x256xf32>
    %199 = arith.addf %197, %198 : vector<1x256xf32>
    %200 = arith.negf %199 : vector<1x256xf32>
    %201 = math.exp %200 : vector<1x256xf32>
    %cst_38 = arith.constant 1.000000e+00 : f32
    %202 = vector.broadcast %cst_38 : f32 to vector<1x256xf32>
    %203 = arith.addf %202, %201 : vector<1x256xf32>
    %204 = arith.divf %202, %203 : vector<1x256xf32>
    %205 = vector.extract_strided_slice %188 {offsets = [0, 512], sizes = [1, 256], strides = [1, 1]} : vector<1x768xf32> to vector<1x256xf32>
    %206 = vector.extract_strided_slice %187 {offsets = [0, 512], sizes = [1, 256], strides = [1, 1]} : vector<1x768xf32> to vector<1x256xf32>
    %207 = arith.mulf %196, %206 : vector<1x256xf32>
    %208 = arith.addf %205, %207 : vector<1x256xf32>
    %209 = math.tanh %208 : vector<1x256xf32>
    %cst_39 = arith.constant 1.000000e+00 : f32
    %210 = vector.broadcast %cst_39 : f32 to vector<1x256xf32>
    %211 = arith.subf %210, %204 : vector<1x256xf32>
    %212 = arith.mulf %211, %209 : vector<1x256xf32>
    %213 = arith.mulf %204, %185 : vector<1x256xf32>
    %214 = arith.addf %212, %213 : vector<1x256xf32>
    %cst_40 = arith.constant dense<0.000000e+00> : vector<1x768xf32>
    %215 = tpu.matmul %214, %10, %cst_40 {dimension_numbers = #tpu.dot_dimension_numbers<[1], [0], [0], [1], [0, 0, 1, 1], [], []>} : vector<1x256xf32>, vector<256x768xf32>, vector<1x768xf32> -> vector<1x768xf32>
    %216 = arith.addf %215, %11 : vector<1x768xf32>
    %217 = vector.extract_strided_slice %8 {offsets = [7, 0], sizes = [1, 768], strides = [1, 1]} : vector<16x768xf32> to vector<1x768xf32>
    %218 = vector.extract_strided_slice %217 {offsets = [0, 0], sizes = [1, 256], strides = [1, 1]} : vector<1x768xf32> to vector<1x256xf32>
    %219 = vector.extract_strided_slice %216 {offsets = [0, 0], sizes = [1, 256], strides = [1, 1]} : vector<1x768xf32> to vector<1x256xf32>
    %220 = arith.addf %218, %219 : vector<1x256xf32>
    %221 = arith.negf %220 : vector<1x256xf32>
    %222 = math.exp %221 : vector<1x256xf32>
    %cst_41 = arith.constant 1.000000e+00 : f32
    %223 = vector.broadcast %cst_41 : f32 to vector<1x256xf32>
    %224 = arith.addf %223, %222 : vector<1x256xf32>
    %225 = arith.divf %223, %224 : vector<1x256xf32>
    %226 = vector.extract_strided_slice %217 {offsets = [0, 256], sizes = [1, 256], strides = [1, 1]} : vector<1x768xf32> to vector<1x256xf32>
    %227 = vector.extract_strided_slice %216 {offsets = [0, 256], sizes = [1, 256], strides = [1, 1]} : vector<1x768xf32> to vector<1x256xf32>
    %228 = arith.addf %226, %227 : vector<1x256xf32>
    %229 = arith.negf %228 : vector<1x256xf32>
    %230 = math.exp %229 : vector<1x256xf32>
    %cst_42 = arith.constant 1.000000e+00 : f32
    %231 = vector.broadcast %cst_42 : f32 to vector<1x256xf32>
    %232 = arith.addf %231, %230 : vector<1x256xf32>
    %233 = arith.divf %231, %232 : vector<1x256xf32>
    %234 = vector.extract_strided_slice %217 {offsets = [0, 512], sizes = [1, 256], strides = [1, 1]} : vector<1x768xf32> to vector<1x256xf32>
    %235 = vector.extract_strided_slice %216 {offsets = [0, 512], sizes = [1, 256], strides = [1, 1]} : vector<1x768xf32> to vector<1x256xf32>
    %236 = arith.mulf %225, %235 : vector<1x256xf32>
    %237 = arith.addf %234, %236 : vector<1x256xf32>
    %238 = math.tanh %237 : vector<1x256xf32>
    %cst_43 = arith.constant 1.000000e+00 : f32
    %239 = vector.broadcast %cst_43 : f32 to vector<1x256xf32>
    %240 = arith.subf %239, %233 : vector<1x256xf32>
    %241 = arith.mulf %240, %238 : vector<1x256xf32>
    %242 = arith.mulf %233, %214 : vector<1x256xf32>
    %243 = arith.addf %241, %242 : vector<1x256xf32>
    %244 = tpu.concatenate %40, %69, %98, %127, %156, %185, %214, %243 in 0 : vector<1x256xf32>, vector<1x256xf32>, vector<1x256xf32>, vector<1x256xf32>, vector<1x256xf32>, vector<1x256xf32>, vector<1x256xf32>, vector<1x256xf32> -> vector<8x256xf32>
    %c0_44 = arith.constant 0 : index
    %c0_45 = arith.constant 0 : index
    %245 = vector.load %arg7[%c0_44, %c0_45] : memref<16x256xf32, #tpu.memory_space<vmem>>, vector<8x256xf32>
    tpu.vector_store %arg7[%c0_44, %c0_45], %244 {strides = array<i32>} : memref<16x256xf32, #tpu.memory_space<vmem>>, vector<8x256xf32>,
    %cst_46 = arith.constant dense<0.000000e+00> : vector<1x768xf32>
    %246 = tpu.matmul %243, %10, %cst_46 {dimension_numbers = #tpu.dot_dimension_numbers<[1], [0], [0], [1], [0, 0, 1, 1], [], []>} : vector<1x256xf32>, vector<256x768xf32>, vector<1x768xf32> -> vector<1x768xf32>
    %247 = arith.addf %246, %11 : vector<1x768xf32>
    %248 = vector.extract_strided_slice %8 {offsets = [8, 0], sizes = [1, 768], strides = [1, 1]} : vector<16x768xf32> to vector<1x768xf32>
    %249 = vector.extract_strided_slice %248 {offsets = [0, 0], sizes = [1, 256], strides = [1, 1]} : vector<1x768xf32> to vector<1x256xf32>
    %250 = vector.extract_strided_slice %247 {offsets = [0, 0], sizes = [1, 256], strides = [1, 1]} : vector<1x768xf32> to vector<1x256xf32>
    %251 = arith.addf %249, %250 : vector<1x256xf32>
    %252 = arith.negf %251 : vector<1x256xf32>
    %253 = math.exp %252 : vector<1x256xf32>
    %cst_47 = arith.constant 1.000000e+00 : f32
    %254 = vector.broadcast %cst_47 : f32 to vector<1x256xf32>
    %255 = arith.addf %254, %253 : vector<1x256xf32>
    %256 = arith.divf %254, %255 : vector<1x256xf32>
    %257 = vector.extract_strided_slice %248 {offsets = [0, 256], sizes = [1, 256], strides = [1, 1]} : vector<1x768xf32> to vector<1x256xf32>
    %258 = vector.extract_strided_slice %247 {offsets = [0, 256], sizes = [1, 256], strides = [1, 1]} : vector<1x768xf32> to vector<1x256xf32>
    %259 = arith.addf %257, %258 : vector<1x256xf32>
    %260 = arith.negf %259 : vector<1x256xf32>
    %261 = math.exp %260 : vector<1x256xf32>
    %cst_48 = arith.constant 1.000000e+00 : f32
    %262 = vector.broadcast %cst_48 : f32 to vector<1x256xf32>
    %263 = arith.addf %262, %261 : vector<1x256xf32>
    %264 = arith.divf %262, %263 : vector<1x256xf32>
    %265 = vector.extract_strided_slice %248 {offsets = [0, 512], sizes = [1, 256], strides = [1, 1]} : vector<1x768xf32> to vector<1x256xf32>
    %266 = vector.extract_strided_slice %247 {offsets = [0, 512], sizes = [1, 256], strides = [1, 1]} : vector<1x768xf32> to vector<1x256xf32>
    %267 = arith.mulf %256, %266 : vector<1x256xf32>
    %268 = arith.addf %265, %267 : vector<1x256xf32>
    %269 = math.tanh %268 : vector<1x256xf32>
    %cst_49 = arith.constant 1.000000e+00 : f32
    %270 = vector.broadcast %cst_49 : f32 to vector<1x256xf32>
    %271 = arith.subf %270, %264 : vector<1x256xf32>
    %272 = arith.mulf %271, %269 : vector<1x256xf32>
    %273 = arith.mulf %264, %243 : vector<1x256xf32>
    %274 = arith.addf %272, %273 : vector<1x256xf32>
    %cst_50 = arith.constant dense<0.000000e+00> : vector<1x768xf32>
    %275 = tpu.matmul %274, %10, %cst_50 {dimension_numbers = #tpu.dot_dimension_numbers<[1], [0], [0], [1], [0, 0, 1, 1], [], []>} : vector<1x256xf32>, vector<256x768xf32>, vector<1x768xf32> -> vector<1x768xf32>
    %276 = arith.addf %275, %11 : vector<1x768xf32>
    %277 = vector.extract_strided_slice %8 {offsets = [9, 0], sizes = [1, 768], strides = [1, 1]} : vector<16x768xf32> to vector<1x768xf32>
    %278 = vector.extract_strided_slice %277 {offsets = [0, 0], sizes = [1, 256], strides = [1, 1]} : vector<1x768xf32> to vector<1x256xf32>
    %279 = vector.extract_strided_slice %276 {offsets = [0, 0], sizes = [1, 256], strides = [1, 1]} : vector<1x768xf32> to vector<1x256xf32>
    %280 = arith.addf %278, %279 : vector<1x256xf32>
    %281 = arith.negf %280 : vector<1x256xf32>
    %282 = math.exp %281 : vector<1x256xf32>
    %cst_51 = arith.constant 1.000000e+00 : f32
    %283 = vector.broadcast %cst_51 : f32 to vector<1x256xf32>
    %284 = arith.addf %283, %282 : vector<1x256xf32>
    %285 = arith.divf %283, %284 : vector<1x256xf32>
    %286 = vector.extract_strided_slice %277 {offsets = [0, 256], sizes = [1, 256], strides = [1, 1]} : vector<1x768xf32> to vector<1x256xf32>
    %287 = vector.extract_strided_slice %276 {offsets = [0, 256], sizes = [1, 256], strides = [1, 1]} : vector<1x768xf32> to vector<1x256xf32>
    %288 = arith.addf %286, %287 : vector<1x256xf32>
    %289 = arith.negf %288 : vector<1x256xf32>
    %290 = math.exp %289 : vector<1x256xf32>
    %cst_52 = arith.constant 1.000000e+00 : f32
    %291 = vector.broadcast %cst_52 : f32 to vector<1x256xf32>
    %292 = arith.addf %291, %290 : vector<1x256xf32>
    %293 = arith.divf %291, %292 : vector<1x256xf32>
    %294 = vector.extract_strided_slice %277 {offsets = [0, 512], sizes = [1, 256], strides = [1, 1]} : vector<1x768xf32> to vector<1x256xf32>
    %295 = vector.extract_strided_slice %276 {offsets = [0, 512], sizes = [1, 256], strides = [1, 1]} : vector<1x768xf32> to vector<1x256xf32>
    %296 = arith.mulf %285, %295 : vector<1x256xf32>
    %297 = arith.addf %294, %296 : vector<1x256xf32>
    %298 = math.tanh %297 : vector<1x256xf32>
    %cst_53 = arith.constant 1.000000e+00 : f32
    %299 = vector.broadcast %cst_53 : f32 to vector<1x256xf32>
    %300 = arith.subf %299, %293 : vector<1x256xf32>
    %301 = arith.mulf %300, %298 : vector<1x256xf32>
    %302 = arith.mulf %293, %274 : vector<1x256xf32>
    %303 = arith.addf %301, %302 : vector<1x256xf32>
    %cst_54 = arith.constant dense<0.000000e+00> : vector<1x768xf32>
    %304 = tpu.matmul %303, %10, %cst_54 {dimension_numbers = #tpu.dot_dimension_numbers<[1], [0], [0], [1], [0, 0, 1, 1], [], []>} : vector<1x256xf32>, vector<256x768xf32>, vector<1x768xf32> -> vector<1x768xf32>
    %305 = arith.addf %304, %11 : vector<1x768xf32>
    %306 = vector.extract_strided_slice %8 {offsets = [10, 0], sizes = [1, 768], strides = [1, 1]} : vector<16x768xf32> to vector<1x768xf32>
    %307 = vector.extract_strided_slice %306 {offsets = [0, 0], sizes = [1, 256], strides = [1, 1]} : vector<1x768xf32> to vector<1x256xf32>
    %308 = vector.extract_strided_slice %305 {offsets = [0, 0], sizes = [1, 256], strides = [1, 1]} : vector<1x768xf32> to vector<1x256xf32>
    %309 = arith.addf %307, %308 : vector<1x256xf32>
    %310 = arith.negf %309 : vector<1x256xf32>
    %311 = math.exp %310 : vector<1x256xf32>
    %cst_55 = arith.constant 1.000000e+00 : f32
    %312 = vector.broadcast %cst_55 : f32 to vector<1x256xf32>
    %313 = arith.addf %312, %311 : vector<1x256xf32>
    %314 = arith.divf %312, %313 : vector<1x256xf32>
    %315 = vector.extract_strided_slice %306 {offsets = [0, 256], sizes = [1, 256], strides = [1, 1]} : vector<1x768xf32> to vector<1x256xf32>
    %316 = vector.extract_strided_slice %305 {offsets = [0, 256], sizes = [1, 256], strides = [1, 1]} : vector<1x768xf32> to vector<1x256xf32>
    %317 = arith.addf %315, %316 : vector<1x256xf32>
    %318 = arith.negf %317 : vector<1x256xf32>
    %319 = math.exp %318 : vector<1x256xf32>
    %cst_56 = arith.constant 1.000000e+00 : f32
    %320 = vector.broadcast %cst_56 : f32 to vector<1x256xf32>
    %321 = arith.addf %320, %319 : vector<1x256xf32>
    %322 = arith.divf %320, %321 : vector<1x256xf32>
    %323 = vector.extract_strided_slice %306 {offsets = [0, 512], sizes = [1, 256], strides = [1, 1]} : vector<1x768xf32> to vector<1x256xf32>
    %324 = vector.extract_strided_slice %305 {offsets = [0, 512], sizes = [1, 256], strides = [1, 1]} : vector<1x768xf32> to vector<1x256xf32>
    %325 = arith.mulf %314, %324 : vector<1x256xf32>
    %326 = arith.addf %323, %325 : vector<1x256xf32>
    %327 = math.tanh %326 : vector<1x256xf32>
    %cst_57 = arith.constant 1.000000e+00 : f32
    %328 = vector.broadcast %cst_57 : f32 to vector<1x256xf32>
    %329 = arith.subf %328, %322 : vector<1x256xf32>
    %330 = arith.mulf %329, %327 : vector<1x256xf32>
    %331 = arith.mulf %322, %303 : vector<1x256xf32>
    %332 = arith.addf %330, %331 : vector<1x256xf32>
    %cst_58 = arith.constant dense<0.000000e+00> : vector<1x768xf32>
    %333 = tpu.matmul %332, %10, %cst_58 {dimension_numbers = #tpu.dot_dimension_numbers<[1], [0], [0], [1], [0, 0, 1, 1], [], []>} : vector<1x256xf32>, vector<256x768xf32>, vector<1x768xf32> -> vector<1x768xf32>
    %334 = arith.addf %333, %11 : vector<1x768xf32>
    %335 = vector.extract_strided_slice %8 {offsets = [11, 0], sizes = [1, 768], strides = [1, 1]} : vector<16x768xf32> to vector<1x768xf32>
    %336 = vector.extract_strided_slice %335 {offsets = [0, 0], sizes = [1, 256], strides = [1, 1]} : vector<1x768xf32> to vector<1x256xf32>
    %337 = vector.extract_strided_slice %334 {offsets = [0, 0], sizes = [1, 256], strides = [1, 1]} : vector<1x768xf32> to vector<1x256xf32>
    %338 = arith.addf %336, %337 : vector<1x256xf32>
    %339 = arith.negf %338 : vector<1x256xf32>
    %340 = math.exp %339 : vector<1x256xf32>
    %cst_59 = arith.constant 1.000000e+00 : f32
    %341 = vector.broadcast %cst_59 : f32 to vector<1x256xf32>
    %342 = arith.addf %341, %340 : vector<1x256xf32>
    %343 = arith.divf %341, %342 : vector<1x256xf32>
    %344 = vector.extract_strided_slice %335 {offsets = [0, 256], sizes = [1, 256], strides = [1, 1]} : vector<1x768xf32> to vector<1x256xf32>
    %345 = vector.extract_strided_slice %334 {offsets = [0, 256], sizes = [1, 256], strides = [1, 1]} : vector<1x768xf32> to vector<1x256xf32>
    %346 = arith.addf %344, %345 : vector<1x256xf32>
    %347 = arith.negf %346 : vector<1x256xf32>
    %348 = math.exp %347 : vector<1x256xf32>
    %cst_60 = arith.constant 1.000000e+00 : f32
    %349 = vector.broadcast %cst_60 : f32 to vector<1x256xf32>
    %350 = arith.addf %349, %348 : vector<1x256xf32>
    %351 = arith.divf %349, %350 : vector<1x256xf32>
    %352 = vector.extract_strided_slice %335 {offsets = [0, 512], sizes = [1, 256], strides = [1, 1]} : vector<1x768xf32> to vector<1x256xf32>
    %353 = vector.extract_strided_slice %334 {offsets = [0, 512], sizes = [1, 256], strides = [1, 1]} : vector<1x768xf32> to vector<1x256xf32>
    %354 = arith.mulf %343, %353 : vector<1x256xf32>
    %355 = arith.addf %352, %354 : vector<1x256xf32>
    %356 = math.tanh %355 : vector<1x256xf32>
    %cst_61 = arith.constant 1.000000e+00 : f32
    %357 = vector.broadcast %cst_61 : f32 to vector<1x256xf32>
    %358 = arith.subf %357, %351 : vector<1x256xf32>
    %359 = arith.mulf %358, %356 : vector<1x256xf32>
    %360 = arith.mulf %351, %332 : vector<1x256xf32>
    %361 = arith.addf %359, %360 : vector<1x256xf32>
    %cst_62 = arith.constant dense<0.000000e+00> : vector<1x768xf32>
    %362 = tpu.matmul %361, %10, %cst_62 {dimension_numbers = #tpu.dot_dimension_numbers<[1], [0], [0], [1], [0, 0, 1, 1], [], []>} : vector<1x256xf32>, vector<256x768xf32>, vector<1x768xf32> -> vector<1x768xf32>
    %363 = arith.addf %362, %11 : vector<1x768xf32>
    %364 = vector.extract_strided_slice %8 {offsets = [12, 0], sizes = [1, 768], strides = [1, 1]} : vector<16x768xf32> to vector<1x768xf32>
    %365 = vector.extract_strided_slice %364 {offsets = [0, 0], sizes = [1, 256], strides = [1, 1]} : vector<1x768xf32> to vector<1x256xf32>
    %366 = vector.extract_strided_slice %363 {offsets = [0, 0], sizes = [1, 256], strides = [1, 1]} : vector<1x768xf32> to vector<1x256xf32>
    %367 = arith.addf %365, %366 : vector<1x256xf32>
    %368 = arith.negf %367 : vector<1x256xf32>
    %369 = math.exp %368 : vector<1x256xf32>
    %cst_63 = arith.constant 1.000000e+00 : f32
    %370 = vector.broadcast %cst_63 : f32 to vector<1x256xf32>
    %371 = arith.addf %370, %369 : vector<1x256xf32>
    %372 = arith.divf %370, %371 : vector<1x256xf32>
    %373 = vector.extract_strided_slice %364 {offsets = [0, 256], sizes = [1, 256], strides = [1, 1]} : vector<1x768xf32> to vector<1x256xf32>
    %374 = vector.extract_strided_slice %363 {offsets = [0, 256], sizes = [1, 256], strides = [1, 1]} : vector<1x768xf32> to vector<1x256xf32>
    %375 = arith.addf %373, %374 : vector<1x256xf32>
    %376 = arith.negf %375 : vector<1x256xf32>
    %377 = math.exp %376 : vector<1x256xf32>
    %cst_64 = arith.constant 1.000000e+00 : f32
    %378 = vector.broadcast %cst_64 : f32 to vector<1x256xf32>
    %379 = arith.addf %378, %377 : vector<1x256xf32>
    %380 = arith.divf %378, %379 : vector<1x256xf32>
    %381 = vector.extract_strided_slice %364 {offsets = [0, 512], sizes = [1, 256], strides = [1, 1]} : vector<1x768xf32> to vector<1x256xf32>
    %382 = vector.extract_strided_slice %363 {offsets = [0, 512], sizes = [1, 256], strides = [1, 1]} : vector<1x768xf32> to vector<1x256xf32>
    %383 = arith.mulf %372, %382 : vector<1x256xf32>
    %384 = arith.addf %381, %383 : vector<1x256xf32>
    %385 = math.tanh %384 : vector<1x256xf32>
    %cst_65 = arith.constant 1.000000e+00 : f32
    %386 = vector.broadcast %cst_65 : f32 to vector<1x256xf32>
    %387 = arith.subf %386, %380 : vector<1x256xf32>
    %388 = arith.mulf %387, %385 : vector<1x256xf32>
    %389 = arith.mulf %380, %361 : vector<1x256xf32>
    %390 = arith.addf %388, %389 : vector<1x256xf32>
    %cst_66 = arith.constant dense<0.000000e+00> : vector<1x768xf32>
    %391 = tpu.matmul %390, %10, %cst_66 {dimension_numbers = #tpu.dot_dimension_numbers<[1], [0], [0], [1], [0, 0, 1, 1], [], []>} : vector<1x256xf32>, vector<256x768xf32>, vector<1x768xf32> -> vector<1x768xf32>
    %392 = arith.addf %391, %11 : vector<1x768xf32>
    %393 = vector.extract_strided_slice %8 {offsets = [13, 0], sizes = [1, 768], strides = [1, 1]} : vector<16x768xf32> to vector<1x768xf32>
    %394 = vector.extract_strided_slice %393 {offsets = [0, 0], sizes = [1, 256], strides = [1, 1]} : vector<1x768xf32> to vector<1x256xf32>
    %395 = vector.extract_strided_slice %392 {offsets = [0, 0], sizes = [1, 256], strides = [1, 1]} : vector<1x768xf32> to vector<1x256xf32>
    %396 = arith.addf %394, %395 : vector<1x256xf32>
    %397 = arith.negf %396 : vector<1x256xf32>
    %398 = math.exp %397 : vector<1x256xf32>
    %cst_67 = arith.constant 1.000000e+00 : f32
    %399 = vector.broadcast %cst_67 : f32 to vector<1x256xf32>
    %400 = arith.addf %399, %398 : vector<1x256xf32>
    %401 = arith.divf %399, %400 : vector<1x256xf32>
    %402 = vector.extract_strided_slice %393 {offsets = [0, 256], sizes = [1, 256], strides = [1, 1]} : vector<1x768xf32> to vector<1x256xf32>
    %403 = vector.extract_strided_slice %392 {offsets = [0, 256], sizes = [1, 256], strides = [1, 1]} : vector<1x768xf32> to vector<1x256xf32>
    %404 = arith.addf %402, %403 : vector<1x256xf32>
    %405 = arith.negf %404 : vector<1x256xf32>
    %406 = math.exp %405 : vector<1x256xf32>
    %cst_68 = arith.constant 1.000000e+00 : f32
    %407 = vector.broadcast %cst_68 : f32 to vector<1x256xf32>
    %408 = arith.addf %407, %406 : vector<1x256xf32>
    %409 = arith.divf %407, %408 : vector<1x256xf32>
    %410 = vector.extract_strided_slice %393 {offsets = [0, 512], sizes = [1, 256], strides = [1, 1]} : vector<1x768xf32> to vector<1x256xf32>
    %411 = vector.extract_strided_slice %392 {offsets = [0, 512], sizes = [1, 256], strides = [1, 1]} : vector<1x768xf32> to vector<1x256xf32>
    %412 = arith.mulf %401, %411 : vector<1x256xf32>
    %413 = arith.addf %410, %412 : vector<1x256xf32>
    %414 = math.tanh %413 : vector<1x256xf32>
    %cst_69 = arith.constant 1.000000e+00 : f32
    %415 = vector.broadcast %cst_69 : f32 to vector<1x256xf32>
    %416 = arith.subf %415, %409 : vector<1x256xf32>
    %417 = arith.mulf %416, %414 : vector<1x256xf32>
    %418 = arith.mulf %409, %390 : vector<1x256xf32>
    %419 = arith.addf %417, %418 : vector<1x256xf32>
    %cst_70 = arith.constant dense<0.000000e+00> : vector<1x768xf32>
    %420 = tpu.matmul %419, %10, %cst_70 {dimension_numbers = #tpu.dot_dimension_numbers<[1], [0], [0], [1], [0, 0, 1, 1], [], []>} : vector<1x256xf32>, vector<256x768xf32>, vector<1x768xf32> -> vector<1x768xf32>
    %421 = arith.addf %420, %11 : vector<1x768xf32>
    %422 = vector.extract_strided_slice %8 {offsets = [14, 0], sizes = [1, 768], strides = [1, 1]} : vector<16x768xf32> to vector<1x768xf32>
    %423 = vector.extract_strided_slice %422 {offsets = [0, 0], sizes = [1, 256], strides = [1, 1]} : vector<1x768xf32> to vector<1x256xf32>
    %424 = vector.extract_strided_slice %421 {offsets = [0, 0], sizes = [1, 256], strides = [1, 1]} : vector<1x768xf32> to vector<1x256xf32>
    %425 = arith.addf %423, %424 : vector<1x256xf32>
    %426 = arith.negf %425 : vector<1x256xf32>
    %427 = math.exp %426 : vector<1x256xf32>
    %cst_71 = arith.constant 1.000000e+00 : f32
    %428 = vector.broadcast %cst_71 : f32 to vector<1x256xf32>
    %429 = arith.addf %428, %427 : vector<1x256xf32>
    %430 = arith.divf %428, %429 : vector<1x256xf32>
    %431 = vector.extract_strided_slice %422 {offsets = [0, 256], sizes = [1, 256], strides = [1, 1]} : vector<1x768xf32> to vector<1x256xf32>
    %432 = vector.extract_strided_slice %421 {offsets = [0, 256], sizes = [1, 256], strides = [1, 1]} : vector<1x768xf32> to vector<1x256xf32>
    %433 = arith.addf %431, %432 : vector<1x256xf32>
    %434 = arith.negf %433 : vector<1x256xf32>
    %435 = math.exp %434 : vector<1x256xf32>
    %cst_72 = arith.constant 1.000000e+00 : f32
    %436 = vector.broadcast %cst_72 : f32 to vector<1x256xf32>
    %437 = arith.addf %436, %435 : vector<1x256xf32>
    %438 = arith.divf %436, %437 : vector<1x256xf32>
    %439 = vector.extract_strided_slice %422 {offsets = [0, 512], sizes = [1, 256], strides = [1, 1]} : vector<1x768xf32> to vector<1x256xf32>
    %440 = vector.extract_strided_slice %421 {offsets = [0, 512], sizes = [1, 256], strides = [1, 1]} : vector<1x768xf32> to vector<1x256xf32>
    %441 = arith.mulf %430, %440 : vector<1x256xf32>
    %442 = arith.addf %439, %441 : vector<1x256xf32>
    %443 = math.tanh %442 : vector<1x256xf32>
    %cst_73 = arith.constant 1.000000e+00 : f32
    %444 = vector.broadcast %cst_73 : f32 to vector<1x256xf32>
    %445 = arith.subf %444, %438 : vector<1x256xf32>
    %446 = arith.mulf %445, %443 : vector<1x256xf32>
    %447 = arith.mulf %438, %419 : vector<1x256xf32>
    %448 = arith.addf %446, %447 : vector<1x256xf32>
    %cst_74 = arith.constant dense<0.000000e+00> : vector<1x768xf32>
    %449 = tpu.matmul %448, %10, %cst_74 {dimension_numbers = #tpu.dot_dimension_numbers<[1], [0], [0], [1], [0, 0, 1, 1], [], []>} : vector<1x256xf32>, vector<256x768xf32>, vector<1x768xf32> -> vector<1x768xf32>
    %450 = arith.addf %449, %11 : vector<1x768xf32>
    %451 = vector.extract_strided_slice %8 {offsets = [15, 0], sizes = [1, 768], strides = [1, 1]} : vector<16x768xf32> to vector<1x768xf32>
    %452 = vector.extract_strided_slice %451 {offsets = [0, 0], sizes = [1, 256], strides = [1, 1]} : vector<1x768xf32> to vector<1x256xf32>
    %453 = vector.extract_strided_slice %450 {offsets = [0, 0], sizes = [1, 256], strides = [1, 1]} : vector<1x768xf32> to vector<1x256xf32>
    %454 = arith.addf %452, %453 : vector<1x256xf32>
    %455 = arith.negf %454 : vector<1x256xf32>
    %456 = math.exp %455 : vector<1x256xf32>
    %cst_75 = arith.constant 1.000000e+00 : f32
    %457 = vector.broadcast %cst_75 : f32 to vector<1x256xf32>
    %458 = arith.addf %457, %456 : vector<1x256xf32>
    %459 = arith.divf %457, %458 : vector<1x256xf32>
    %460 = vector.extract_strided_slice %451 {offsets = [0, 256], sizes = [1, 256], strides = [1, 1]} : vector<1x768xf32> to vector<1x256xf32>
    %461 = vector.extract_strided_slice %450 {offsets = [0, 256], sizes = [1, 256], strides = [1, 1]} : vector<1x768xf32> to vector<1x256xf32>
    %462 = arith.addf %460, %461 : vector<1x256xf32>
    %463 = arith.negf %462 : vector<1x256xf32>
    %464 = math.exp %463 : vector<1x256xf32>
    %cst_76 = arith.constant 1.000000e+00 : f32
    %465 = vector.broadcast %cst_76 : f32 to vector<1x256xf32>
    %466 = arith.addf %465, %464 : vector<1x256xf32>
    %467 = arith.divf %465, %466 : vector<1x256xf32>
    %468 = vector.extract_strided_slice %451 {offsets = [0, 512], sizes = [1, 256], strides = [1, 1]} : vector<1x768xf32> to vector<1x256xf32>
    %469 = vector.extract_strided_slice %450 {offsets = [0, 512], sizes = [1, 256], strides = [1, 1]} : vector<1x768xf32> to vector<1x256xf32>
    %470 = arith.mulf %459, %469 : vector<1x256xf32>
    %471 = arith.addf %468, %470 : vector<1x256xf32>
    %472 = math.tanh %471 : vector<1x256xf32>
    %cst_77 = arith.constant 1.000000e+00 : f32
    %473 = vector.broadcast %cst_77 : f32 to vector<1x256xf32>
    %474 = arith.subf %473, %467 : vector<1x256xf32>
    %475 = arith.mulf %474, %472 : vector<1x256xf32>
    %476 = arith.mulf %467, %448 : vector<1x256xf32>
    %477 = arith.addf %475, %476 : vector<1x256xf32>
    %478 = tpu.concatenate %274, %303, %332, %361, %390, %419, %448, %477 in 0 : vector<1x256xf32>, vector<1x256xf32>, vector<1x256xf32>, vector<1x256xf32>, vector<1x256xf32>, vector<1x256xf32>, vector<1x256xf32>, vector<1x256xf32> -> vector<8x256xf32>
    %c8 = arith.constant 8 : index
    %c0_78 = arith.constant 0 : index
    %479 = vector.load %arg7[%c8, %c0_78] : memref<16x256xf32, #tpu.memory_space<vmem>>, vector<8x256xf32>
    tpu.vector_store %arg7[%c8, %c0_78], %478 {strides = array<i32>} : memref<16x256xf32, #tpu.memory_space<vmem>>, vector<8x256xf32>,
    %c0_79 = arith.constant 0 : index
    %c0_80 = arith.constant 0 : index
    %480 = vector.load %arg8[%c0_79, %c0_80] : memref<1x256xf32, #tpu.memory_space<vmem>>, vector<1x256xf32>
    tpu.vector_store %arg8[%c0_79, %c0_80], %477 {strides = array<i32>} : memref<1x256xf32, #tpu.memory_space<vmem>>, vector<1x256xf32>,
    return
  }
  func.func @transform_0(%arg0: i32) -> (i32, i32) {
    %c0_i32 = arith.constant 0 : i32
    %c0_i32_0 = arith.constant 0 : i32
    return %arg0, %c0_i32 : i32, i32
  }
  func.func @transform_1(%arg0: i32) -> (i32, i32) {
    %c0_i32 = arith.constant 0 : i32
    %c0_i32_0 = arith.constant 0 : i32
    %c0_i32_1 = arith.constant 0 : i32
    return %c0_i32, %c0_i32_0 : i32, i32
  }
  func.func @transform_2(%arg0: i32) -> (i32, i32) {
    %c0_i32 = arith.constant 0 : i32
    %c0_i32_0 = arith.constant 0 : i32
    %c0_i32_1 = arith.constant 0 : i32
    return %c0_i32, %c0_i32_0 : i32, i32
  }
  func.func @transform_3(%arg0: i32) -> (i32, i32) {
    %c0_i32 = arith.constant 0 : i32
    %c0_i32_0 = arith.constant 0 : i32
    %c0_i32_1 = arith.constant 0 : i32
    return %c0_i32, %c0_i32_0 : i32, i32
  }
  func.func @transform_4(%arg0: i32) -> (i32, i32) {
    %c0_i32 = arith.constant 0 : i32
    %c0_i32_0 = arith.constant 0 : i32
    %c0_i32_1 = arith.constant 0 : i32
    return %c0_i32, %c0_i32_0 : i32, i32
  }
  func.func @transform_5(%arg0: i32) -> (i32, i32) {
    %c0_i32 = arith.constant 0 : i32
    %c0_i32_0 = arith.constant 0 : i32
    %c0_i32_1 = arith.constant 0 : i32
    return %c0_i32, %c0_i32_0 : i32, i32
  }
  func.func @transform_6(%arg0: i32) -> (i32, i32) {
    %c0_i32 = arith.constant 0 : i32
    %c0_i32_0 = arith.constant 0 : i32
    return %arg0, %c0_i32 : i32, i32
  }
}

</mosaic_0001>

<llo_original>
// kernel: _encode_sequence.1
$region0: #{_encode_sequence.1}
  #allocation0 [shape = 'u32[]', space=smem, size = 0x4, offset = 0x4, fixed_abs, tag = 'smem constant byte address 0x4 - core index']
  #allocation1 [shape = 'u32[144,128]{1,0:T(1,128)}', space=vmem, size = 0x12000, scoped, tag = 'internal scratch']
  #allocation2 [shape = 'f32[1,256]{1,0:T(1,128)}', space=vmem, size = 0x400, scoped, tag = 'scratch operand']
  %s0 = inlined_call_operand.hbm [shape: f32[32,256], index: 0, kind: input, shape index: {}]
  %s1 = inlined_call_operand.hbm [shape: f32[1,256], index: 1, kind: input, shape index: {}]
  %s2 = inlined_call_operand.hbm [shape: f32[256,768], index: 2, kind: input, shape index: {}]
  %s3 = inlined_call_operand.hbm [shape: f32[256,768], index: 3, kind: input, shape index: {}]
  %s4 = inlined_call_operand.hbm [shape: f32[1,768], index: 4, kind: input, shape index: {}]
  %s5 = inlined_call_operand.hbm [shape: f32[1,768], index: 5, kind: input, shape index: {}]
  %s6 = inlined_call_operand.hbm [shape: f32[32,256], index: 6, kind: output, shape index: {}]
  %s7 = sld [smem:[#allocation0]]
  $region85: #{_encode_sequence.1} parent=0
    _
  %s9 = ssub.s32 1, %s7
  %s10 = scalar_select 0, %s9, %s7
  $region1: #{_encode_sequence.1} parent=0
    #allocation3 [shape = 'u8[32768]{0}', space=vmem, size = 0x8000, scoped, tag = 'input window, operand 0']
    #allocation4 [shape = 's32[2]{0}', space=sflag, size = 0x8, scoped, tag = 'scoped memory for _encode_sequence.1']
    #allocation5 [shape = 's32[2]{0}', space=sflag, size = 0x8, scoped, tag = 'scoped memory for _encode_sequence.1']
    #allocation6 [shape = 'u8[1024]{0}', space=vmem, size = 0x400, scoped, tag = 'input window, operand 1, single buffered']
    #allocation7 [shape = 's32[1]{0}', space=sflag, size = 0x4, scoped, tag = 'scoped memory for _encode_sequence.1']
    #allocation8 [shape = 'u8[786432]{0}', space=vmem, size = 0xc0000, scoped, tag = 'input window, operand 2, single buffered']
    #allocation9 [shape = 'u8[786432]{0}', space=vmem, size = 0xc0000, scoped, tag = 'input window, operand 3, single buffered']
    #allocation10 [shape = 's32[1]{0}', space=sflag, size = 0x4, scoped, tag = 'scoped memory for _encode_sequence.1']
    #allocation11 [shape = 'u8[3072]{0}', space=vmem, size = 0xc00, scoped, tag = 'input window, operand 4, single buffered']
    #allocation12 [shape = 'u8[3072]{0}', space=vmem, size = 0xc00, scoped, tag = 'input window, operand 5, single buffered']
    #allocation13 [shape = 's32[1]{0}', space=sflag, size = 0x4, scoped, tag = 'scoped memory for _encode_sequence.1']
    #allocation14 [shape = 'u8[32768]{0}', space=vmem, size = 0x8000, scoped, tag = 'output window, operand 0']
    %11 = vsyncpa [#allocation4], 0
    %s12 = scalar_lea.sflag [#allocation4], 1
    %13 = vsyncpa %s12, 0
    %14 = vsyncpa [#allocation7], 0
    %15 = vsyncpa [#allocation10], 0
    %16 = vsyncpa [#allocation13], 0
    %17 = vsyncpa [#allocation5], 0
    %s18 = scalar_lea.sflag [#allocation5], 1
    %19 = vsyncpa %s18, 0
    loop: start=0, step=1, limit=4
    $region2: #{_encode_sequence.1} parent=1 // loop_pre_header
      _
    $region3: #{_encode_sequence.1} parent=1 // loop_header
      %s21 = sphi 0, %s25
      %p22 = scmp.ge.s32.totalorder %s21, 4
      %s31 = sphi 0, %s33
      %s34 = sphi 0, %s31
      %s35 = sphi 0, %s34
      %s51 = sphi 0, %s35
      %s55 = sphi 0, %s55
      %s57 = sphi 0, %s55
      %s58 = sphi 0, %s57
      %s72 = sphi 0, %s58
      %s76 = sphi 0, %s76
      %s78 = sphi 0, %s76
      %s79 = sphi 0, %s78
      %s93 = sphi 0, %s79
      %s97 = sphi 0, %s97
      %s99 = sphi 0, %s97
      %s100 = sphi 0, %s99
      %s114 = sphi 0, %s100
      %s118 = sphi 0, %s118
      %s120 = sphi 0, %s118
      %s121 = sphi 0, %s120
      %s135 = sphi 0, %s121
      %s139 = sphi 0, %s139
      %s141 = sphi 0, %s139
      %s142 = sphi 0, %s141
      %s156 = sphi 0, %s142
      %s162 = sphi 0, %s164
      %s165 = sphi 0, %s162
      %s166 = sphi 0, %s165
      %s182 = sphi 0, %s166
    $region4: #{_encode_sequence.1} parent=1 // loop_header_branch
      %24 = sbr.rel (%p22) target = $region8
    $region5: #{_encode_sequence.1} parent=1 // loop_body
      %s26 = ssub.s32 %s21, 1
      %s27 = ssub.s32 %s21, 2
      %s28 = sadd.s32 %s21, 1
      %s29 = ssub.s32 %s21, %s28
      %p30 = scmp.eq.s32.totalorder %s29, 0
      %s32 = sadd.s32 %s31, 1
      %s33 = scalar_select %p30, %s31, %s32
      %p36 = pneg %p30
      %p37 = scmp.eq.s32.totalorder %s21, 1
      %p38 = por %p36, %p37
      %p39 = scmp.ne.s32.totalorder %s31, %s34
      %p40 = scmp.eq.s32.totalorder %s21, 0
      %p41 = por %p39, %p40
      %p42 = scmp.ne.s32.totalorder %s31, %s34
      %p43 = scmp.eq.s32.totalorder %s26, 1
      %p44 = por %p42, %p43
      %p45 = scmp.ne.s32.totalorder %s34, %s35
      %p46 = scmp.eq.s32.totalorder %s26, 0
      %p47 = por %p45, %p46
      %p48 = scmp.ne.s32.totalorder %s34, %s35
      %p49 = scmp.eq.s32.totalorder %s27, 1
      %p50 = por %p48, %p49
      %p52 = scmp.ne.s32.totalorder %s35, %s51
      %p53 = scmp.eq.s32.totalorder %s27, 0
      %p54 = por %p52, %p53
      %s56 = sadd.s32 %s55, 1
      %p59 = scmp.eq.s32.totalorder %s21, 1
      %p60 = scmp.ne.s32.totalorder %s55, %s57
      %p61 = scmp.eq.s32.totalorder %s21, 0
      %p62 = por %p60, %p61
      %p63 = scmp.ne.s32.totalorder %s55, %s57
      %p64 = scmp.eq.s32.totalorder %s26, 1
      %p65 = por %p63, %p64
      %p66 = scmp.ne.s32.totalorder %s57, %s58
      %p67 = scmp.eq.s32.totalorder %s26, 0
      %p68 = por %p66, %p67
      %p69 = scmp.ne.s32.totalorder %s57, %s58
      %p70 = scmp.eq.s32.totalorder %s27, 1
      %p71 = por %p69, %p70
      %p73 = scmp.ne.s32.totalorder %s58, %s72
      %p74 = scmp.eq.s32.totalorder %s27, 0
      %p75 = por %p73, %p74
      %s77 = sadd.s32 %s76, 1
      %p80 = scmp.eq.s32.totalorder %s21, 1
      %p81 = scmp.ne.s32.totalorder %s76, %s78
      %p82 = scmp.eq.s32.totalorder %s21, 0
      %p83 = por %p81, %p82
      %p84 = scmp.ne.s32.totalorder %s76, %s78
      %p85 = scmp.eq.s32.totalorder %s26, 1
      %p86 = por %p84, %p85
      %p87 = scmp.ne.s32.totalorder %s78, %s79
      %p88 = scmp.eq.s32.totalorder %s26, 0
      %p89 = por %p87, %p88
      %p90 = scmp.ne.s32.totalorder %s78, %s79
      %p91 = scmp.eq.s32.totalorder %s27, 1
      %p92 = por %p90, %p91
      %p94 = scmp.ne.s32.totalorder %s79, %s93
      %p95 = scmp.eq.s32.totalorder %s27, 0
      %p96 = por %p94, %p95
      %s98 = sadd.s32 %s97, 1
      %p101 = scmp.eq.s32.totalorder %s21, 1
      %p102 = scmp.ne.s32.totalorder %s97, %s99
      %p103 = scmp.eq.s32.totalorder %s21, 0
      %p104 = por %p102, %p103
      %p105 = scmp.ne.s32.totalorder %s97, %s99
      %p106 = scmp.eq.s32.totalorder %s26, 1
      %p107 = por %p105, %p106
      %p108 = scmp.ne.s32.totalorder %s99, %s100
      %p109 = scmp.eq.s32.totalorder %s26, 0
      %p110 = por %p108, %p109
      %p111 = scmp.ne.s32.totalorder %s99, %s100
      %p112 = scmp.eq.s32.totalorder %s27, 1
      %p113 = por %p111, %p112
      %p115 = scmp.ne.s32.totalorder %s100, %s114
      %p116 = scmp.eq.s32.totalorder %s27, 0
      %p117 = por %p115, %p116
      %s119 = sadd.s32 %s118, 1
      %p122 = scmp.eq.s32.totalorder %s21, 1
      %p123 = scmp.ne.s32.totalorder %s118, %s120
      %p124 = scmp.eq.s32.totalorder %s21, 0
      %p125 = por %p123, %p124
      %p126 = scmp.ne.s32.totalorder %s118, %s120
      %p127 = scmp.eq.s32.totalorder %s26, 1
      %p128 = por %p126, %p127
      %p129 = scmp.ne.s32.totalorder %s120, %s121
      %p130 = scmp.eq.s32.totalorder %s26, 0
      %p131 = por %p129, %p130
      %p132 = scmp.ne.s32.totalorder %s120, %s121
      %p133 = scmp.eq.s32.totalorder %s27, 1
      %p134 = por %p132, %p133
      %p136 = scmp.ne.s32.totalorder %s121, %s135
      %p137 = scmp.eq.s32.totalorder %s27, 0
      %p138 = por %p136, %p137
      %s140 = sadd.s32 %s139, 1
      %p143 = scmp.eq.s32.totalorder %s21, 1
      %p144 = scmp.ne.s32.totalorder %s139, %s141
      %p145 = scmp.eq.s32.totalorder %s21, 0
      %p146 = por %p144, %p145
      %p147 = scmp.ne.s32.totalorder %s139, %s141
      %p148 = scmp.eq.s32.totalorder %s26, 1
      %p149 = por %p147, %p148
      %p150 = scmp.ne.s32.totalorder %s141, %s142
      %p151 = scmp.eq.s32.totalorder %s26, 0
      %p152 = por %p150, %p151
      %p153 = scmp.ne.s32.totalorder %s141, %s142
      %p154 = scmp.eq.s32.totalorder %s27, 1
      %p155 = por %p153, %p154
      %p157 = scmp.ne.s32.totalorder %s142, %s156
      %p158 = scmp.eq.s32.totalorder %s27, 0
      %p159 = por %p157, %p158
      %s160 = ssub.s32 %s21, %s28
      %p161 = scmp.eq.s32.totalorder %s160, 0
      %s163 = sadd.s32 %s162, 1
      %s164 = scalar_select %p161, %s162, %s163
      %p167 = pneg %p161
      %p168 = scmp.eq.s32.totalorder %s21, 1
      %p169 = por %p167, %p168
      %p170 = scmp.ne.s32.totalorder %s162, %s165
      %p171 = scmp.eq.s32.totalorder %s21, 0
      %p172 = por %p170, %p171
      %p173 = scmp.ne.s32.totalorder %s162, %s165
      %p174 = scmp.eq.s32.totalorder %s26, 1
      %p175 = por %p173, %p174
      %p176 = scmp.ne.s32.totalorder %s165, %s166
      %p177 = scmp.eq.s32.totalorder %s26, 0
      %p178 = por %p176, %p177
      %p179 = scmp.ne.s32.totalorder %s165, %s166
      %p180 = scmp.eq.s32.totalorder %s27, 1
      %p181 = por %p179, %p180
      %p183 = scmp.ne.s32.totalorder %s166, %s182
      %p184 = scmp.eq.s32.totalorder %s27, 0
      %p185 = por %p183, %p184
      %p186 = scmp.le.s32.totalorder 1, %s21
      %p187 = scmp.lt.s32.totalorder %s21, 3
      %p188 = pnand %p186, %p187
      %p189 = pneg %p188
      // Predicated region
      $region9: #{_encode_sequence.1} parent=5 // pred_check
        _
      $region10: #{_encode_sequence.1} parent=5 // pred_check_branch
        %191 = sbr.rel (%p188) target = $region12
      $region11: #{_encode_sequence.1} parent=5 // pred_region
        %s192 = ssub.s32 %s21, 1
        // Predicated region
        $region13: #{_encode_sequence.1} parent=11 // pred_check
          %p193 = pneg %p68
        $region14: #{_encode_sequence.1} parent=11 // pred_check_branch
          %195 = sbr.rel (%p193) target = $region16
        $region15: #{_encode_sequence.1} parent=11 // pred_region
          %s197 = ssub.s32 32, 32
          %198 = vsyncadd [#allocation7], %s197
          %s200 = sshll.u32 [#allocation6], 4
          %s201 = int_to_ptr.vmem [resolvable:$true] %s200
          %203 = dma.hbm_to_vmem [thread:$0]  %s1, 32, %s201, [#allocation7]
        $region16: #{_encode_sequence.1} parent=11 // pred_fallthru
          _
        // Predicated region
        $region17: #{_encode_sequence.1} parent=11 // pred_check
          %p204 = pneg %p89
        $region18: #{_encode_sequence.1} parent=11 // pred_check_branch
          %206 = sbr.rel (%p204) target = $region20
        $region19: #{_encode_sequence.1} parent=11 // pred_region
          %s208 = ssub.s32 24576, 24576
          %209 = vsyncadd [#allocation7], %s208
          %s210 = sshll.u32 [#allocation8], 4
          %s211 = int_to_ptr.vmem [resolvable:$true] %s210
          %216 = dma.hbm_to_vmem [thread:$0]  %s2, 24576, %s211, [#allocation7], 768, 768, 48
        $region20: #{_encode_sequence.1} parent=11 // pred_fallthru
          _
        // Predicated region
        $region21: #{_encode_sequence.1} parent=11 // pred_check
          %p217 = pneg %p110
        $region22: #{_encode_sequence.1} parent=11 // pred_check_branch
          %219 = sbr.rel (%p217) target = $region24
        $region23: #{_encode_sequence.1} parent=11 // pred_region
          %s221 = ssub.s32 24576, 24576
          %222 = vsyncadd [#allocation10], %s221
          %s223 = sshll.u32 [#allocation9], 4
          %s224 = int_to_ptr.vmem [resolvable:$true] %s223
          %229 = dma.hbm_to_vmem [thread:$0]  %s3, 24576, %s224, [#allocation10], 768, 768, 48
        $region24: #{_encode_sequence.1} parent=11 // pred_fallthru
          _
        // Predicated region
        $region25: #{_encode_sequence.1} parent=11 // pred_check
          %p230 = pneg %p131
        $region26: #{_encode_sequence.1} parent=11 // pred_check_branch
          %232 = sbr.rel (%p230) target = $region28
        $region27: #{_encode_sequence.1} parent=11 // pred_region
          %s234 = ssub.s32 96, 96
          %235 = vsyncadd [#allocation10], %s234
          %s237 = sshll.u32 [#allocation11], 4
          %s238 = int_to_ptr.vmem [resolvable:$true] %s237
          %240 = dma.hbm_to_vmem [thread:$0]  %s4, 96, %s238, [#allocation10]
        $region28: #{_encode_sequence.1} parent=11 // pred_fallthru
          _
        // Predicated region
        $region29: #{_encode_sequence.1} parent=11 // pred_check
          %p241 = pneg %p152
        $region30: #{_encode_sequence.1} parent=11 // pred_check_branch
          %243 = sbr.rel (%p241) target = $region32
        $region31: #{_encode_sequence.1} parent=11 // pred_region
          %s245 = ssub.s32 96, 96
          %246 = vsyncadd [#allocation13], %s245
          %s248 = sshll.u32 [#allocation12], 4
          %s249 = int_to_ptr.vmem [resolvable:$true] %s248
          %251 = dma.hbm_to_vmem [thread:$0]  %s5, 96, %s249, [#allocation13]
        $region32: #{_encode_sequence.1} parent=11 // pred_fallthru
          _
      $region12: #{_encode_sequence.1} parent=5 // pred_fallthru
        _
      %p252 = scmp.lt.s32.totalorder %s21, 2
      // Predicated region
      $region33: #{_encode_sequence.1} parent=5 // pred_check
        %p253 = pneg %p252
      $region34: #{_encode_sequence.1} parent=5 // pred_check_branch
        %255 = sbr.rel (%p253) target = $region36
      $region35: #{_encode_sequence.1} parent=5 // pred_region
        // Predicated region
        $region37: #{_encode_sequence.1} parent=35 // pred_check
          %p256 = pneg %p41
        $region38: #{_encode_sequence.1} parent=35 // pred_check_branch
          %258 = sbr.rel (%p256) target = $region40
        $region39: #{_encode_sequence.1} parent=35 // pred_region
          %s259 = sand.u32 %s31, 1
          %s260 = scalar_lea.sflag [#allocation4], %s259
          %s261 = sand.u32 %s31, 1
          %s262 = smul.addr %s261, 32
          %s263 = scalar_lea.vmem [#allocation3], %s262
          %s264 = smul.u32 2, %s21
          %s266 = ssub.s32 512, 512
          %267 = vsyncadd %s260, %s266
          %s268 = smul.addr %s264, 2
          %s269 = smul.addr %s268, 128
          %s270 = scalar_lea.hbm %s0, %s269
          %s271 = sshll.u32 %s263, 4
          %s272 = int_to_ptr.vmem [resolvable:$true] %s271
          %277 = dma.hbm_to_vmem [thread:$0]  %s270, 512, %s272, %s260, 256, 256, 16
        $region40: #{_encode_sequence.1} parent=35 // pred_fallthru
          _
      $region36: #{_encode_sequence.1} parent=5 // pred_fallthru
        _
      %p278 = scmp.le.s32.totalorder 1, %s21
      %p279 = scmp.lt.s32.totalorder %s21, 3
      %p280 = pnand %p278, %p279
      %p281 = pneg %p280
      // Predicated region
      $region41: #{_encode_sequence.1} parent=5 // pred_check
        _
      $region42: #{_encode_sequence.1} parent=5 // pred_check_branch
        %283 = sbr.rel (%p280) target = $region44
      $region43: #{_encode_sequence.1} parent=5 // pred_region
        %s284 = ssub.s32 %s21, 1
        %s285 = sand.u32 %s34, 1
        %s286 = scalar_lea.sflag [#allocation4], %s285
        %s287 = sand.u32 %s34, 1
        %s288 = smul.addr %s287, 32
        %s289 = scalar_lea.vmem [#allocation3], %s288
        // Predicated region
        $region45: #{_encode_sequence.1} parent=43 // pred_check
          %p290 = pneg %p47
        $region46: #{_encode_sequence.1} parent=43 // pred_check_branch
          %292 = sbr.rel (%p290) target = $region48
        $region47: #{_encode_sequence.1} parent=43 // pred_region
          %293 = dma.done %s286, 512
        $region48: #{_encode_sequence.1} parent=43 // pred_fallthru
          _
        // Predicated region
        $region49: #{_encode_sequence.1} parent=43 // pred_check
          %p294 = pneg %p68
        $region50: #{_encode_sequence.1} parent=43 // pred_check_branch
          %296 = sbr.rel (%p294) target = $region52
        $region51: #{_encode_sequence.1} parent=43 // pred_region
          %297 = dma.done [#allocation7], 32
        $region52: #{_encode_sequence.1} parent=43 // pred_fallthru
          _
        // Predicated region
        $region53: #{_encode_sequence.1} parent=43 // pred_check
          %p298 = pneg %p89
        $region54: #{_encode_sequence.1} parent=43 // pred_check_branch
          %300 = sbr.rel (%p298) target = $region56
        $region55: #{_encode_sequence.1} parent=43 // pred_region
          %301 = dma.done [#allocation7], 24576
        $region56: #{_encode_sequence.1} parent=43 // pred_fallthru
          _
        // Predicated region
        $region57: #{_encode_sequence.1} parent=43 // pred_check
          %p302 = pneg %p110
        $region58: #{_encode_sequence.1} parent=43 // pred_check_branch
          %304 = sbr.rel (%p302) target = $region60
        $region59: #{_encode_sequence.1} parent=43 // pred_region
          %305 = dma.done [#allocation10], 24576
        $region60: #{_encode_sequence.1} parent=43 // pred_fallthru
          _
        // Predicated region
        $region61: #{_encode_sequence.1} parent=43 // pred_check
          %p306 = pneg %p131
        $region62: #{_encode_sequence.1} parent=43 // pred_check_branch
          %308 = sbr.rel (%p306) target = $region64
        $region63: #{_encode_sequence.1} parent=43 // pred_region
          %309 = dma.done [#allocation10], 96
        $region64: #{_encode_sequence.1} parent=43 // pred_fallthru
          _
        // Predicated region
        $region65: #{_encode_sequence.1} parent=43 // pred_check
          %p310 = pneg %p152
        $region66: #{_encode_sequence.1} parent=43 // pred_check_branch
          %312 = sbr.rel (%p310) target = $region68
        $region67: #{_encode_sequence.1} parent=43 // pred_region
          %313 = dma.done [#allocation13], 96
        $region68: #{_encode_sequence.1} parent=43 // pred_fallthru
          _
        %s314 = sand.u32 %s34, 1
        %s315 = scalar_lea.sflag [#allocation4], %s314
        %s316 = sand.u32 %s34, 1
        %s317 = smul.addr %s316, 32
        %s318 = scalar_lea.vmem [#allocation3], %s317
        %p319 = pneg %p47
        %p320 = pneg %p44
        %p321 = pneg %p68
        %p322 = pneg %p65
        %p323 = pneg %p89
        %p324 = pneg %p86
        %p325 = pneg %p110
        %p326 = pneg %p107
        %p327 = pneg %p131
        %p328 = pneg %p128
        %p329 = pneg %p152
        %p330 = pneg %p149
        %p331 = pneg %p178
        %p332 = pneg %p175
        %s333 = sand.u32 %s165, 1
        %s334 = scalar_lea.sflag [#allocation5], %s333
        %s335 = sand.u32 %s165, 1
        %s336 = smul.addr %s335, 32
        %s337 = scalar_lea.vmem [#allocation14], %s336
        %s338 = smul.u32 2, %s26
        %s339 = smul.u32 2, %s26
        %p340 = scmp.eq.s32.totalorder %s26, 0
        // Predicated region
        $region69: #{_encode_sequence.1} parent=43 // pred_check
          %p341 = pneg %p340
        $region70: #{_encode_sequence.1} parent=43 // pred_check_branch
          %343 = sbr.rel (%p341) target = $region72
        $region71: #{_encode_sequence.1} parent=43 // pred_region
          %v344 = vld [vmem:[#allocation6] sm:$0x3]
          %v345 = vlaneseq
          %vm346 = vcmp.ge.s32.totalorder %v345, 0
          %vm347 = vcmp.lt.s32.totalorder %v345, 256
          %vm348 = vmand %vm346, %vm347
          %349 = vst.msk [vmem:[#allocation2] sm:$0x3] %vm348, %v344
        $region72: #{_encode_sequence.1} parent=43 // pred_fallthru
          _
        %v350 = vld [vmem:[%s289] sm:$0xff]
        %v351 = vld [vmem:[%s289 + $0x8] sm:$0xff]
        %v352 = vld [vmem:[%s289 + $0x10] sm:$0xff]
        %v353 = vld [vmem:[%s289 + $0x18] sm:$0xff]
        %v354 = vld [vmem:[#allocation8] sm:$0xff]
        %v355 = vld [vmem:[#allocation8 + $0x8] sm:$0xff]
        %v356 = vld [vmem:[#allocation8 + $0x10] sm:$0xff]
        %v357 = vld [vmem:[#allocation8 + $0x18] sm:$0xff]
        %v358 = vld [vmem:[#allocation8 + $0x20] sm:$0xff]
        %v359 = vld [vmem:[#allocation8 + $0x28] sm:$0xff]
        %v360 = vld [vmem:[#allocation8 + $0x30] sm:$0xff]
        %v361 = vld [vmem:[#allocation8 + $0x38] sm:$0xff]
        %v362 = vld [vmem:[#allocation8 + $0x40] sm:$0xff]
        %v363 = vld [vmem:[#allocation8 + $0x48] sm:$0xff]
        %v364 = vld [vmem:[#allocation8 + $0x50] sm:$0xff]
        %v365 = vld [vmem:[#allocation8 + $0x58] sm:$0xff]
        %v366 = vld [vmem:[#allocation8 + $0x60] sm:$0xff]
        %v367 = vld [vmem:[#allocation8 + $0x68] sm:$0xff]
        %v368 = vld [vmem:[#allocation8 + $0x70] sm:$0xff]
        %v369 = vld [vmem:[#allocation8 + $0x78] sm:$0xff]
        %v370 = vld [vmem:[#allocation8 + $0x80] sm:$0xff]
        %v371 = vld [vmem:[#allocation8 + $0x88] sm:$0xff]
        %v372 = vld [vmem:[#allocation8 + $0x90] sm:$0xff]
        %v373 = vld [vmem:[#allocation8 + $0x98] sm:$0xff]
        %v374 = vld [vmem:[#allocation8 + $0xa0] sm:$0xff]
        %v375 = vld [vmem:[#allocation8 + $0xa8] sm:$0xff]
        %v376 = vld [vmem:[#allocation8 + $0xb0] sm:$0xff]
        %v377 = vld [vmem:[#allocation8 + $0xb8] sm:$0xff]
        %v378 = vld [vmem:[#allocation8 + $0xc0] sm:$0xff]
        %v379 = vld [vmem:[#allocation8 + $0xc8] sm:$0xff]
        %v380 = vld [vmem:[#allocation8 + $0xd0] sm:$0xff]
        %v381 = vld [vmem:[#allocation8 + $0xd8] sm:$0xff]
        %v382 = vld [vmem:[#allocation8 + $0xe0] sm:$0xff]
        %v383 = vld [vmem:[#allocation8 + $0xe8] sm:$0xff]
        %v384 = vld [vmem:[#allocation8 + $0xf0] sm:$0xff]
        %v385 = vld [vmem:[#allocation8 + $0xf8] sm:$0xff]
        %v386 = vld [vmem:[#allocation8 + $0x100] sm:$0xff]
        %v387 = vld [vmem:[#allocation8 + $0x108] sm:$0xff]
        %v388 = vld [vmem:[#allocation8 + $0x110] sm:$0xff]
        %v389 = vld [vmem:[#allocation8 + $0x118] sm:$0xff]
        %v390 = vld [vmem:[#allocation8 + $0x120] sm:$0xff]
        %v391 = vld [vmem:[#allocation8 + $0x128] sm:$0xff]
        %v392 = vld [vmem:[#allocation8 + $0x130] sm:$0xff]
        %v393 = vld [vmem:[#allocation8 + $0x138] sm:$0xff]
        %v394 = vld [vmem:[#allocation8 + $0x140] sm:$0xff]
        %v395 = vld [vmem:[#allocation8 + $0x148] sm:$0xff]
        %v396 = vld [vmem:[#allocation8 + $0x150] sm:$0xff]
        %v397 = vld [vmem:[#allocation8 + $0x158] sm:$0xff]
        %v398 = vld [vmem:[#allocation8 + $0x160] sm:$0xff]
        %v399 = vld [vmem:[#allocation8 + $0x168] sm:$0xff]
        %v400 = vld [vmem:[#allocation8 + $0x170] sm:$0xff]
        %v401 = vld [vmem:[#allocation8 + $0x178] sm:$0xff]
        %v402 = vld [vmem:[#allocation8 + $0x180] sm:$0xff]
        %v403 = vld [vmem:[#allocation8 + $0x188] sm:$0xff]
        %v404 = vld [vmem:[#allocation8 + $0x190] sm:$0xff]
        %v405 = vld [vmem:[#allocation8 + $0x198] sm:$0xff]
        %v406 = vld [vmem:[#allocation8 + $0x1a0] sm:$0xff]
        %v407 = vld [vmem:[#allocation8 + $0x1a8] sm:$0xff]
        %v408 = vld [vmem:[#allocation8 + $0x1b0] sm:$0xff]
        %v409 = vld [vmem:[#allocation8 + $0x1b8] sm:$0xff]
        %v410 = vld [vmem:[#allocation8 + $0x1c0] sm:$0xff]
        %v411 = vld [vmem:[#allocation8 + $0x1c8] sm:$0xff]
        %v412 = vld [vmem:[#allocation8 + $0x1d0] sm:$0xff]
        %v413 = vld [vmem:[#allocation8 + $0x1d8] sm:$0xff]
        %v414 = vld [vmem:[#allocation8 + $0x1e0] sm:$0xff]
        %v415 = vld [vmem:[#allocation8 + $0x1e8] sm:$0xff]
        %v416 = vld [vmem:[#allocation8 + $0x1f0] sm:$0xff]
        %v417 = vld [vmem:[#allocation8 + $0x1f8] sm:$0xff]
        %v418 = vld [vmem:[#allocation8 + $0x200] sm:$0xff]
        %v419 = vld [vmem:[#allocation8 + $0x208] sm:$0xff]
        %v420 = vld [vmem:[#allocation8 + $0x210] sm:$0xff]
        %v421 = vld [vmem:[#allocation8 + $0x218] sm:$0xff]
        %v422 = vld [vmem:[#allocation8 + $0x220] sm:$0xff]
        %v423 = vld [vmem:[#allocation8 + $0x228] sm:$0xff]
        %v424 = vld [vmem:[#allocation8 + $0x230] sm:$0xff]
        %v425 = vld [vmem:[#allocation8 + $0x238] sm:$0xff]
        %v426 = vld [vmem:[#allocation8 + $0x240] sm:$0xff]
        %v427 = vld [vmem:[#allocation8 + $0x248] sm:$0xff]
        %v428 = vld [vmem:[#allocation8 + $0x250] sm:$0xff]
        %v429 = vld [vmem:[#allocation8 + $0x258] sm:$0xff]
        %v430 = vld [vmem:[#allocation8 + $0x260] sm:$0xff]
        %v431 = vld [vmem:[#allocation8 + $0x268] sm:$0xff]
        %v432 = vld [vmem:[#allocation8 + $0x270] sm:$0xff]
        %v433 = vld [vmem:[#allocation8 + $0x278] sm:$0xff]
        %v434 = vld [vmem:[#allocation8 + $0x280] sm:$0xff]
        %v435 = vld [vmem:[#allocation8 + $0x288] sm:$0xff]
        %v436 = vld [vmem:[#allocation8 + $0x290] sm:$0xff]
        %v437 = vld [vmem:[#allocation8 + $0x298] sm:$0xff]
        %v438 = vld [vmem:[#allocation8 + $0x2a0] sm:$0xff]
        %v439 = vld [vmem:[#allocation8 + $0x2a8] sm:$0xff]
        %v440 = vld [vmem:[#allocation8 + $0x2b0] sm:$0xff]
        %v441 = vld [vmem:[#allocation8 + $0x2b8] sm:$0xff]
        %v442 = vld [vmem:[#allocation8 + $0x2c0] sm:$0xff]
        %v443 = vld [vmem:[#allocation8 + $0x2c8] sm:$0xff]
        %v444 = vld [vmem:[#allocation8 + $0x2d0] sm:$0xff]
        %v445 = vld [vmem:[#allocation8 + $0x2d8] sm:$0xff]
        %v446 = vld [vmem:[#allocation8 + $0x2e0] sm:$0xff]
        %v447 = vld [vmem:[#allocation8 + $0x2e8] sm:$0xff]
        %v448 = vld [vmem:[#allocation8 + $0x2f0] sm:$0xff]
        %v449 = vld [vmem:[#allocation8 + $0x2f8] sm:$0xff]
        %v450 = vld [vmem:[#allocation8 + $0x300] sm:$0xff]
        %v451 = vld [vmem:[#allocation8 + $0x308] sm:$0xff]
        %v452 = vld [vmem:[#allocation8 + $0x310] sm:$0xff]
        %v453 = vld [vmem:[#allocation8 + $0x318] sm:$0xff]
        %v454 = vld [vmem:[#allocation8 + $0x320] sm:$0xff]
        %v455 = vld [vmem:[#allocation8 + $0x328] sm:$0xff]
        %v456 = vld [vmem:[#allocation8 + $0x330] sm:$0xff]
        %v457 = vld [vmem:[#allocation8 + $0x338] sm:$0xff]
        %v458 = vld [vmem:[#allocation8 + $0x340] sm:$0xff]
        %v459 = vld [vmem:[#allocation8 + $0x348] sm:$0xff]
        %v460 = vld [vmem:[#allocation8 + $0x350] sm:$0xff]
        %v461 = vld [vmem:[#allocation8 + $0x358] sm:$0xff]
        %v462 = vld [vmem:[#allocation8 + $0x360] sm:$0xff]
        %v463 = vld [vmem:[#allocation8 + $0x368] sm:$0xff]
        %v464 = vld [vmem:[#allocation8 + $0x370] sm:$0xff]
        %v465 = vld [vmem:[#allocation8 + $0x378] sm:$0xff]
        %v466 = vld [vmem:[#allocation8 + $0x380] sm:$0xff]
        %v467 = vld [vmem:[#allocation8 + $0x388] sm:$0xff]
        %v468 = vld [vmem:[#allocation8 + $0x390] sm:$0xff]
        %v469 = vld [vmem:[#allocation8 + $0x398] sm:$0xff]
        %v470 = vld [vmem:[#allocation8 + $0x3a0] sm:$0xff]
        %v471 = vld [vmem:[#allocation8 + $0x3a8] sm:$0xff]
        %v472 = vld [vmem:[#allocation8 + $0x3b0] sm:$0xff]
        %v473 = vld [vmem:[#allocation8 + $0x3b8] sm:$0xff]
        %v474 = vld [vmem:[#allocation8 + $0x3c0] sm:$0xff]
        %v475 = vld [vmem:[#allocation8 + $0x3c8] sm:$0xff]
        %v476 = vld [vmem:[#allocation8 + $0x3d0] sm:$0xff]
        %v477 = vld [vmem:[#allocation8 + $0x3d8] sm:$0xff]
        %v478 = vld [vmem:[#allocation8 + $0x3e0] sm:$0xff]
        %v479 = vld [vmem:[#allocation8 + $0x3e8] sm:$0xff]
        %v480 = vld [vmem:[#allocation8 + $0x3f0] sm:$0xff]
        %v481 = vld [vmem:[#allocation8 + $0x3f8] sm:$0xff]
        %v482 = vld [vmem:[#allocation8 + $0x400] sm:$0xff]
        %v483 = vld [vmem:[#allocation8 + $0x408] sm:$0xff]
        %v484 = vld [vmem:[#allocation8 + $0x410] sm:$0xff]
        %v485 = vld [vmem:[#allocation8 + $0x418] sm:$0xff]
        %v486 = vld [vmem:[#allocation8 + $0x420] sm:$0xff]
        %v487 = vld [vmem:[#allocation8 + $0x428] sm:$0xff]
        %v488 = vld [vmem:[#allocation8 + $0x430] sm:$0xff]
        %v489 = vld [vmem:[#allocation8 + $0x438] sm:$0xff]
        %v490 = vld [vmem:[#allocation8 + $0x440] sm:$0xff]
        %v491 = vld [vmem:[#allocation8 + $0x448] sm:$0xff]
        %v492 = vld [vmem:[#allocation8 + $0x450] sm:$0xff]
        %v493 = vld [vmem:[#allocation8 + $0x458] sm:$0xff]
        %v494 = vld [vmem:[#allocation8 + $0x460] sm:$0xff]
        %v495 = vld [vmem:[#allocation8 + $0x468] sm:$0xff]
        %v496 = vld [vmem:[#allocation8 + $0x470] sm:$0xff]
        %v497 = vld [vmem:[#allocation8 + $0x478] sm:$0xff]
        %v498 = vld [vmem:[#allocation8 + $0x480] sm:$0xff]
        %v499 = vld [vmem:[#allocation8 + $0x488] sm:$0xff]
        %v500 = vld [vmem:[#allocation8 + $0x490] sm:$0xff]
        %v501 = vld [vmem:[#allocation8 + $0x498] sm:$0xff]
        %v502 = vld [vmem:[#allocation8 + $0x4a0] sm:$0xff]
        %v503 = vld [vmem:[#allocation8 + $0x4a8] sm:$0xff]
        %v504 = vld [vmem:[#allocation8 + $0x4b0] sm:$0xff]
        %v505 = vld [vmem:[#allocation8 + $0x4b8] sm:$0xff]
        %v506 = vld [vmem:[#allocation8 + $0x4c0] sm:$0xff]
        %v507 = vld [vmem:[#allocation8 + $0x4c8] sm:$0xff]
        %v508 = vld [vmem:[#allocation8 + $0x4d0] sm:$0xff]
        %v509 = vld [vmem:[#allocation8 + $0x4d8] sm:$0xff]
        %v510 = vld [vmem:[#allocation8 + $0x4e0] sm:$0xff]
        %v511 = vld [vmem:[#allocation8 + $0x4e8] sm:$0xff]
        %v512 = vld [vmem:[#allocation8 + $0x4f0] sm:$0xff]
        %v513 = vld [vmem:[#allocation8 + $0x4f8] sm:$0xff]
        %v514 = vld [vmem:[#allocation8 + $0x500] sm:$0xff]
        %v515 = vld [vmem:[#allocation8 + $0x508] sm:$0xff]
        %v516 = vld [vmem:[#allocation8 + $0x510] sm:$0xff]
        %v517 = vld [vmem:[#allocation8 + $0x518] sm:$0xff]
        %v518 = vld [vmem:[#allocation8 + $0x520] sm:$0xff]
        %v519 = vld [vmem:[#allocation8 + $0x528] sm:$0xff]
        %v520 = vld [vmem:[#allocation8 + $0x530] sm:$0xff]
        %v521 = vld [vmem:[#allocation8 + $0x538] sm:$0xff]
        %v522 = vld [vmem:[#allocation8 + $0x540] sm:$0xff]
        %v523 = vld [vmem:[#allocation8 + $0x548] sm:$0xff]
        %v524 = vld [vmem:[#allocation8 + $0x550] sm:$0xff]
        %v525 = vld [vmem:[#allocation8 + $0x558] sm:$0xff]
        %v526 = vld [vmem:[#allocation8 + $0x560] sm:$0xff]
        %v527 = vld [vmem:[#allocation8 + $0x568] sm:$0xff]
        %v528 = vld [vmem:[#allocation8 + $0x570] sm:$0xff]
        %v529 = vld [vmem:[#allocation8 + $0x578] sm:$0xff]
        %v530 = vld [vmem:[#allocation8 + $0x580] sm:$0xff]
        %v531 = vld [vmem:[#allocation8 + $0x588] sm:$0xff]
        %v532 = vld [vmem:[#allocation8 + $0x590] sm:$0xff]
        %v533 = vld [vmem:[#allocation8 + $0x598] sm:$0xff]
        %v534 = vld [vmem:[#allocation8 + $0x5a0] sm:$0xff]
        %v535 = vld [vmem:[#allocation8 + $0x5a8] sm:$0xff]
        %v536 = vld [vmem:[#allocation8 + $0x5b0] sm:$0xff]
        %v537 = vld [vmem:[#allocation8 + $0x5b8] sm:$0xff]
        %v538 = vld [vmem:[#allocation8 + $0x5c0] sm:$0xff]
        %v539 = vld [vmem:[#allocation8 + $0x5c8] sm:$0xff]
        %v540 = vld [vmem:[#allocation8 + $0x5d0] sm:$0xff]
        %v541 = vld [vmem:[#allocation8 + $0x5d8] sm:$0xff]
        %v542 = vld [vmem:[#allocation8 + $0x5e0] sm:$0xff]
        %v543 = vld [vmem:[#allocation8 + $0x5e8] sm:$0xff]
        %v544 = vld [vmem:[#allocation8 + $0x5f0] sm:$0xff]
        %v545 = vld [vmem:[#allocation8 + $0x5f8] sm:$0xff]
        %v546 = vld [vmem:[#allocation11] sm:$0x3f]
        %v548 = vlaneseq
        %v549 = vshrl.u32 %v548, 7
        %v550 = vsub.s32 0, %v549
        %v551 = vrot.slane %v546, %v550
        %v552 = vlaneseq
        %v553 = vshrl.u32 %v552, 7
        %v554 = vsub.s32 1, %v553
        %v555 = vrot.slane %v546, %v554
        %v556 = vlaneseq
        %v557 = vshrl.u32 %v556, 7
        %v558 = vsub.s32 2, %v557
        %v559 = vrot.slane %v546, %v558
        %v560 = vlaneseq
        %v561 = vshrl.u32 %v560, 7
        %v562 = vsub.s32 3, %v561
        %v563 = vrot.slane %v546, %v562
        %v564 = vlaneseq
        %v565 = vshrl.u32 %v564, 7
        %v566 = vsub.s32 4, %v565
        %v567 = vrot.slane %v546, %v566
        %v568 = vlaneseq
        %v569 = vshrl.u32 %v568, 7
        %v570 = vsub.s32 5, %v569
        %v571 = vrot.slane %v546, %v570
        %578 = vmatprep.subr.mxu0 %v355
        %579 = vmatpush1.msra.mxu0 %v354
        %580 = vmatprep.subr.mxu0 %v361
        %581 = vmatpush1.msra.mxu0 %v360
        %582 = vmatprep.subr.mxu0 %v367
        %583 = vmatpush1.msra.mxu0 %v366
        %584 = vmatprep.subr.mxu0 %v373
        %585 = vmatpush1.msra.mxu0 %v372
        %586 = vmatprep.subr.mxu0 %v379
        %587 = vmatpush1.msra.mxu0 %v378
        %588 = vmatprep.subr.mxu0 %v385
        %589 = vmatpush1.msra.mxu0 %v384
        %590 = vmatprep.subr.mxu0 %v391
        %591 = vmatpush1.msra.mxu0 %v390
        %592 = vmatprep.subr.mxu0 %v397
        %593 = vmatpush1.msra.mxu0 %v396
        %594 = vmatprep.subr.mxu0 %v403
        %595 = vmatpush1.msra.mxu0 %v402
        %596 = vmatprep.subr.mxu0 %v409
        %597 = vmatpush1.msra.mxu0 %v408
        %598 = vmatprep.subr.mxu0 %v415
        %599 = vmatpush1.msra.mxu0 %v414
        %600 = vmatprep.subr.mxu0 %v421
        %601 = vmatpush1.msra.mxu0 %v420
        %602 = vmatprep.subr.mxu0 %v427
        %603 = vmatpush1.msra.mxu0 %v426
        %604 = vmatprep.subr.mxu0 %v433
        %605 = vmatpush1.msra.mxu0 %v432
        %606 = vmatprep.subr.mxu0 %v439
        %607 = vmatpush1.msra.mxu0 %v438
        %608 = vmatprep.subr.mxu0 %v445
        %609 = vmatpush1.msra.mxu0 %v444
        %610 = vmatprep.subr.mxu0 %v451
        %611 = vmatpush1.msra.mxu0 %v450
        %612 = vmatprep.subr.mxu0 %v457
        %613 = vmatpush1.msra.mxu0 %v456
        %614 = vmatprep.subr.mxu0 %v463
        %615 = vmatpush1.msra.mxu0 %v462
        %616 = vmatprep.subr.mxu0 %v469
        %617 = vmatpush1.msra.mxu0 %v468
        %618 = vmatprep.subr.mxu0 %v475
        %619 = vmatpush1.msra.mxu0 %v474
        %620 = vmatprep.subr.mxu0 %v481
        %621 = vmatpush1.msra.mxu0 %v480
        %622 = vmatprep.subr.mxu0 %v487
        %623 = vmatpush1.msra.mxu0 %v486
        %624 = vmatprep.subr.mxu0 %v493
        %625 = vmatpush1.msra.mxu0 %v492
        %626 = vmatprep.subr.mxu0 %v499
        %627 = vmatpush1.msra.mxu0 %v498
        %628 = vmatprep.subr.mxu0 %v505
        %629 = vmatpush1.msra.mxu0 %v504
        %630 = vmatprep.subr.mxu0 %v511
        %631 = vmatpush1.msra.mxu0 %v510
        %632 = vmatprep.subr.mxu0 %v517
        %633 = vmatpush1.msra.mxu0 %v516
        %634 = vmatprep.subr.mxu0 %v523
        %635 = vmatpush1.msra.mxu0 %v522
        %636 = vmatprep.subr.mxu0 %v529
        %637 = vmatpush1.msra.mxu0 %v528
        %638 = vmatprep.subr.mxu0 %v535
        %639 = vmatpush1.msra.mxu0 %v534
        %640 = vmatprep.subr.mxu0 %v541
        %641 = vmatpush1.msra.mxu0 %v540
        %642 = vmatprep.mubr.f32.mxu0 %v351
        %643 = vmatmul.mubr.f32.gmra.mrb[0].mxu0 %v350
        %v644 = vpop.f32.mrb[0].mxu0
        %v645 = vadd.f32 %v551, %v644
        %v646 = vpop.f32.mrb[0].mxu0
        %v647 = vadd.f32 %v555, %v646
        %648 = vmatprep.mubr.f32.mxu0 %v353
        %649 = vmatmul.mubr.f32.gmra.mrb[0].mxu0 %v352
        %v650 = vpop.f32.mrb[0].mxu0
        %v651 = vadd.f32 %v551, %v650
        %v652 = vpop.f32.mrb[0].mxu0
        %v653 = vadd.f32 %v555, %v652
        %654 = vdwg.mxu0
        %655 = vmatprep.subr.mxu0 %v357
        %656 = vmatpush1.msra.mxu0 %v356
        %657 = vmatprep.subr.mxu0 %v363
        %658 = vmatpush1.msra.mxu0 %v362
        %659 = vmatprep.subr.mxu0 %v369
        %660 = vmatpush1.msra.mxu0 %v368
        %661 = vmatprep.subr.mxu0 %v375
        %662 = vmatpush1.msra.mxu0 %v374
        %663 = vmatprep.subr.mxu0 %v381
        %664 = vmatpush1.msra.mxu0 %v380
        %665 = vmatprep.subr.mxu0 %v387
        %666 = vmatpush1.msra.mxu0 %v386
        %667 = vmatprep.subr.mxu0 %v393
        %668 = vmatpush1.msra.mxu0 %v392
        %669 = vmatprep.subr.mxu0 %v399
        %670 = vmatpush1.msra.mxu0 %v398
        %671 = vmatprep.subr.mxu0 %v405
        %672 = vmatpush1.msra.mxu0 %v404
        %673 = vmatprep.subr.mxu0 %v411
        %674 = vmatpush1.msra.mxu0 %v410
        %675 = vmatprep.subr.mxu0 %v417
        %676 = vmatpush1.msra.mxu0 %v416
        %677 = vmatprep.subr.mxu0 %v423
        %678 = vmatpush1.msra.mxu0 %v422
        %679 = vmatprep.subr.mxu0 %v429
        %680 = vmatpush1.msra.mxu0 %v428
        %681 = vmatprep.subr.mxu0 %v435
        %682 = vmatpush1.msra.mxu0 %v434
        %683 = vmatprep.subr.mxu0 %v441
        %684 = vmatpush1.msra.mxu0 %v440
        %685 = vmatprep.subr.mxu0 %v447
        %686 = vmatpush1.msra.mxu0 %v446
        %687 = vmatprep.subr.mxu0 %v453
        %688 = vmatpush1.msra.mxu0 %v452
        %689 = vmatprep.subr.mxu0 %v459
        %690 = vmatpush1.msra.mxu0 %v458
        %691 = vmatprep.subr.mxu0 %v465
        %692 = vmatpush1.msra.mxu0 %v464
        %693 = vmatprep.subr.mxu0 %v471
        %694 = vmatpush1.msra.mxu0 %v470
        %695 = vmatprep.subr.mxu0 %v477
        %696 = vmatpush1.msra.mxu0 %v476
        %697 = vmatprep.subr.mxu0 %v483
        %698 = vmatpush1.msra.mxu0 %v482
        %699 = vmatprep.subr.mxu0 %v489
        %700 = vmatpush1.msra.mxu0 %v488
        %701 = vmatprep.subr.mxu0 %v495
        %702 = vmatpush1.msra.mxu0 %v494
        %703 = vmatprep.subr.mxu0 %v501
        %704 = vmatpush1.msra.mxu0 %v500
        %705 = vmatprep.subr.mxu0 %v507
        %706 = vmatpush1.msra.mxu0 %v506
        %707 = vmatprep.subr.mxu0 %v513
        %708 = vmatpush1.msra.mxu0 %v512
        %709 = vmatprep.subr.mxu0 %v519
        %710 = vmatpush1.msra.mxu0 %v518
        %711 = vmatprep.subr.mxu0 %v525
        %712 = vmatpush1.msra.mxu0 %v524
        %713 = vmatprep.subr.mxu0 %v531
        %714 = vmatpush1.msra.mxu0 %v530
        %715 = vmatprep.subr.mxu0 %v537
        %716 = vmatpush1.msra.mxu0 %v536
        %717 = vmatprep.subr.mxu0 %v543
        %718 = vmatpush1.msra.mxu0 %v542
        %719 = vmatprep.mubr.f32.mxu0 %v351
        %720 = vmatmul.mubr.f32.gmra.mrb[0].mxu0 %v350
        %v721 = vpop.f32.mrb[0].mxu0
        %v722 = vadd.f32 %v559, %v721
        %v723 = vpop.f32.mrb[0].mxu0
        %v724 = vadd.f32 %v563, %v723
        %725 = vmatprep.mubr.f32.mxu0 %v353
        %726 = vmatmul.mubr.f32.gmra.mrb[0].mxu0 %v352
        %v727 = vpop.f32.mrb[0].mxu0
        %v728 = vadd.f32 %v559, %v727
        %v729 = vpop.f32.mrb[0].mxu0
        %v730 = vadd.f32 %v563, %v729
        %731 = vdwg.mxu0
        %732 = vmatprep.subr.mxu0 %v359
        %733 = vmatpush1.msra.mxu0 %v358
        %734 = vmatprep.subr.mxu0 %v365
        %735 = vmatpush1.msra.mxu0 %v364
        %736 = vmatprep.subr.mxu0 %v371
        %737 = vmatpush1.msra.mxu0 %v370
        %738 = vmatprep.subr.mxu0 %v377
        %739 = vmatpush1.msra.mxu0 %v376
        %740 = vmatprep.subr.mxu0 %v383
        %741 = vmatpush1.msra.mxu0 %v382
        %742 = vmatprep.subr.mxu0 %v389
        %743 = vmatpush1.msra.mxu0 %v388
        %744 = vmatprep.subr.mxu0 %v395
        %745 = vmatpush1.msra.mxu0 %v394
        %746 = vmatprep.subr.mxu0 %v401
        %747 = vmatpush1.msra.mxu0 %v400
        %748 = vmatprep.subr.mxu0 %v407
        %749 = vmatpush1.msra.mxu0 %v406
        %750 = vmatprep.subr.mxu0 %v413
        %751 = vmatpush1.msra.mxu0 %v412
        %752 = vmatprep.subr.mxu0 %v419
        %753 = vmatpush1.msra.mxu0 %v418
        %754 = vmatprep.subr.mxu0 %v425
        %755 = vmatpush1.msra.mxu0 %v424
        %756 = vmatprep.subr.mxu0 %v431
        %757 = vmatpush1.msra.mxu0 %v430
        %758 = vmatprep.subr.mxu0 %v437
        %759 = vmatpush1.msra.mxu0 %v436
        %760 = vmatprep.subr.mxu0 %v443
        %761 = vmatpush1.msra.mxu0 %v442
        %762 = vmatprep.subr.mxu0 %v449
        %763 = vmatpush1.msra.mxu0 %v448
        %764 = vmatprep.subr.mxu0 %v455
        %765 = vmatpush1.msra.mxu0 %v454
        %766 = vmatprep.subr.mxu0 %v461
        %767 = vmatpush1.msra.mxu0 %v460
        %768 = vmatprep.subr.mxu0 %v467
        %769 = vmatpush1.msra.mxu0 %v466
        %770 = vmatprep.subr.mxu0 %v473
        %771 = vmatpush1.msra.mxu0 %v472
        %772 = vmatprep.subr.mxu0 %v479
        %773 = vmatpush1.msra.mxu0 %v478
        %774 = vmatprep.subr.mxu0 %v485
        %775 = vmatpush1.msra.mxu0 %v484
        %776 = vmatprep.subr.mxu0 %v491
        %777 = vmatpush1.msra.mxu0 %v490
        %778 = vmatprep.subr.mxu0 %v497
        %779 = vmatpush1.msra.mxu0 %v496
        %780 = vmatprep.subr.mxu0 %v503
        %781 = vmatpush1.msra.mxu0 %v502
        %782 = vmatprep.subr.mxu0 %v509
        %783 = vmatpush1.msra.mxu0 %v508
        %784 = vmatprep.subr.mxu0 %v515
        %785 = vmatpush1.msra.mxu0 %v514
        %786 = vmatprep.subr.mxu0 %v521
        %787 = vmatpush1.msra.mxu0 %v520
        %788 = vmatprep.subr.mxu0 %v527
        %789 = vmatpush1.msra.mxu0 %v526
        %790 = vmatprep.subr.mxu0 %v533
        %791 = vmatpush1.msra.mxu0 %v532
        %792 = vmatprep.subr.mxu0 %v539
        %793 = vmatpush1.msra.mxu0 %v538
        %794 = vmatprep.subr.mxu0 %v545
        %795 = vmatpush1.msra.mxu0 %v544
        %796 = vmatprep.mubr.f32.mxu0 %v351
        %797 = vmatmul.mubr.f32.gmra.mrb[0].mxu0 %v350
        %v798 = vpop.f32.mrb[0].mxu0
        %v799 = vadd.f32 %v567, %v798
        %v800 = vpop.f32.mrb[0].mxu0
        %v801 = vadd.f32 %v571, %v800
        %802 = vmatprep.mubr.f32.mxu0 %v353
        %803 = vmatmul.mubr.f32.gmra.mrb[0].mxu0 %v352
        %v804 = vpop.f32.mrb[0].mxu0
        %v805 = vadd.f32 %v567, %v804
        %v806 = vpop.f32.mrb[0].mxu0
        %v807 = vadd.f32 %v571, %v806
        %808 = vdwg.mxu0
        %v809 = vld [vmem:[#allocation2] sm:$0x3]
        %v810 = vld [vmem:[#allocation9] sm:$0xff]
        %v811 = vld [vmem:[#allocation9 + $0x8] sm:$0xff]
        %v812 = vld [vmem:[#allocation9 + $0x10] sm:$0xff]
        %v813 = vld [vmem:[#allocation9 + $0x18] sm:$0xff]
        %v814 = vld [vmem:[#allocation9 + $0x20] sm:$0xff]
        %v815 = vld [vmem:[#allocation9 + $0x28] sm:$0xff]
        %v816 = vld [vmem:[#allocation9 + $0x30] sm:$0xff]
        %v817 = vld [vmem:[#allocation9 + $0x38] sm:$0xff]
        %v818 = vld [vmem:[#allocation9 + $0x40] sm:$0xff]
        %v819 = vld [vmem:[#allocation9 + $0x48] sm:$0xff]
        %v820 = vld [vmem:[#allocation9 + $0x50] sm:$0xff]
        %v821 = vld [vmem:[#allocation9 + $0x58] sm:$0xff]
        %v822 = vld [vmem:[#allocation9 + $0x60] sm:$0xff]
        %v823 = vld [vmem:[#allocation9 + $0x68] sm:$0xff]
        %v824 = vld [vmem:[#allocation9 + $0x70] sm:$0xff]
        %v825 = vld [vmem:[#allocation9 + $0x78] sm:$0xff]
        %v826 = vld [vmem:[#allocation9 + $0x80] sm:$0xff]
        %v827 = vld [vmem:[#allocation9 + $0x88] sm:$0xff]
        %v828 = vld [vmem:[#allocation9 + $0x90] sm:$0xff]
        %v829 = vld [vmem:[#allocation9 + $0x98] sm:$0xff]
        %v830 = vld [vmem:[#allocation9 + $0xa0] sm:$0xff]
        %v831 = vld [vmem:[#allocation9 + $0xa8] sm:$0xff]
        %v832 = vld [vmem:[#allocation9 + $0xb0] sm:$0xff]
        %v833 = vld [vmem:[#allocation9 + $0xb8] sm:$0xff]
        %v834 = vld [vmem:[#allocation9 + $0xc0] sm:$0xff]
        %v835 = vld [vmem:[#allocation9 + $0xc8] sm:$0xff]
        %v836 = vld [vmem:[#allocation9 + $0xd0] sm:$0xff]
        %v837 = vld [vmem:[#allocation9 + $0xd8] sm:$0xff]
        %v838 = vld [vmem:[#allocation9 + $0xe0] sm:$0xff]
        %v839 = vld [vmem:[#allocation9 + $0xe8] sm:$0xff]
        %v840 = vld [vmem:[#allocation9 + $0xf0] sm:$0xff]
        %v841 = vld [vmem:[#allocation9 + $0xf8] sm:$0xff]
        %v842 = vld [vmem:[#allocation9 + $0x100] sm:$0xff]
        %v843 = vld [vmem:[#allocation9 + $0x108] sm:$0xff]
        %v844 = vld [vmem:[#allocation9 + $0x110] sm:$0xff]
        %v845 = vld [vmem:[#allocation9 + $0x118] sm:$0xff]
        %v846 = vld [vmem:[#allocation9 + $0x120] sm:$0xff]
        %v847 = vld [vmem:[#allocation9 + $0x128] sm:$0xff]
        %v848 = vld [vmem:[#allocation9 + $0x130] sm:$0xff]
        %v849 = vld [vmem:[#allocation9 + $0x138] sm:$0xff]
        %v850 = vld [vmem:[#allocation9 + $0x140] sm:$0xff]
        %v851 = vld [vmem:[#allocation9 + $0x148] sm:$0xff]
        %v852 = vld [vmem:[#allocation9 + $0x150] sm:$0xff]
        %v853 = vld [vmem:[#allocation9 + $0x158] sm:$0xff]
        %v854 = vld [vmem:[#allocation9 + $0x160] sm:$0xff]
        %v855 = vld [vmem:[#allocation9 + $0x168] sm:$0xff]
        %v856 = vld [vmem:[#allocation9 + $0x170] sm:$0xff]
        %v857 = vld [vmem:[#allocation9 + $0x178] sm:$0xff]
        %v858 = vld [vmem:[#allocation9 + $0x180] sm:$0xff]
        %v859 = vld [vmem:[#allocation9 + $0x188] sm:$0xff]
        %v860 = vld [vmem:[#allocation9 + $0x190] sm:$0xff]
        %v861 = vld [vmem:[#allocation9 + $0x198] sm:$0xff]
        %v862 = vld [vmem:[#allocation9 + $0x1a0] sm:$0xff]
        %v863 = vld [vmem:[#allocation9 + $0x1a8] sm:$0xff]
        %v864 = vld [vmem:[#allocation9 + $0x1b0] sm:$0xff]
        %v865 = vld [vmem:[#allocation9 + $0x1b8] sm:$0xff]
        %v866 = vld [vmem:[#allocation9 + $0x1c0] sm:$0xff]
        %v867 = vld [vmem:[#allocation9 + $0x1c8] sm:$0xff]
        %v868 = vld [vmem:[#allocation9 + $0x1d0] sm:$0xff]
        %v869 = vld [vmem:[#allocation9 + $0x1d8] sm:$0xff]
        %v870 = vld [vmem:[#allocation9 + $0x1e0] sm:$0xff]
        %v871 = vld [vmem:[#allocation9 + $0x1e8] sm:$0xff]
        %v872 = vld [vmem:[#allocation9 + $0x1f0] sm:$0xff]
        %v873 = vld [vmem:[#allocation9 + $0x1f8] sm:$0xff]
        %v874 = vld [vmem:[#allocation9 + $0x200] sm:$0xff]
        %v875 = vld [vmem:[#allocation9 + $0x208] sm:$0xff]
        %v876 = vld [vmem:[#allocation9 + $0x210] sm:$0xff]
        %v877 = vld [vmem:[#allocation9 + $0x218] sm:$0xff]
        %v878 = vld [vmem:[#allocation9 + $0x220] sm:$0xff]
        %v879 = vld [vmem:[#allocation9 + $0x228] sm:$0xff]
        %v880 = vld [vmem:[#allocation9 + $0x230] sm:$0xff]
        %v881 = vld [vmem:[#allocation9 + $0x238] sm:$0xff]
        %v882 = vld [vmem:[#allocation9 + $0x240] sm:$0xff]
        %v883 = vld [vmem:[#allocation9 + $0x248] sm:$0xff]
        %v884 = vld [vmem:[#allocation9 + $0x250] sm:$0xff]
        %v885 = vld [vmem:[#allocation9 + $0x258] sm:$0xff]
        %v886 = vld [vmem:[#allocation9 + $0x260] sm:$0xff]
        %v887 = vld [vmem:[#allocation9 + $0x268] sm:$0xff]
        %v888 = vld [vmem:[#allocation9 + $0x270] sm:$0xff]
        %v889 = vld [vmem:[#allocation9 + $0x278] sm:$0xff]
        %v890 = vld [vmem:[#allocation9 + $0x280] sm:$0xff]
        %v891 = vld [vmem:[#allocation9 + $0x288] sm:$0xff]
        %v892 = vld [vmem:[#allocation9 + $0x290] sm:$0xff]
        %v893 = vld [vmem:[#allocation9 + $0x298] sm:$0xff]
        %v894 = vld [vmem:[#allocation9 + $0x2a0] sm:$0xff]
        %v895 = vld [vmem:[#allocation9 + $0x2a8] sm:$0xff]
        %v896 = vld [vmem:[#allocation9 + $0x2b0] sm:$0xff]
        %v897 = vld [vmem:[#allocation9 + $0x2b8] sm:$0xff]
        %v898 = vld [vmem:[#allocation9 + $0x2c0] sm:$0xff]
        %v899 = vld [vmem:[#allocation9 + $0x2c8] sm:$0xff]
        %v900 = vld [vmem:[#allocation9 + $0x2d0] sm:$0xff]
        %v901 = vld [vmem:[#allocation9 + $0x2d8] sm:$0xff]
        %v902 = vld [vmem:[#allocation9 + $0x2e0] sm:$0xff]
        %v903 = vld [vmem:[#allocation9 + $0x2e8] sm:$0xff]
        %v904 = vld [vmem:[#allocation9 + $0x2f0] sm:$0xff]
        %v905 = vld [vmem:[#allocation9 + $0x2f8] sm:$0xff]
        %v906 = vld [vmem:[#allocation9 + $0x300] sm:$0xff]
        %v907 = vld [vmem:[#allocation9 + $0x308] sm:$0xff]
        %v908 = vld [vmem:[#allocation9 + $0x310] sm:$0xff]
        %v909 = vld [vmem:[#allocation9 + $0x318] sm:$0xff]
        %v910 = vld [vmem:[#allocation9 + $0x320] sm:$0xff]
        %v911 = vld [vmem:[#allocation9 + $0x328] sm:$0xff]
        %v912 = vld [vmem:[#allocation9 + $0x330] sm:$0xff]
        %v913 = vld [vmem:[#allocation9 + $0x338] sm:$0xff]
        %v914 = vld [vmem:[#allocation9 + $0x340] sm:$0xff]
        %v915 = vld [vmem:[#allocation9 + $0x348] sm:$0xff]
        %v916 = vld [vmem:[#allocation9 + $0x350] sm:$0xff]
        %v917 = vld [vmem:[#allocation9 + $0x358] sm:$0xff]
        %v918 = vld [vmem:[#allocation9 + $0x360] sm:$0xff]
        %v919 = vld [vmem:[#allocation9 + $0x368] sm:$0xff]
        %v920 = vld [vmem:[#allocation9 + $0x370] sm:$0xff]
        %v921 = vld [vmem:[#allocation9 + $0x378] sm:$0xff]
        %v922 = vld [vmem:[#allocation9 + $0x380] sm:$0xff]
        %v923 = vld [vmem:[#allocation9 + $0x388] sm:$0xff]
        %v924 = vld [vmem:[#allocation9 + $0x390] sm:$0xff]
        %v925 = vld [vmem:[#allocation9 + $0x398] sm:$0xff]
        %v926 = vld [vmem:[#allocation9 + $0x3a0] sm:$0xff]
        %v927 = vld [vmem:[#allocation9 + $0x3a8] sm:$0xff]
        %v928 = vld [vmem:[#allocation9 + $0x3b0] sm:$0xff]
        %v929 = vld [vmem:[#allocation9 + $0x3b8] sm:$0xff]
        %v930 = vld [vmem:[#allocation9 + $0x3c0] sm:$0xff]
        %v931 = vld [vmem:[#allocation9 + $0x3c8] sm:$0xff]
        %v932 = vld [vmem:[#allocation9 + $0x3d0] sm:$0xff]
        %v933 = vld [vmem:[#allocation9 + $0x3d8] sm:$0xff]
        %v934 = vld [vmem:[#allocation9 + $0x3e0] sm:$0xff]
        %v935 = vld [vmem:[#allocation9 + $0x3e8] sm:$0xff]
        %v936 = vld [vmem:[#allocation9 + $0x3f0] sm:$0xff]
        %v937 = vld [vmem:[#allocation9 + $0x3f8] sm:$0xff]
        %v938 = vld [vmem:[#allocation9 + $0x400] sm:$0xff]
        %v939 = vld [vmem:[#allocation9 + $0x408] sm:$0xff]
        %v940 = vld [vmem:[#allocation9 + $0x410] sm:$0xff]
        %v941 = vld [vmem:[#allocation9 + $0x418] sm:$0xff]
        %v942 = vld [vmem:[#allocation9 + $0x420] sm:$0xff]
        %v943 = vld [vmem:[#allocation9 + $0x428] sm:$0xff]
        %v944 = vld [vmem:[#allocation9 + $0x430] sm:$0xff]
        %v945 = vld [vmem:[#allocation9 + $0x438] sm:$0xff]
        %v946 = vld [vmem:[#allocation9 + $0x440] sm:$0xff]
        %v947 = vld [vmem:[#allocation9 + $0x448] sm:$0xff]
        %v948 = vld [vmem:[#allocation9 + $0x450] sm:$0xff]
        %v949 = vld [vmem:[#allocation9 + $0x458] sm:$0xff]
        %v950 = vld [vmem:[#allocation9 + $0x460] sm:$0xff]
        %v951 = vld [vmem:[#allocation9 + $0x468] sm:$0xff]
        %v952 = vld [vmem:[#allocation9 + $0x470] sm:$0xff]
        %v953 = vld [vmem:[#allocation9 + $0x478] sm:$0xff]
        %v954 = vld [vmem:[#allocation9 + $0x480] sm:$0xff]
        %v955 = vld [vmem:[#allocation9 + $0x488] sm:$0xff]
        %v956 = vld [vmem:[#allocation9 + $0x490] sm:$0xff]
        %v957 = vld [vmem:[#allocation9 + $0x498] sm:$0xff]
        %v958 = vld [vmem:[#allocation9 + $0x4a0] sm:$0xff]
        %v959 = vld [vmem:[#allocation9 + $0x4a8] sm:$0xff]
        %v960 = vld [vmem:[#allocation9 + $0x4b0] sm:$0xff]
        %v961 = vld [vmem:[#allocation9 + $0x4b8] sm:$0xff]
        %v962 = vld [vmem:[#allocation9 + $0x4c0] sm:$0xff]
        %v963 = vld [vmem:[#allocation9 + $0x4c8] sm:$0xff]
        %v964 = vld [vmem:[#allocation9 + $0x4d0] sm:$0xff]
        %v965 = vld [vmem:[#allocation9 + $0x4d8] sm:$0xff]
        %v966 = vld [vmem:[#allocation9 + $0x4e0] sm:$0xff]
        %v967 = vld [vmem:[#allocation9 + $0x4e8] sm:$0xff]
        %v968 = vld [vmem:[#allocation9 + $0x4f0] sm:$0xff]
        %v969 = vld [vmem:[#allocation9 + $0x4f8] sm:$0xff]
        %v970 = vld [vmem:[#allocation9 + $0x500] sm:$0xff]
        %v971 = vld [vmem:[#allocation9 + $0x508] sm:$0xff]
        %v972 = vld [vmem:[#allocation9 + $0x510] sm:$0xff]
        %v973 = vld [vmem:[#allocation9 + $0x518] sm:$0xff]
        %v974 = vld [vmem:[#allocation9 + $0x520] sm:$0xff]
        %v975 = vld [vmem:[#allocation9 + $0x528] sm:$0xff]
        %v976 = vld [vmem:[#allocation9 + $0x530] sm:$0xff]
        %v977 = vld [vmem:[#allocation9 + $0x538] sm:$0xff]
        %v978 = vld [vmem:[#allocation9 + $0x540] sm:$0xff]
        %v979 = vld [vmem:[#allocation9 + $0x548] sm:$0xff]
        %v980 = vld [vmem:[#allocation9 + $0x550] sm:$0xff]
        %v981 = vld [vmem:[#allocation9 + $0x558] sm:$0xff]
        %v982 = vld [vmem:[#allocation9 + $0x560] sm:$0xff]
        %v983 = vld [vmem:[#allocation9 + $0x568] sm:$0xff]
        %v984 = vld [vmem:[#allocation9 + $0x570] sm:$0xff]
        %v985 = vld [vmem:[#allocation9 + $0x578] sm:$0xff]
        %v986 = vld [vmem:[#allocation9 + $0x580] sm:$0xff]
        %v987 = vld [vmem:[#allocation9 + $0x588] sm:$0xff]
        %v988 = vld [vmem:[#allocation9 + $0x590] sm:$0xff]
        %v989 = vld [vmem:[#allocation9 + $0x598] sm:$0xff]
        %v990 = vld [vmem:[#allocation9 + $0x5a0] sm:$0xff]
        %v991 = vld [vmem:[#allocation9 + $0x5a8] sm:$0xff]
        %v992 = vld [vmem:[#allocation9 + $0x5b0] sm:$0xff]
        %v993 = vld [vmem:[#allocation9 + $0x5b8] sm:$0xff]
        %v994 = vld [vmem:[#allocation9 + $0x5c0] sm:$0xff]
        %v995 = vld [vmem:[#allocation9 + $0x5c8] sm:$0xff]
        %v996 = vld [vmem:[#allocation9 + $0x5d0] sm:$0xff]
        %v997 = vld [vmem:[#allocation9 + $0x5d8] sm:$0xff]
        %v998 = vld [vmem:[#allocation9 + $0x5e0] sm:$0xff]
        %v999 = vld [vmem:[#allocation9 + $0x5e8] sm:$0xff]
        %v1000 = vld [vmem:[#allocation9 + $0x5f0] sm:$0xff]
        %v1001 = vld [vmem:[#allocation9 + $0x5f8] sm:$0xff]
        %v1002 = vld [vmem:[#allocation12] sm:$0x3f]
        %v1004 = vlaneseq
        %v1005 = vshrl.u32 %v1004, 7
        %v1006 = vsub.s32 0, %v1005
        %v1007 = vrot.slane %v809, %v1006
        %v1008 = vlaneseq
        %v1009 = vshrl.u32 %v1008, 7
        %v1010 = vsub.s32 1, %v1009
        %v1011 = vrot.slane %v809, %v1010
        %v1015 = vlaneseq
        %v1016 = vshrl.u32 %v1015, 7
        %v1017 = vsub.s32 0, %v1016
        %v1018 = vrot.slane %v1002, %v1017
        %v1019 = vlaneseq
        %v1020 = vshrl.u32 %v1019, 7
        %v1021 = vsub.s32 1, %v1020
        %v1022 = vrot.slane %v1002, %v1021
        %v1023 = vlaneseq
        %v1024 = vshrl.u32 %v1023, 7
        %v1025 = vsub.s32 2, %v1024
        %v1026 = vrot.slane %v1002, %v1025
        %v1027 = vlaneseq
        %v1028 = vshrl.u32 %v1027, 7
        %v1029 = vsub.s32 3, %v1028
        %v1030 = vrot.slane %v1002, %v1029
        %v1031 = vlaneseq
        %v1032 = vshrl.u32 %v1031, 7
        %v1033 = vsub.s32 4, %v1032
        %v1034 = vrot.slane %v1002, %v1033
        %v1035 = vlaneseq
        %v1036 = vshrl.u32 %v1035, 7
        %v1037 = vsub.s32 5, %v1036
        %v1038 = vrot.slane %v1002, %v1037
        %1045 = vmatprep.subr.mxu0 %v811
        %1046 = vmatpush1.msra.mxu0 %v810
        %1047 = vmatprep.subr.mxu0 %v817
        %1048 = vmatpush1.msra.mxu0 %v816
        %1049 = vmatprep.subr.mxu0 %v823
        %1050 = vmatpush1.msra.mxu0 %v822
        %1051 = vmatprep.subr.mxu0 %v829
        %1052 = vmatpush1.msra.mxu0 %v828
        %1053 = vmatprep.subr.mxu0 %v835
        %1054 = vmatpush1.msra.mxu0 %v834
        %1055 = vmatprep.subr.mxu0 %v841
        %1056 = vmatpush1.msra.mxu0 %v840
        %1057 = vmatprep.subr.mxu0 %v847
        %1058 = vmatpush1.msra.mxu0 %v846
        %1059 = vmatprep.subr.mxu0 %v853
        %1060 = vmatpush1.msra.mxu0 %v852
        %1061 = vmatprep.subr.mxu0 %v859
        %1062 = vmatpush1.msra.mxu0 %v858
        %1063 = vmatprep.subr.mxu0 %v865
        %1064 = vmatpush1.msra.mxu0 %v864
        %1065 = vmatprep.subr.mxu0 %v871
        %1066 = vmatpush1.msra.mxu0 %v870
        %1067 = vmatprep.subr.mxu0 %v877
        %1068 = vmatpush1.msra.mxu0 %v876
        %1069 = vmatprep.subr.mxu0 %v883
        %1070 = vmatpush1.msra.mxu0 %v882
        %1071 = vmatprep.subr.mxu0 %v889
        %1072 = vmatpush1.msra.mxu0 %v888
        %1073 = vmatprep.subr.mxu0 %v895
        %1074 = vmatpush1.msra.mxu0 %v894
        %1075 = vmatprep.subr.mxu0 %v901
        %1076 = vmatpush1.msra.mxu0 %v900
        %1077 = vmatprep.subr.mxu0 %v907
        %1078 = vmatpush1.msra.mxu0 %v906
        %1079 = vmatprep.subr.mxu0 %v913
        %1080 = vmatpush1.msra.mxu0 %v912
        %1081 = vmatprep.subr.mxu0 %v919
        %1082 = vmatpush1.msra.mxu0 %v918
        %1083 = vmatprep.subr.mxu0 %v925
        %1084 = vmatpush1.msra.mxu0 %v924
        %1085 = vmatprep.subr.mxu0 %v931
        %1086 = vmatpush1.msra.mxu0 %v930
        %1087 = vmatprep.subr.mxu0 %v937
        %1088 = vmatpush1.msra.mxu0 %v936
        %1089 = vmatprep.subr.mxu0 %v943
        %1090 = vmatpush1.msra.mxu0 %v942
        %1091 = vmatprep.subr.mxu0 %v949
        %1092 = vmatpush1.msra.mxu0 %v948
        %1093 = vmatprep.subr.mxu0 %v955
        %1094 = vmatpush1.msra.mxu0 %v954
        %1095 = vmatprep.subr.mxu0 %v961
        %1096 = vmatpush1.msra.mxu0 %v960
        %1097 = vmatprep.subr.mxu0 %v967
        %1098 = vmatpush1.msra.mxu0 %v966
        %1099 = vmatprep.subr.mxu0 %v973
        %1100 = vmatpush1.msra.mxu0 %v972
        %1101 = vmatprep.subr.mxu0 %v979
        %1102 = vmatpush1.msra.mxu0 %v978
        %1103 = vmatprep.subr.mxu0 %v985
        %1104 = vmatpush1.msra.mxu0 %v984
        %1105 = vmatprep.subr.mxu0 %v991
        %1106 = vmatpush1.msra.mxu0 %v990
        %1107 = vmatprep.subr.mxu0 %v997
        %1108 = vmatpush1.msra.mxu0 %v996
        %1109 = vmatprep.mubr.f32.mxu0 %v1011
        %1110 = vmatmul.mubr.f32.gmra.mrb[0].mxu0 %v1007
        %v1111 = vpop.f32.mrb[0].mxu0
        %v1112 = vadd.f32 %v1018, %v1111
        %v1113 = vpop.f32.mrb[0].mxu0
        %v1114 = vadd.f32 %v1022, %v1113
        %1115 = vdwg.mxu0
        %1116 = vmatprep.subr.mxu0 %v813
        %1117 = vmatpush1.msra.mxu0 %v812
        %1118 = vmatprep.subr.mxu0 %v819
        %1119 = vmatpush1.msra.mxu0 %v818
        %1120 = vmatprep.subr.mxu0 %v825
        %1121 = vmatpush1.msra.mxu0 %v824
        %1122 = vmatprep.subr.mxu0 %v831
        %1123 = vmatpush1.msra.mxu0 %v830
        %1124 = vmatprep.subr.mxu0 %v837
        %1125 = vmatpush1.msra.mxu0 %v836
        %1126 = vmatprep.subr.mxu0 %v843
        %1127 = vmatpush1.msra.mxu0 %v842
        %1128 = vmatprep.subr.mxu0 %v849
        %1129 = vmatpush1.msra.mxu0 %v848
        %1130 = vmatprep.subr.mxu0 %v855
        %1131 = vmatpush1.msra.mxu0 %v854
        %1132 = vmatprep.subr.mxu0 %v861
        %1133 = vmatpush1.msra.mxu0 %v860
        %1134 = vmatprep.subr.mxu0 %v867
        %1135 = vmatpush1.msra.mxu0 %v866
        %1136 = vmatprep.subr.mxu0 %v873
        %1137 = vmatpush1.msra.mxu0 %v872
        %1138 = vmatprep.subr.mxu0 %v879
        %1139 = vmatpush1.msra.mxu0 %v878
        %1140 = vmatprep.subr.mxu0 %v885
        %1141 = vmatpush1.msra.mxu0 %v884
        %1142 = vmatprep.subr.mxu0 %v891
        %1143 = vmatpush1.msra.mxu0 %v890
        %1144 = vmatprep.subr.mxu0 %v897
        %1145 = vmatpush1.msra.mxu0 %v896
        %1146 = vmatprep.subr.mxu0 %v903
        %1147 = vmatpush1.msra.mxu0 %v902
        %1148 = vmatprep.subr.mxu0 %v909
        %1149 = vmatpush1.msra.mxu0 %v908
        %1150 = vmatprep.subr.mxu0 %v915
        %1151 = vmatpush1.msra.mxu0 %v914
        %1152 = vmatprep.subr.mxu0 %v921
        %1153 = vmatpush1.msra.mxu0 %v920
        %1154 = vmatprep.subr.mxu0 %v927
        %1155 = vmatpush1.msra.mxu0 %v926
        %1156 = vmatprep.subr.mxu0 %v933
        %1157 = vmatpush1.msra.mxu0 %v932
        %1158 = vmatprep.subr.mxu0 %v939
        %1159 = vmatpush1.msra.mxu0 %v938
        %1160 = vmatprep.subr.mxu0 %v945
        %1161 = vmatpush1.msra.mxu0 %v944
        %1162 = vmatprep.subr.mxu0 %v951
        %1163 = vmatpush1.msra.mxu0 %v950
        %1164 = vmatprep.subr.mxu0 %v957
        %1165 = vmatpush1.msra.mxu0 %v956
        %1166 = vmatprep.subr.mxu0 %v963
        %1167 = vmatpush1.msra.mxu0 %v962
        %1168 = vmatprep.subr.mxu0 %v969
        %1169 = vmatpush1.msra.mxu0 %v968
        %1170 = vmatprep.subr.mxu0 %v975
        %1171 = vmatpush1.msra.mxu0 %v974
        %1172 = vmatprep.subr.mxu0 %v981
        %1173 = vmatpush1.msra.mxu0 %v980
        %1174 = vmatprep.subr.mxu0 %v987
        %1175 = vmatpush1.msra.mxu0 %v986
        %1176 = vmatprep.subr.mxu0 %v993
        %1177 = vmatpush1.msra.mxu0 %v992
        %1178 = vmatprep.subr.mxu0 %v999
        %1179 = vmatpush1.msra.mxu0 %v998
        %1180 = vmatprep.mubr.f32.mxu0 %v1011
        %1181 = vmatmul.mubr.f32.gmra.mrb[0].mxu0 %v1007
        %v1182 = vpop.f32.mrb[0].mxu0
        %v1183 = vadd.f32 %v1026, %v1182
        %v1184 = vpop.f32.mrb[0].mxu0
        %v1185 = vadd.f32 %v1030, %v1184
        %1186 = vdwg.mxu0
        %1187 = vmatprep.subr.mxu0 %v815
        %1188 = vmatpush1.msra.mxu0 %v814
        %1189 = vmatprep.subr.mxu0 %v821
        %1190 = vmatpush1.msra.mxu0 %v820
        %1191 = vmatprep.subr.mxu0 %v827
        %1192 = vmatpush1.msra.mxu0 %v826
        %1193 = vmatprep.subr.mxu0 %v833
        %1194 = vmatpush1.msra.mxu0 %v832
        %1195 = vmatprep.subr.mxu0 %v839
        %1196 = vmatpush1.msra.mxu0 %v838
        %1197 = vmatprep.subr.mxu0 %v845
        %1198 = vmatpush1.msra.mxu0 %v844
        %1199 = vmatprep.subr.mxu0 %v851
        %1200 = vmatpush1.msra.mxu0 %v850
        %1201 = vmatprep.subr.mxu0 %v857
        %1202 = vmatpush1.msra.mxu0 %v856
        %1203 = vmatprep.subr.mxu0 %v863
        %1204 = vmatpush1.msra.mxu0 %v862
        %1205 = vmatprep.subr.mxu0 %v869
        %1206 = vmatpush1.msra.mxu0 %v868
        %1207 = vmatprep.subr.mxu0 %v875
        %1208 = vmatpush1.msra.mxu0 %v874
        %1209 = vmatprep.subr.mxu0 %v881
        %1210 = vmatpush1.msra.mxu0 %v880
        %1211 = vmatprep.subr.mxu0 %v887
        %1212 = vmatpush1.msra.mxu0 %v886
        %1213 = vmatprep.subr.mxu0 %v893
        %1214 = vmatpush1.msra.mxu0 %v892
        %1215 = vmatprep.subr.mxu0 %v899
        %1216 = vmatpush1.msra.mxu0 %v898
        %1217 = vmatprep.subr.mxu0 %v905
        %1218 = vmatpush1.msra.mxu0 %v904
        %1219 = vmatprep.subr.mxu0 %v911
        %1220 = vmatpush1.msra.mxu0 %v910
        %1221 = vmatprep.subr.mxu0 %v917
        %1222 = vmatpush1.msra.mxu0 %v916
        %1223 = vmatprep.subr.mxu0 %v923
        %1224 = vmatpush1.msra.mxu0 %v922
        %1225 = vmatprep.subr.mxu0 %v929
        %1226 = vmatpush1.msra.mxu0 %v928
        %1227 = vmatprep.subr.mxu0 %v935
        %1228 = vmatpush1.msra.mxu0 %v934
        %1229 = vmatprep.subr.mxu0 %v941
        %1230 = vmatpush1.msra.mxu0 %v940
        %1231 = vmatprep.subr.mxu0 %v947
        %1232 = vmatpush1.msra.mxu0 %v946
        %1233 = vmatprep.subr.mxu0 %v953
        %1234 = vmatpush1.msra.mxu0 %v952
        %1235 = vmatprep.subr.mxu0 %v959
        %1236 = vmatpush1.msra.mxu0 %v958
        %1237 = vmatprep.subr.mxu0 %v965
        %1238 = vmatpush1.msra.mxu0 %v964
        %1239 = vmatprep.subr.mxu0 %v971
        %1240 = vmatpush1.msra.mxu0 %v970
        %1241 = vmatprep.subr.mxu0 %v977
        %1242 = vmatpush1.msra.mxu0 %v976
        %1243 = vmatprep.subr.mxu0 %v983
        %1244 = vmatpush1.msra.mxu0 %v982
        %1245 = vmatprep.subr.mxu0 %v989
        %1246 = vmatpush1.msra.mxu0 %v988
        %1247 = vmatprep.subr.mxu0 %v995
        %1248 = vmatpush1.msra.mxu0 %v994
        %1249 = vmatprep.subr.mxu0 %v1001
        %1250 = vmatpush1.msra.mxu0 %v1000
        %1251 = vmatprep.mubr.f32.mxu0 %v1011
        %1252 = vmatmul.mubr.f32.gmra.mrb[0].mxu0 %v1007
        %v1253 = vpop.f32.mrb[0].mxu0
        %v1254 = vadd.f32 %v1034, %v1253
        %v1255 = vpop.f32.mrb[0].mxu0
        %v1256 = vadd.f32 %v1038, %v1255
        %1257 = vdwg.mxu0
        %v1258 = vadd.f32 %v645, %v1112
        %v1259 = vadd.f32 %v647, %v1114
        %v1260 = vxor.u32 %v1258, 2147483648
        %v1261 = vxor.u32 %v1259, 2147483648
        %v1262 = vmul.f32 %v1260, 1.442695
        %v1263 = vpow.pop %v1262
        %v1264 = vmul.f32 %v1261, 1.442695
        %v1265 = vpow.pop %v1264
        %v1266 = vadd.f32 %v1263, 1.0
        %v1267 = vadd.f32 %v1265, 1.0
        %v1268 = vrcp.pop %v1266
        %v1269 = vmul.f32 1.0, %v1268
        %v1270 = vrcp.pop %v1267
        %v1271 = vmul.f32 1.0, %v1270
        %v1272 = vadd.f32 %v722, %v1183
        %v1273 = vadd.f32 %v724, %v1185
        %v1274 = vxor.u32 %v1272, 2147483648
        %v1275 = vxor.u32 %v1273, 2147483648
        %v1276 = vmul.f32 %v1274, 1.442695
        %v1277 = vpow.pop %v1276
        %v1278 = vmul.f32 %v1275, 1.442695
        %v1279 = vpow.pop %v1278
        %v1280 = vadd.f32 %v1277, 1.0
        %v1281 = vadd.f32 %v1279, 1.0
        %v1282 = vrcp.pop %v1280
        %v1283 = vmul.f32 1.0, %v1282
        %v1284 = vrcp.pop %v1281
        %v1285 = vmul.f32 1.0, %v1284
        %v1286 = vmul.f32 %v1269, %v1254
        %v1287 = vmul.f32 %v1271, %v1256
        %v1288 = vadd.f32 %v799, %v1286
        %v1289 = vadd.f32 %v801, %v1287
        %v1290 = vtanh.pop %v1288
        %v1291 = vtanh.pop %v1289
        %v1292 = vsub.f32 1.0, %v1283
        %v1293 = vsub.f32 1.0, %v1285
        %v1294 = vmul.f32 %v1292, %v1290
        %v1295 = vmul.f32 %v1293, %v1291
        %v1296 = vmul.f32 %v1283, %v1007
        %v1297 = vmul.f32 %v1285, %v1011
        %v1298 = vadd.f32 %v1294, %v1296
        %v1299 = vadd.f32 %v1295, %v1297
        %1300 = vmatprep.subr.mxu0 %v811
        %1301 = vmatpush1.msra.mxu0 %v810
        %1302 = vmatprep.subr.mxu0 %v817
        %1303 = vmatpush1.msra.mxu0 %v816
        %1304 = vmatprep.subr.mxu0 %v823
        %1305 = vmatpush1.msra.mxu0 %v822
        %1306 = vmatprep.subr.mxu0 %v829
        %1307 = vmatpush1.msra.mxu0 %v828
        %1308 = vmatprep.subr.mxu0 %v835
        %1309 = vmatpush1.msra.mxu0 %v834
        %1310 = vmatprep.subr.mxu0 %v841
        %1311 = vmatpush1.msra.mxu0 %v840
        %1312 = vmatprep.subr.mxu0 %v847
        %1313 = vmatpush1.msra.mxu0 %v846
        %1314 = vmatprep.subr.mxu0 %v853
        %1315 = vmatpush1.msra.mxu0 %v852
        %1316 = vmatprep.subr.mxu0 %v859
        %1317 = vmatpush1.msra.mxu0 %v858
        %1318 = vmatprep.subr.mxu0 %v865
        %1319 = vmatpush1.msra.mxu0 %v864
        %1320 = vmatprep.subr.mxu0 %v871
        %1321 = vmatpush1.msra.mxu0 %v870
        %1322 = vmatprep.subr.mxu0 %v877
        %1323 = vmatpush1.msra.mxu0 %v876
        %1324 = vmatprep.subr.mxu0 %v883
        %1325 = vmatpush1.msra.mxu0 %v882
        %1326 = vmatprep.subr.mxu0 %v889
        %1327 = vmatpush1.msra.mxu0 %v888
        %1328 = vmatprep.subr.mxu0 %v895
        %1329 = vmatpush1.msra.mxu0 %v894
        %1330 = vmatprep.subr.mxu0 %v901
        %1331 = vmatpush1.msra.mxu0 %v900
        %1332 = vmatprep.subr.mxu0 %v907
        %1333 = vmatpush1.msra.mxu0 %v906
        %1334 = vmatprep.subr.mxu0 %v913
        %1335 = vmatpush1.msra.mxu0 %v912
        %1336 = vmatprep.subr.mxu0 %v919
        %1337 = vmatpush1.msra.mxu0 %v918
        %1338 = vmatprep.subr.mxu0 %v925
        %1339 = vmatpush1.msra.mxu0 %v924
        %1340 = vmatprep.subr.mxu0 %v931
        %1341 = vmatpush1.msra.mxu0 %v930
        %1342 = vmatprep.subr.mxu0 %v937
        %1343 = vmatpush1.msra.mxu0 %v936
        %1344 = vmatprep.subr.mxu0 %v943
        %1345 = vmatpush1.msra.mxu0 %v942
        %1346 = vmatprep.subr.mxu0 %v949
        %1347 = vmatpush1.msra.mxu0 %v948
        %1348 = vmatprep.subr.mxu0 %v955
        %1349 = vmatpush1.msra.mxu0 %v954
        %1350 = vmatprep.subr.mxu0 %v961
        %1351 = vmatpush1.msra.mxu0 %v960
        %1352 = vmatprep.subr.mxu0 %v967
        %1353 = vmatpush1.msra.mxu0 %v966
        %1354 = vmatprep.subr.mxu0 %v973
        %1355 = vmatpush1.msra.mxu0 %v972
        %1356 = vmatprep.subr.mxu0 %v979
        %1357 = vmatpush1.msra.mxu0 %v978
        %1358 = vmatprep.subr.mxu0 %v985
        %1359 = vmatpush1.msra.mxu0 %v984
        %1360 = vmatprep.subr.mxu0 %v991
        %1361 = vmatpush1.msra.mxu0 %v990
        %1362 = vmatprep.subr.mxu0 %v997
        %1363 = vmatpush1.msra.mxu0 %v996
        %1364 = vmatprep.mubr.f32.mxu0 %v1299
        %1365 = vmatmul.mubr.f32.gmra.mrb[0].mxu0 %v1298
        %v1366 = vpop.f32.mrb[0].mxu0
        %v1367 = vadd.f32 %v1018, %v1366
        %v1368 = vpop.f32.mrb[0].mxu0
        %v1369 = vadd.f32 %v1022, %v1368
        %1370 = vdwg.mxu0
        %1371 = vmatprep.subr.mxu0 %v813
        %1372 = vmatpush1.msra.mxu0 %v812
        %1373 = vmatprep.subr.mxu0 %v819
        %1374 = vmatpush1.msra.mxu0 %v818
        %1375 = vmatprep.subr.mxu0 %v825
        %1376 = vmatpush1.msra.mxu0 %v824
        %1377 = vmatprep.subr.mxu0 %v831
        %1378 = vmatpush1.msra.mxu0 %v830
        %1379 = vmatprep.subr.mxu0 %v837
        %1380 = vmatpush1.msra.mxu0 %v836
        %1381 = vmatprep.subr.mxu0 %v843
        %1382 = vmatpush1.msra.mxu0 %v842
        %1383 = vmatprep.subr.mxu0 %v849
        %1384 = vmatpush1.msra.mxu0 %v848
        %1385 = vmatprep.subr.mxu0 %v855
        %1386 = vmatpush1.msra.mxu0 %v854
        %1387 = vmatprep.subr.mxu0 %v861
        %1388 = vmatpush1.msra.mxu0 %v860
        %1389 = vmatprep.subr.mxu0 %v867
        %1390 = vmatpush1.msra.mxu0 %v866
        %1391 = vmatprep.subr.mxu0 %v873
        %1392 = vmatpush1.msra.mxu0 %v872
        %1393 = vmatprep.subr.mxu0 %v879
        %1394 = vmatpush1.msra.mxu0 %v878
        %1395 = vmatprep.subr.mxu0 %v885
        %1396 = vmatpush1.msra.mxu0 %v884
        %1397 = vmatprep.subr.mxu0 %v891
        %1398 = vmatpush1.msra.mxu0 %v890
        %1399 = vmatprep.subr.mxu0 %v897
        %1400 = vmatpush1.msra.mxu0 %v896
        %1401 = vmatprep.subr.mxu0 %v903
        %1402 = vmatpush1.msra.mxu0 %v902
        %1403 = vmatprep.subr.mxu0 %v909
        %1404 = vmatpush1.msra.mxu0 %v908
        %1405 = vmatprep.subr.mxu0 %v915
        %1406 = vmatpush1.msra.mxu0 %v914
        %1407 = vmatprep.subr.mxu0 %v921
        %1408 = vmatpush1.msra.mxu0 %v920
        %1409 = vmatprep.subr.mxu0 %v927
        %1410 = vmatpush1.msra.mxu0 %v926
        %1411 = vmatprep.subr.mxu0 %v933
        %1412 = vmatpush1.msra.mxu0 %v932
        %1413 = vmatprep.subr.mxu0 %v939
        %1414 = vmatpush1.msra.mxu0 %v938
        %1415 = vmatprep.subr.mxu0 %v945
        %1416 = vmatpush1.msra.mxu0 %v944
        %1417 = vmatprep.subr.mxu0 %v951
        %1418 = vmatpush1.msra.mxu0 %v950
        %1419 = vmatprep.subr.mxu0 %v957
        %1420 = vmatpush1.msra.mxu0 %v956
        %1421 = vmatprep.subr.mxu0 %v963
        %1422 = vmatpush1.msra.mxu0 %v962
        %1423 = vmatprep.subr.mxu0 %v969
        %1424 = vmatpush1.msra.mxu0 %v968
        %1425 = vmatprep.subr.mxu0 %v975
        %1426 = vmatpush1.msra.mxu0 %v974
        %1427 = vmatprep.subr.mxu0 %v981
        %1428 = vmatpush1.msra.mxu0 %v980
        %1429 = vmatprep.subr.mxu0 %v987
        %1430 = vmatpush1.msra.mxu0 %v986
        %1431 = vmatprep.subr.mxu0 %v993
        %1432 = vmatpush1.msra.mxu0 %v992
        %1433 = vmatprep.subr.mxu0 %v999
        %1434 = vmatpush1.msra.mxu0 %v998
        %1435 = vmatprep.mubr.f32.mxu0 %v1299
        %1436 = vmatmul.mubr.f32.gmra.mrb[0].mxu0 %v1298
        %v1437 = vpop.f32.mrb[0].mxu0
        %v1438 = vadd.f32 %v1026, %v1437
        %v1439 = vpop.f32.mrb[0].mxu0
        %v1440 = vadd.f32 %v1030, %v1439
        %1441 = vdwg.mxu0
        %1442 = vmatprep.subr.mxu0 %v815
        %1443 = vmatpush1.msra.mxu0 %v814
        %1444 = vmatprep.subr.mxu0 %v821
        %1445 = vmatpush1.msra.mxu0 %v820
        %1446 = vmatprep.subr.mxu0 %v827
        %1447 = vmatpush1.msra.mxu0 %v826
        %1448 = vmatprep.subr.mxu0 %v833
        %1449 = vmatpush1.msra.mxu0 %v832
        %1450 = vmatprep.subr.mxu0 %v839
        %1451 = vmatpush1.msra.mxu0 %v838
        %1452 = vmatprep.subr.mxu0 %v845
        %1453 = vmatpush1.msra.mxu0 %v844
        %1454 = vmatprep.subr.mxu0 %v851
        %1455 = vmatpush1.msra.mxu0 %v850
        %1456 = vmatprep.subr.mxu0 %v857
        %1457 = vmatpush1.msra.mxu0 %v856
        %1458 = vmatprep.subr.mxu0 %v863
        %1459 = vmatpush1.msra.mxu0 %v862
        %1460 = vmatprep.subr.mxu0 %v869
        %1461 = vmatpush1.msra.mxu0 %v868
        %1462 = vmatprep.subr.mxu0 %v875
        %1463 = vmatpush1.msra.mxu0 %v874
        %1464 = vmatprep.subr.mxu0 %v881
        %1465 = vmatpush1.msra.mxu0 %v880
        %1466 = vmatprep.subr.mxu0 %v887
        %1467 = vmatpush1.msra.mxu0 %v886
        %1468 = vmatprep.subr.mxu0 %v893
        %1469 = vmatpush1.msra.mxu0 %v892
        %1470 = vmatprep.subr.mxu0 %v899
        %1471 = vmatpush1.msra.mxu0 %v898
        %1472 = vmatprep.subr.mxu0 %v905
        %1473 = vmatpush1.msra.mxu0 %v904
        %1474 = vmatprep.subr.mxu0 %v911
        %1475 = vmatpush1.msra.mxu0 %v910
        %1476 = vmatprep.subr.mxu0 %v917
        %1477 = vmatpush1.msra.mxu0 %v916
        %1478 = vmatprep.subr.mxu0 %v923
        %1479 = vmatpush1.msra.mxu0 %v922
        %1480 = vmatprep.subr.mxu0 %v929
        %1481 = vmatpush1.msra.mxu0 %v928
        %1482 = vmatprep.subr.mxu0 %v935
        %1483 = vmatpush1.msra.mxu0 %v934
        %1484 = vmatprep.subr.mxu0 %v941
        %1485 = vmatpush1.msra.mxu0 %v940
        %1486 = vmatprep.subr.mxu0 %v947
        %1487 = vmatpush1.msra.mxu0 %v946
        %1488 = vmatprep.subr.mxu0 %v953
        %1489 = vmatpush1.msra.mxu0 %v952
        %1490 = vmatprep.subr.mxu0 %v959
        %1491 = vmatpush1.msra.mxu0 %v958
        %1492 = vmatprep.subr.mxu0 %v965
        %1493 = vmatpush1.msra.mxu0 %v964
        %1494 = vmatprep.subr.mxu0 %v971
        %1495 = vmatpush1.msra.mxu0 %v970
        %1496 = vmatprep.subr.mxu0 %v977
        %1497 = vmatpush1.msra.mxu0 %v976
        %1498 = vmatprep.subr.mxu0 %v983
        %1499 = vmatpush1.msra.mxu0 %v982
        %1500 = vmatprep.subr.mxu0 %v989
        %1501 = vmatpush1.msra.mxu0 %v988
        %1502 = vmatprep.subr.mxu0 %v995
        %1503 = vmatpush1.msra.mxu0 %v994
        %1504 = vmatprep.subr.mxu0 %v1001
        %1505 = vmatpush1.msra.mxu0 %v1000
        %1506 = vmatprep.mubr.f32.mxu0 %v1299
        %1507 = vmatmul.mubr.f32.gmra.mrb[0].mxu0 %v1298
        %v1508 = vpop.f32.mrb[0].mxu0
        %v1509 = vadd.f32 %v1034, %v1508
        %v1510 = vpop.f32.mrb[0].mxu0
        %v1511 = vadd.f32 %v1038, %v1510
        %1512 = vdwg.mxu0
        %v1515 = vrot.slane %v1367, 7
        %v1516 = vrot.slane %v1369, 7
        %v1519 = vadd.f32 %v645, %v1515
        %v1520 = vadd.f32 %v647, %v1516
        %v1521 = vxor.u32 %v1519, 2147483648
        %v1522 = vxor.u32 %v1520, 2147483648
        %v1523 = vmul.f32 %v1521, 1.442695
        %v1524 = vpow.pop %v1523
        %v1525 = vmul.f32 %v1522, 1.442695
        %v1526 = vpow.pop %v1525
        %v1527 = vadd.f32 %v1524, 1.0
        %v1528 = vadd.f32 %v1526, 1.0
        %v1529 = vrcp.pop %v1527
        %v1530 = vmul.f32 1.0, %v1529
        %v1531 = vrcp.pop %v1528
        %v1532 = vmul.f32 1.0, %v1531
        %v1535 = vrot.slane %v1438, 7
        %v1536 = vrot.slane %v1440, 7
        %v1539 = vadd.f32 %v722, %v1535
        %v1540 = vadd.f32 %v724, %v1536
        %v1541 = vxor.u32 %v1539, 2147483648
        %v1542 = vxor.u32 %v1540, 2147483648
        %v1543 = vmul.f32 %v1541, 1.442695
        %v1544 = vpow.pop %v1543
        %v1545 = vmul.f32 %v1542, 1.442695
        %v1546 = vpow.pop %v1545
        %v1547 = vadd.f32 %v1544, 1.0
        %v1548 = vadd.f32 %v1546, 1.0
        %v1549 = vrcp.pop %v1547
        %v1550 = vmul.f32 1.0, %v1549
        %v1551 = vrcp.pop %v1548
        %v1552 = vmul.f32 1.0, %v1551
        %v1555 = vrot.slane %v1509, 7
        %v1556 = vrot.slane %v1511, 7
        %v1559 = vmul.f32 %v1530, %v1555
        %v1560 = vmul.f32 %v1532, %v1556
        %v1561 = vadd.f32 %v799, %v1559
        %v1562 = vadd.f32 %v801, %v1560
        %v1563 = vtanh.pop %v1561
        %v1564 = vtanh.pop %v1562
        %v1565 = vsub.f32 1.0, %v1550
        %v1566 = vsub.f32 1.0, %v1552
        %v1567 = vmul.f32 %v1565, %v1563
        %v1568 = vmul.f32 %v1566, %v1564
        %v1571 = vrot.slane %v1298, 7
        %v1572 = vrot.slane %v1299, 7
        %v1575 = vmul.f32 %v1550, %v1571
        %v1576 = vmul.f32 %v1552, %v1572
        %v1577 = vadd.f32 %v1567, %v1575
        %v1578 = vadd.f32 %v1568, %v1576
        %v1581 = vrot.slane %v1577, 1
        %v1582 = vrot.slane %v1578, 1
        %1585 = vmatprep.subr.mxu0 %v811
        %1586 = vmatpush1.msra.mxu0 %v810
        %1587 = vmatprep.subr.mxu0 %v817
        %1588 = vmatpush1.msra.mxu0 %v816
        %1589 = vmatprep.subr.mxu0 %v823
        %1590 = vmatpush1.msra.mxu0 %v822
        %1591 = vmatprep.subr.mxu0 %v829
        %1592 = vmatpush1.msra.mxu0 %v828
        %1593 = vmatprep.subr.mxu0 %v835
        %1594 = vmatpush1.msra.mxu0 %v834
        %1595 = vmatprep.subr.mxu0 %v841
        %1596 = vmatpush1.msra.mxu0 %v840
        %1597 = vmatprep.subr.mxu0 %v847
        %1598 = vmatpush1.msra.mxu0 %v846
        %1599 = vmatprep.subr.mxu0 %v853
        %1600 = vmatpush1.msra.mxu0 %v852
        %1601 = vmatprep.subr.mxu0 %v859
        %1602 = vmatpush1.msra.mxu0 %v858
        %1603 = vmatprep.subr.mxu0 %v865
        %1604 = vmatpush1.msra.mxu0 %v864
        %1605 = vmatprep.subr.mxu0 %v871
        %1606 = vmatpush1.msra.mxu0 %v870
        %1607 = vmatprep.subr.mxu0 %v877
        %1608 = vmatpush1.msra.mxu0 %v876
        %1609 = vmatprep.subr.mxu0 %v883
        %1610 = vmatpush1.msra.mxu0 %v882
        %1611 = vmatprep.subr.mxu0 %v889
        %1612 = vmatpush1.msra.mxu0 %v888
        %1613 = vmatprep.subr.mxu0 %v895
        %1614 = vmatpush1.msra.mxu0 %v894
        %1615 = vmatprep.subr.mxu0 %v901
        %1616 = vmatpush1.msra.mxu0 %v900
        %1617 = vmatprep.subr.mxu0 %v907
        %1618 = vmatpush1.msra.mxu0 %v906
        %1619 = vmatprep.subr.mxu0 %v913
        %1620 = vmatpush1.msra.mxu0 %v912
        %1621 = vmatprep.subr.mxu0 %v919
        %1622 = vmatpush1.msra.mxu0 %v918
        %1623 = vmatprep.subr.mxu0 %v925
        %1624 = vmatpush1.msra.mxu0 %v924
        %1625 = vmatprep.subr.mxu0 %v931
        %1626 = vmatpush1.msra.mxu0 %v930
        %1627 = vmatprep.subr.mxu0 %v937
        %1628 = vmatpush1.msra.mxu0 %v936
        %1629 = vmatprep.subr.mxu0 %v943
        %1630 = vmatpush1.msra.mxu0 %v942
        %1631 = vmatprep.subr.mxu0 %v949
        %1632 = vmatpush1.msra.mxu0 %v948
        %1633 = vmatprep.subr.mxu0 %v955
        %1634 = vmatpush1.msra.mxu0 %v954
        %1635 = vmatprep.subr.mxu0 %v961
        %1636 = vmatpush1.msra.mxu0 %v960
        %1637 = vmatprep.subr.mxu0 %v967
        %1638 = vmatpush1.msra.mxu0 %v966
        %1639 = vmatprep.subr.mxu0 %v973
        %1640 = vmatpush1.msra.mxu0 %v972
        %1641 = vmatprep.subr.mxu0 %v979
        %1642 = vmatpush1.msra.mxu0 %v978
        %1643 = vmatprep.subr.mxu0 %v985
        %1644 = vmatpush1.msra.mxu0 %v984
        %1645 = vmatprep.subr.mxu0 %v991
        %1646 = vmatpush1.msra.mxu0 %v990
        %1647 = vmatprep.subr.mxu0 %v997
        %1648 = vmatpush1.msra.mxu0 %v996
        %1649 = vmatprep.mubr.f32.mxu0 %v1582
        %1650 = vmatmul.mubr.f32.gmra.mrb[0].mxu0 %v1581
        %v1651 = vpop.f32.mrb[0].mxu0
        %v1652 = vadd.f32 %v1018, %v1651
        %v1653 = vpop.f32.mrb[0].mxu0
        %v1654 = vadd.f32 %v1022, %v1653
        %1655 = vdwg.mxu0
        %1656 = vmatprep.subr.mxu0 %v813
        %1657 = vmatpush1.msra.mxu0 %v812
        %1658 = vmatprep.subr.mxu0 %v819
        %1659 = vmatpush1.msra.mxu0 %v818
        %1660 = vmatprep.subr.mxu0 %v825
        %1661 = vmatpush1.msra.mxu0 %v824
        %1662 = vmatprep.subr.mxu0 %v831
        %1663 = vmatpush1.msra.mxu0 %v830
        %1664 = vmatprep.subr.mxu0 %v837
        %1665 = vmatpush1.msra.mxu0 %v836
        %1666 = vmatprep.subr.mxu0 %v843
        %1667 = vmatpush1.msra.mxu0 %v842
        %1668 = vmatprep.subr.mxu0 %v849
        %1669 = vmatpush1.msra.mxu0 %v848
        %1670 = vmatprep.subr.mxu0 %v855
        %1671 = vmatpush1.msra.mxu0 %v854
        %1672 = vmatprep.subr.mxu0 %v861
        %1673 = vmatpush1.msra.mxu0 %v860
        %1674 = vmatprep.subr.mxu0 %v867
        %1675 = vmatpush1.msra.mxu0 %v866
        %1676 = vmatprep.subr.mxu0 %v873
        %1677 = vmatpush1.msra.mxu0 %v872
        %1678 = vmatprep.subr.mxu0 %v879
        %1679 = vmatpush1.msra.mxu0 %v878
        %1680 = vmatprep.subr.mxu0 %v885
        %1681 = vmatpush1.msra.mxu0 %v884
        %1682 = vmatprep.subr.mxu0 %v891
        %1683 = vmatpush1.msra.mxu0 %v890
        %1684 = vmatprep.subr.mxu0 %v897
        %1685 = vmatpush1.msra.mxu0 %v896
        %1686 = vmatprep.subr.mxu0 %v903
        %1687 = vmatpush1.msra.mxu0 %v902
        %1688 = vmatprep.subr.mxu0 %v909
        %1689 = vmatpush1.msra.mxu0 %v908
        %1690 = vmatprep.subr.mxu0 %v915
        %1691 = vmatpush1.msra.mxu0 %v914
        %1692 = vmatprep.subr.mxu0 %v921
        %1693 = vmatpush1.msra.mxu0 %v920
        %1694 = vmatprep.subr.mxu0 %v927
        %1695 = vmatpush1.msra.mxu0 %v926
        %1696 = vmatprep.subr.mxu0 %v933
        %1697 = vmatpush1.msra.mxu0 %v932
        %1698 = vmatprep.subr.mxu0 %v939
        %1699 = vmatpush1.msra.mxu0 %v938
        %1700 = vmatprep.subr.mxu0 %v945
        %1701 = vmatpush1.msra.mxu0 %v944
        %1702 = vmatprep.subr.mxu0 %v951
        %1703 = vmatpush1.msra.mxu0 %v950
        %1704 = vmatprep.subr.mxu0 %v957
        %1705 = vmatpush1.msra.mxu0 %v956
        %1706 = vmatprep.subr.mxu0 %v963
        %1707 = vmatpush1.msra.mxu0 %v962
        %1708 = vmatprep.subr.mxu0 %v969
        %1709 = vmatpush1.msra.mxu0 %v968
        %1710 = vmatprep.subr.mxu0 %v975
        %1711 = vmatpush1.msra.mxu0 %v974
        %1712 = vmatprep.subr.mxu0 %v981
        %1713 = vmatpush1.msra.mxu0 %v980
        %1714 = vmatprep.subr.mxu0 %v987
        %1715 = vmatpush1.msra.mxu0 %v986
        %1716 = vmatprep.subr.mxu0 %v993
        %1717 = vmatpush1.msra.mxu0 %v992
        %1718 = vmatprep.subr.mxu0 %v999
        %1719 = vmatpush1.msra.mxu0 %v998
        %1720 = vmatprep.mubr.f32.mxu0 %v1582
        %1721 = vmatmul.mubr.f32.gmra.mrb[0].mxu0 %v1581
        %v1722 = vpop.f32.mrb[0].mxu0
        %v1723 = vadd.f32 %v1026, %v1722
        %v1724 = vpop.f32.mrb[0].mxu0
        %v1725 = vadd.f32 %v1030, %v1724
        %1726 = vdwg.mxu0
        %1727 = vmatprep.subr.mxu0 %v815
        %1728 = vmatpush1.msra.mxu0 %v814
        %1729 = vmatprep.subr.mxu0 %v821
        %1730 = vmatpush1.msra.mxu0 %v820
        %1731 = vmatprep.subr.mxu0 %v827
        %1732 = vmatpush1.msra.mxu0 %v826
        %1733 = vmatprep.subr.mxu0 %v833
        %1734 = vmatpush1.msra.mxu0 %v832
        %1735 = vmatprep.subr.mxu0 %v839
        %1736 = vmatpush1.msra.mxu0 %v838
        %1737 = vmatprep.subr.mxu0 %v845
        %1738 = vmatpush1.msra.mxu0 %v844
        %1739 = vmatprep.subr.mxu0 %v851
        %1740 = vmatpush1.msra.mxu0 %v850
        %1741 = vmatprep.subr.mxu0 %v857
        %1742 = vmatpush1.msra.mxu0 %v856
        %1743 = vmatprep.subr.mxu0 %v863
        %1744 = vmatpush1.msra.mxu0 %v862
        %1745 = vmatprep.subr.mxu0 %v869
        %1746 = vmatpush1.msra.mxu0 %v868
        %1747 = vmatprep.subr.mxu0 %v875
        %1748 = vmatpush1.msra.mxu0 %v874
        %1749 = vmatprep.subr.mxu0 %v881
        %1750 = vmatpush1.msra.mxu0 %v880
        %1751 = vmatprep.subr.mxu0 %v887
        %1752 = vmatpush1.msra.mxu0 %v886
        %1753 = vmatprep.subr.mxu0 %v893
        %1754 = vmatpush1.msra.mxu0 %v892
        %1755 = vmatprep.subr.mxu0 %v899
        %1756 = vmatpush1.msra.mxu0 %v898
        %1757 = vmatprep.subr.mxu0 %v905
        %1758 = vmatpush1.msra.mxu0 %v904
        %1759 = vmatprep.subr.mxu0 %v911
        %1760 = vmatpush1.msra.mxu0 %v910
        %1761 = vmatprep.subr.mxu0 %v917
        %1762 = vmatpush1.msra.mxu0 %v916
        %1763 = vmatprep.subr.mxu0 %v923
        %1764 = vmatpush1.msra.mxu0 %v922
        %1765 = vmatprep.subr.mxu0 %v929
        %1766 = vmatpush1.msra.mxu0 %v928
        %1767 = vmatprep.subr.mxu0 %v935
        %1768 = vmatpush1.msra.mxu0 %v934
        %1769 = vmatprep.subr.mxu0 %v941
        %1770 = vmatpush1.msra.mxu0 %v940
        %1771 = vmatprep.subr.mxu0 %v947
        %1772 = vmatpush1.msra.mxu0 %v946
        %1773 = vmatprep.subr.mxu0 %v953
        %1774 = vmatpush1.msra.mxu0 %v952
        %1775 = vmatprep.subr.mxu0 %v959
        %1776 = vmatpush1.msra.mxu0 %v958
        %1777 = vmatprep.subr.mxu0 %v965
        %1778 = vmatpush1.msra.mxu0 %v964
        %1779 = vmatprep.subr.mxu0 %v971
        %1780 = vmatpush1.msra.mxu0 %v970
        %1781 = vmatprep.subr.mxu0 %v977
        %1782 = vmatpush1.msra.mxu0 %v976
        %1783 = vmatprep.subr.mxu0 %v983
        %1784 = vmatpush1.msra.mxu0 %v982
        %1785 = vmatprep.subr.mxu0 %v989
        %1786 = vmatpush1.msra.mxu0 %v988
        %1787 = vmatprep.subr.mxu0 %v995
        %1788 = vmatpush1.msra.mxu0 %v994
        %1789 = vmatprep.subr.mxu0 %v1001
        %1790 = vmatpush1.msra.mxu0 %v1000
        %1791 = vmatprep.mubr.f32.mxu0 %v1582
        %1792 = vmatmul.mubr.f32.gmra.mrb[0].mxu0 %v1581
        %v1793 = vpop.f32.mrb[0].mxu0
        %v1794 = vadd.f32 %v1034, %v1793
        %v1795 = vpop.f32.mrb[0].mxu0
        %v1796 = vadd.f32 %v1038, %v1795
        %1797 = vdwg.mxu0
        %v1800 = vrot.slane %v1652, 6
        %v1801 = vrot.slane %v1654, 6
        %v1804 = vadd.f32 %v645, %v1800
        %v1805 = vadd.f32 %v647, %v1801
        %v1806 = vxor.u32 %v1804, 2147483648
        %v1807 = vxor.u32 %v1805, 2147483648
        %v1808 = vmul.f32 %v1806, 1.442695
        %v1809 = vpow.pop %v1808
        %v1810 = vmul.f32 %v1807, 1.442695
        %v1811 = vpow.pop %v1810
        %v1812 = vadd.f32 %v1809, 1.0
        %v1813 = vadd.f32 %v1811, 1.0
        %v1814 = vrcp.pop %v1812
        %v1815 = vmul.f32 1.0, %v1814
        %v1816 = vrcp.pop %v1813
        %v1817 = vmul.f32 1.0, %v1816
        %v1820 = vrot.slane %v1723, 6
        %v1821 = vrot.slane %v1725, 6
        %v1824 = vadd.f32 %v722, %v1820
        %v1825 = vadd.f32 %v724, %v1821
        %v1826 = vxor.u32 %v1824, 2147483648
        %v1827 = vxor.u32 %v1825, 2147483648
        %v1828 = vmul.f32 %v1826, 1.442695
        %v1829 = vpow.pop %v1828
        %v1830 = vmul.f32 %v1827, 1.442695
        %v1831 = vpow.pop %v1830
        %v1832 = vadd.f32 %v1829, 1.0
        %v1833 = vadd.f32 %v1831, 1.0
        %v1834 = vrcp.pop %v1832
        %v1835 = vmul.f32 1.0, %v1834
        %v1836 = vrcp.pop %v1833
        %v1837 = vmul.f32 1.0, %v1836
        %v1840 = vrot.slane %v1794, 6
        %v1841 = vrot.slane %v1796, 6
        %v1844 = vmul.f32 %v1815, %v1840
        %v1845 = vmul.f32 %v1817, %v1841
        %v1846 = vadd.f32 %v799, %v1844
        %v1847 = vadd.f32 %v801, %v1845
        %v1848 = vtanh.pop %v1846
        %v1849 = vtanh.pop %v1847
        %v1850 = vsub.f32 1.0, %v1835
        %v1851 = vsub.f32 1.0, %v1837
        %v1852 = vmul.f32 %v1850, %v1848
        %v1853 = vmul.f32 %v1851, %v1849
        %v1854 = vrot.slane %v1577, 7
        %v1855 = vrot.slane %v1578, 7
        %v1858 = vmul.f32 %v1835, %v1854
        %v1859 = vmul.f32 %v1837, %v1855
        %v1860 = vadd.f32 %v1852, %v1858
        %v1861 = vadd.f32 %v1853, %v1859
        %v1864 = vrot.slane %v1860, 2
        %v1865 = vrot.slane %v1861, 2
        %1868 = vmatprep.subr.mxu0 %v811
        %1869 = vmatpush1.msra.mxu0 %v810
        %1870 = vmatprep.subr.mxu0 %v817
        %1871 = vmatpush1.msra.mxu0 %v816
        %1872 = vmatprep.subr.mxu0 %v823
        %1873 = vmatpush1.msra.mxu0 %v822
        %1874 = vmatprep.subr.mxu0 %v829
        %1875 = vmatpush1.msra.mxu0 %v828
        %1876 = vmatprep.subr.mxu0 %v835
        %1877 = vmatpush1.msra.mxu0 %v834
        %1878 = vmatprep.subr.mxu0 %v841
        %1879 = vmatpush1.msra.mxu0 %v840
        %1880 = vmatprep.subr.mxu0 %v847
        %1881 = vmatpush1.msra.mxu0 %v846
        %1882 = vmatprep.subr.mxu0 %v853
        %1883 = vmatpush1.msra.mxu0 %v852
        %1884 = vmatprep.subr.mxu0 %v859
        %1885 = vmatpush1.msra.mxu0 %v858
        %1886 = vmatprep.subr.mxu0 %v865
        %1887 = vmatpush1.msra.mxu0 %v864
        %1888 = vmatprep.subr.mxu0 %v871
        %1889 = vmatpush1.msra.mxu0 %v870
        %1890 = vmatprep.subr.mxu0 %v877
        %1891 = vmatpush1.msra.mxu0 %v876
        %1892 = vmatprep.subr.mxu0 %v883
        %1893 = vmatpush1.msra.mxu0 %v882
        %1894 = vmatprep.subr.mxu0 %v889
        %1895 = vmatpush1.msra.mxu0 %v888
        %1896 = vmatprep.subr.mxu0 %v895
        %1897 = vmatpush1.msra.mxu0 %v894
        %1898 = vmatprep.subr.mxu0 %v901
        %1899 = vmatpush1.msra.mxu0 %v900
        %1900 = vmatprep.subr.mxu0 %v907
        %1901 = vmatpush1.msra.mxu0 %v906
        %1902 = vmatprep.subr.mxu0 %v913
        %1903 = vmatpush1.msra.mxu0 %v912
        %1904 = vmatprep.subr.mxu0 %v919
        %1905 = vmatpush1.msra.mxu0 %v918
        %1906 = vmatprep.subr.mxu0 %v925
        %1907 = vmatpush1.msra.mxu0 %v924
        %1908 = vmatprep.subr.mxu0 %v931
        %1909 = vmatpush1.msra.mxu0 %v930
        %1910 = vmatprep.subr.mxu0 %v937
        %1911 = vmatpush1.msra.mxu0 %v936
        %1912 = vmatprep.subr.mxu0 %v943
        %1913 = vmatpush1.msra.mxu0 %v942
        %1914 = vmatprep.subr.mxu0 %v949
        %1915 = vmatpush1.msra.mxu0 %v948
        %1916 = vmatprep.subr.mxu0 %v955
        %1917 = vmatpush1.msra.mxu0 %v954
        %1918 = vmatprep.subr.mxu0 %v961
        %1919 = vmatpush1.msra.mxu0 %v960
        %1920 = vmatprep.subr.mxu0 %v967
        %1921 = vmatpush1.msra.mxu0 %v966
        %1922 = vmatprep.subr.mxu0 %v973
        %1923 = vmatpush1.msra.mxu0 %v972
        %1924 = vmatprep.subr.mxu0 %v979
        %1925 = vmatpush1.msra.mxu0 %v978
        %1926 = vmatprep.subr.mxu0 %v985
        %1927 = vmatpush1.msra.mxu0 %v984
        %1928 = vmatprep.subr.mxu0 %v991
        %1929 = vmatpush1.msra.mxu0 %v990
        %1930 = vmatprep.subr.mxu0 %v997
        %1931 = vmatpush1.msra.mxu0 %v996
        %1932 = vmatprep.mubr.f32.mxu0 %v1865
        %1933 = vmatmul.mubr.f32.gmra.mrb[0].mxu0 %v1864
        %v1934 = vpop.f32.mrb[0].mxu0
        %v1935 = vadd.f32 %v1018, %v1934
        %v1936 = vpop.f32.mrb[0].mxu0
        %v1937 = vadd.f32 %v1022, %v1936
        %1938 = vdwg.mxu0
        %1939 = vmatprep.subr.mxu0 %v813
        %1940 = vmatpush1.msra.mxu0 %v812
        %1941 = vmatprep.subr.mxu0 %v819
        %1942 = vmatpush1.msra.mxu0 %v818
        %1943 = vmatprep.subr.mxu0 %v825
        %1944 = vmatpush1.msra.mxu0 %v824
        %1945 = vmatprep.subr.mxu0 %v831
        %1946 = vmatpush1.msra.mxu0 %v830
        %1947 = vmatprep.subr.mxu0 %v837
        %1948 = vmatpush1.msra.mxu0 %v836
        %1949 = vmatprep.subr.mxu0 %v843
        %1950 = vmatpush1.msra.mxu0 %v842
        %1951 = vmatprep.subr.mxu0 %v849
        %1952 = vmatpush1.msra.mxu0 %v848
        %1953 = vmatprep.subr.mxu0 %v855
        %1954 = vmatpush1.msra.mxu0 %v854
        %1955 = vmatprep.subr.mxu0 %v861
        %1956 = vmatpush1.msra.mxu0 %v860
        %1957 = vmatprep.subr.mxu0 %v867
        %1958 = vmatpush1.msra.mxu0 %v866
        %1959 = vmatprep.subr.mxu0 %v873
        %1960 = vmatpush1.msra.mxu0 %v872
        %1961 = vmatprep.subr.mxu0 %v879
        %1962 = vmatpush1.msra.mxu0 %v878
        %1963 = vmatprep.subr.mxu0 %v885
        %1964 = vmatpush1.msra.mxu0 %v884
        %1965 = vmatprep.subr.mxu0 %v891
        %1966 = vmatpush1.msra.mxu0 %v890
        %1967 = vmatprep.subr.mxu0 %v897
        %1968 = vmatpush1.msra.mxu0 %v896
        %1969 = vmatprep.subr.mxu0 %v903
        %1970 = vmatpush1.msra.mxu0 %v902
        %1971 = vmatprep.subr.mxu0 %v909
        %1972 = vmatpush1.msra.mxu0 %v908
        %1973 = vmatprep.subr.mxu0 %v915
        %1974 = vmatpush1.msra.mxu0 %v914
        %1975 = vmatprep.subr.mxu0 %v921
        %1976 = vmatpush1.msra.mxu0 %v920
        %1977 = vmatprep.subr.mxu0 %v927
        %1978 = vmatpush1.msra.mxu0 %v926
        %1979 = vmatprep.subr.mxu0 %v933
        %1980 = vmatpush1.msra.mxu0 %v932
        %1981 = vmatprep.subr.mxu0 %v939
        %1982 = vmatpush1.msra.mxu0 %v938
        %1983 = vmatprep.subr.mxu0 %v945
        %1984 = vmatpush1.msra.mxu0 %v944
        %1985 = vmatprep.subr.mxu0 %v951
        %1986 = vmatpush1.msra.mxu0 %v950
        %1987 = vmatprep.subr.mxu0 %v957
        %1988 = vmatpush1.msra.mxu0 %v956
        %1989 = vmatprep.subr.mxu0 %v963
        %1990 = vmatpush1.msra.mxu0 %v962
        %1991 = vmatprep.subr.mxu0 %v969
        %1992 = vmatpush1.msra.mxu0 %v968
        %1993 = vmatprep.subr.mxu0 %v975
        %1994 = vmatpush1.msra.mxu0 %v974
        %1995 = vmatprep.subr.mxu0 %v981
        %1996 = vmatpush1.msra.mxu0 %v980
        %1997 = vmatprep.subr.mxu0 %v987
        %1998 = vmatpush1.msra.mxu0 %v986
        %1999 = vmatprep.subr.mxu0 %v993
        %2000 = vmatpush1.msra.mxu0 %v992
        %2001 = vmatprep.subr.mxu0 %v999
        %2002 = vmatpush1.msra.mxu0 %v998
        %2003 = vmatprep.mubr.f32.mxu0 %v1865
        %2004 = vmatmul.mubr.f32.gmra.mrb[0].mxu0 %v1864
        %v2005 = vpop.f32.mrb[0].mxu0
        %v2006 = vadd.f32 %v1026, %v2005
        %v2007 = vpop.f32.mrb[0].mxu0
        %v2008 = vadd.f32 %v1030, %v2007
        %2009 = vdwg.mxu0
        %2010 = vmatprep.subr.mxu0 %v815
        %2011 = vmatpush1.msra.mxu0 %v814
        %2012 = vmatprep.subr.mxu0 %v821
        %2013 = vmatpush1.msra.mxu0 %v820
        %2014 = vmatprep.subr.mxu0 %v827
        %2015 = vmatpush1.msra.mxu0 %v826
        %2016 = vmatprep.subr.mxu0 %v833
        %2017 = vmatpush1.msra.mxu0 %v832
        %2018 = vmatprep.subr.mxu0 %v839
        %2019 = vmatpush1.msra.mxu0 %v838
        %2020 = vmatprep.subr.mxu0 %v845
        %2021 = vmatpush1.msra.mxu0 %v844
        %2022 = vmatprep.subr.mxu0 %v851
        %2023 = vmatpush1.msra.mxu0 %v850
        %2024 = vmatprep.subr.mxu0 %v857
        %2025 = vmatpush1.msra.mxu0 %v856
        %2026 = vmatprep.subr.mxu0 %v863
        %2027 = vmatpush1.msra.mxu0 %v862
        %2028 = vmatprep.subr.mxu0 %v869
        %2029 = vmatpush1.msra.mxu0 %v868
        %2030 = vmatprep.subr.mxu0 %v875
        %2031 = vmatpush1.msra.mxu0 %v874
        %2032 = vmatprep.subr.mxu0 %v881
        %2033 = vmatpush1.msra.mxu0 %v880
        %2034 = vmatprep.subr.mxu0 %v887
        %2035 = vmatpush1.msra.mxu0 %v886
        %2036 = vmatprep.subr.mxu0 %v893
        %2037 = vmatpush1.msra.mxu0 %v892
        %2038 = vmatprep.subr.mxu0 %v899
        %2039 = vmatpush1.msra.mxu0 %v898
        %2040 = vmatprep.subr.mxu0 %v905
        %2041 = vmatpush1.msra.mxu0 %v904
        %2042 = vmatprep.subr.mxu0 %v911
        %2043 = vmatpush1.msra.mxu0 %v910
        %2044 = vmatprep.subr.mxu0 %v917
        %2045 = vmatpush1.msra.mxu0 %v916
        %2046 = vmatprep.subr.mxu0 %v923
        %2047 = vmatpush1.msra.mxu0 %v922
        %2048 = vmatprep.subr.mxu0 %v929
        %2049 = vmatpush1.msra.mxu0 %v928
        %2050 = vmatprep.subr.mxu0 %v935
        %2051 = vmatpush1.msra.mxu0 %v934
        %2052 = vmatprep.subr.mxu0 %v941
        %2053 = vmatpush1.msra.mxu0 %v940
        %2054 = vmatprep.subr.mxu0 %v947
        %2055 = vmatpush1.msra.mxu0 %v946
        %2056 = vmatprep.subr.mxu0 %v953
        %2057 = vmatpush1.msra.mxu0 %v952
        %2058 = vmatprep.subr.mxu0 %v959
        %2059 = vmatpush1.msra.mxu0 %v958
        %2060 = vmatprep.subr.mxu0 %v965
        %2061 = vmatpush1.msra.mxu0 %v964
        %2062 = vmatprep.subr.mxu0 %v971
        %2063 = vmatpush1.msra.mxu0 %v970
        %2064 = vmatprep.subr.mxu0 %v977
        %2065 = vmatpush1.msra.mxu0 %v976
        %2066 = vmatprep.subr.mxu0 %v983
        %2067 = vmatpush1.msra.mxu0 %v982
        %2068 = vmatprep.subr.mxu0 %v989
        %2069 = vmatpush1.msra.mxu0 %v988
        %2070 = vmatprep.subr.mxu0 %v995
        %2071 = vmatpush1.msra.mxu0 %v994
        %2072 = vmatprep.subr.mxu0 %v1001
        %2073 = vmatpush1.msra.mxu0 %v1000
        %2074 = vmatprep.mubr.f32.mxu0 %v1865
        %2075 = vmatmul.mubr.f32.gmra.mrb[0].mxu0 %v1864
        %v2076 = vpop.f32.mrb[0].mxu0
        %v2077 = vadd.f32 %v1034, %v2076
        %v2078 = vpop.f32.mrb[0].mxu0
        %v2079 = vadd.f32 %v1038, %v2078
        %2080 = vdwg.mxu0
        %v2083 = vrot.slane %v1935, 5
        %v2084 = vrot.slane %v1937, 5
        %v2087 = vadd.f32 %v645, %v2083
        %v2088 = vadd.f32 %v647, %v2084
        %v2089 = vxor.u32 %v2087, 2147483648
        %v2090 = vxor.u32 %v2088, 2147483648
        %v2091 = vmul.f32 %v2089, 1.442695
        %v2092 = vpow.pop %v2091
        %v2093 = vmul.f32 %v2090, 1.442695
        %v2094 = vpow.pop %v2093
        %v2095 = vadd.f32 %v2092, 1.0
        %v2096 = vadd.f32 %v2094, 1.0
        %v2097 = vrcp.pop %v2095
        %v2098 = vmul.f32 1.0, %v2097
        %v2099 = vrcp.pop %v2096
        %v2100 = vmul.f32 1.0, %v2099
        %v2103 = vrot.slane %v2006, 5
        %v2104 = vrot.slane %v2008, 5
        %v2107 = vadd.f32 %v722, %v2103
        %v2108 = vadd.f32 %v724, %v2104
        %v2109 = vxor.u32 %v2107, 2147483648
        %v2110 = vxor.u32 %v2108, 2147483648
        %v2111 = vmul.f32 %v2109, 1.442695
        %v2112 = vpow.pop %v2111
        %v2113 = vmul.f32 %v2110, 1.442695
        %v2114 = vpow.pop %v2113
        %v2115 = vadd.f32 %v2112, 1.0
        %v2116 = vadd.f32 %v2114, 1.0
        %v2117 = vrcp.pop %v2115
        %v2118 = vmul.f32 1.0, %v2117
        %v2119 = vrcp.pop %v2116
        %v2120 = vmul.f32 1.0, %v2119
        %v2123 = vrot.slane %v2077, 5
        %v2124 = vrot.slane %v2079, 5
        %v2127 = vmul.f32 %v2098, %v2123
        %v2128 = vmul.f32 %v2100, %v2124
        %v2129 = vadd.f32 %v799, %v2127
        %v2130 = vadd.f32 %v801, %v2128
        %v2131 = vtanh.pop %v2129
        %v2132 = vtanh.pop %v2130
        %v2133 = vsub.f32 1.0, %v2118
        %v2134 = vsub.f32 1.0, %v2120
        %v2135 = vmul.f32 %v2133, %v2131
        %v2136 = vmul.f32 %v2134, %v2132
        %v2137 = vrot.slane %v1860, 7
        %v2138 = vrot.slane %v1861, 7
        %v2141 = vmul.f32 %v2118, %v2137
        %v2142 = vmul.f32 %v2120, %v2138
        %v2143 = vadd.f32 %v2135, %v2141
        %v2144 = vadd.f32 %v2136, %v2142
        %v2147 = vrot.slane %v2143, 3
        %v2148 = vrot.slane %v2144, 3
        %2151 = vmatprep.subr.mxu0 %v811
        %2152 = vmatpush1.msra.mxu0 %v810
        %2153 = vmatprep.subr.mxu0 %v817
        %2154 = vmatpush1.msra.mxu0 %v816
        %2155 = vmatprep.subr.mxu0 %v823
        %2156 = vmatpush1.msra.mxu0 %v822
        %2157 = vmatprep.subr.mxu0 %v829
        %2158 = vmatpush1.msra.mxu0 %v828
        %2159 = vmatprep.subr.mxu0 %v835
        %2160 = vmatpush1.msra.mxu0 %v834
        %2161 = vmatprep.subr.mxu0 %v841
        %2162 = vmatpush1.msra.mxu0 %v840
        %2163 = vmatprep.subr.mxu0 %v847
        %2164 = vmatpush1.msra.mxu0 %v846
        %2165 = vmatprep.subr.mxu0 %v853
        %2166 = vmatpush1.msra.mxu0 %v852
        %2167 = vmatprep.subr.mxu0 %v859
        %2168 = vmatpush1.msra.mxu0 %v858
        %2169 = vmatprep.subr.mxu0 %v865
        %2170 = vmatpush1.msra.mxu0 %v864
        %2171 = vmatprep.subr.mxu0 %v871
        %2172 = vmatpush1.msra.mxu0 %v870
        %2173 = vmatprep.subr.mxu0 %v877
        %2174 = vmatpush1.msra.mxu0 %v876
        %2175 = vmatprep.subr.mxu0 %v883
        %2176 = vmatpush1.msra.mxu0 %v882
        %2177 = vmatprep.subr.mxu0 %v889
        %2178 = vmatpush1.msra.mxu0 %v888
        %2179 = vmatprep.subr.mxu0 %v895
        %2180 = vmatpush1.msra.mxu0 %v894
        %2181 = vmatprep.subr.mxu0 %v901
        %2182 = vmatpush1.msra.mxu0 %v900
        %2183 = vmatprep.subr.mxu0 %v907
        %2184 = vmatpush1.msra.mxu0 %v906
        %2185 = vmatprep.subr.mxu0 %v913
        %2186 = vmatpush1.msra.mxu0 %v912
        %2187 = vmatprep.subr.mxu0 %v919
        %2188 = vmatpush1.msra.mxu0 %v918
        %2189 = vmatprep.subr.mxu0 %v925
        %2190 = vmatpush1.msra.mxu0 %v924
        %2191 = vmatprep.subr.mxu0 %v931
        %2192 = vmatpush1.msra.mxu0 %v930
        %2193 = vmatprep.subr.mxu0 %v937
        %2194 = vmatpush1.msra.mxu0 %v936
        %2195 = vmatprep.subr.mxu0 %v943
        %2196 = vmatpush1.msra.mxu0 %v942
        %2197 = vmatprep.subr.mxu0 %v949
        %2198 = vmatpush1.msra.mxu0 %v948
        %2199 = vmatprep.subr.mxu0 %v955
        %2200 = vmatpush1.msra.mxu0 %v954
        %2201 = vmatprep.subr.mxu0 %v961
        %2202 = vmatpush1.msra.mxu0 %v960
        %2203 = vmatprep.subr.mxu0 %v967
        %2204 = vmatpush1.msra.mxu0 %v966
        %2205 = vmatprep.subr.mxu0 %v973
        %2206 = vmatpush1.msra.mxu0 %v972
        %2207 = vmatprep.subr.mxu0 %v979
        %2208 = vmatpush1.msra.mxu0 %v978
        %2209 = vmatprep.subr.mxu0 %v985
        %2210 = vmatpush1.msra.mxu0 %v984
        %2211 = vmatprep.subr.mxu0 %v991
        %2212 = vmatpush1.msra.mxu0 %v990
        %2213 = vmatprep.subr.mxu0 %v997
        %2214 = vmatpush1.msra.mxu0 %v996
        %2215 = vmatprep.mubr.f32.mxu0 %v2148
        %2216 = vmatmul.mubr.f32.gmra.mrb[0].mxu0 %v2147
        %v2217 = vpop.f32.mrb[0].mxu0
        %v2218 = vadd.f32 %v1018, %v2217
        %v2219 = vpop.f32.mrb[0].mxu0
        %v2220 = vadd.f32 %v1022, %v2219
        %2221 = vdwg.mxu0
        %2222 = vmatprep.subr.mxu0 %v813
        %2223 = vmatpush1.msra.mxu0 %v812
        %2224 = vmatprep.subr.mxu0 %v819
        %2225 = vmatpush1.msra.mxu0 %v818
        %2226 = vmatprep.subr.mxu0 %v825
        %2227 = vmatpush1.msra.mxu0 %v824
        %2228 = vmatprep.subr.mxu0 %v831
        %2229 = vmatpush1.msra.mxu0 %v830
        %2230 = vmatprep.subr.mxu0 %v837
        %2231 = vmatpush1.msra.mxu0 %v836
        %2232 = vmatprep.subr.mxu0 %v843
        %2233 = vmatpush1.msra.mxu0 %v842
        %2234 = vmatprep.subr.mxu0 %v849
        %2235 = vmatpush1.msra.mxu0 %v848
        %2236 = vmatprep.subr.mxu0 %v855
        %2237 = vmatpush1.msra.mxu0 %v854
        %2238 = vmatprep.subr.mxu0 %v861
        %2239 = vmatpush1.msra.mxu0 %v860
        %2240 = vmatprep.subr.mxu0 %v867
        %2241 = vmatpush1.msra.mxu0 %v866
        %2242 = vmatprep.subr.mxu0 %v873
        %2243 = vmatpush1.msra.mxu0 %v872
        %2244 = vmatprep.subr.mxu0 %v879
        %2245 = vmatpush1.msra.mxu0 %v878
        %2246 = vmatprep.subr.mxu0 %v885
        %2247 = vmatpush1.msra.mxu0 %v884
        %2248 = vmatprep.subr.mxu0 %v891
        %2249 = vmatpush1.msra.mxu0 %v890
        %2250 = vmatprep.subr.mxu0 %v897
        %2251 = vmatpush1.msra.mxu0 %v896
        %2252 = vmatprep.subr.mxu0 %v903
        %2253 = vmatpush1.msra.mxu0 %v902
        %2254 = vmatprep.subr.mxu0 %v909
        %2255 = vmatpush1.msra.mxu0 %v908
        %2256 = vmatprep.subr.mxu0 %v915
        %2257 = vmatpush1.msra.mxu0 %v914
        %2258 = vmatprep.subr.mxu0 %v921
        %2259 = vmatpush1.msra.mxu0 %v920
        %2260 = vmatprep.subr.mxu0 %v927
        %2261 = vmatpush1.msra.mxu0 %v926
        %2262 = vmatprep.subr.mxu0 %v933
        %2263 = vmatpush1.msra.mxu0 %v932
        %2264 = vmatprep.subr.mxu0 %v939
        %2265 = vmatpush1.msra.mxu0 %v938
        %2266 = vmatprep.subr.mxu0 %v945
        %2267 = vmatpush1.msra.mxu0 %v944
        %2268 = vmatprep.subr.mxu0 %v951
        %2269 = vmatpush1.msra.mxu0 %v950
        %2270 = vmatprep.subr.mxu0 %v957
        %2271 = vmatpush1.msra.mxu0 %v956
        %2272 = vmatprep.subr.mxu0 %v963
        %2273 = vmatpush1.msra.mxu0 %v962
        %2274 = vmatprep.subr.mxu0 %v969
        %2275 = vmatpush1.msra.mxu0 %v968
        %2276 = vmatprep.subr.mxu0 %v975
        %2277 = vmatpush1.msra.mxu0 %v974
        %2278 = vmatprep.subr.mxu0 %v981
        %2279 = vmatpush1.msra.mxu0 %v980
        %2280 = vmatprep.subr.mxu0 %v987
        %2281 = vmatpush1.msra.mxu0 %v986
        %2282 = vmatprep.subr.mxu0 %v993
        %2283 = vmatpush1.msra.mxu0 %v992
        %2284 = vmatprep.subr.mxu0 %v999
        %2285 = vmatpush1.msra.mxu0 %v998
        %2286 = vmatprep.mubr.f32.mxu0 %v2148
        %2287 = vmatmul.mubr.f32.gmra.mrb[0].mxu0 %v2147
        %v2288 = vpop.f32.mrb[0].mxu0
        %v2289 = vadd.f32 %v1026, %v2288
        %v2290 = vpop.f32.mrb[0].mxu0
        %v2291 = vadd.f32 %v1030, %v2290
        %2292 = vdwg.mxu0
        %2293 = vmatprep.subr.mxu0 %v815
        %2294 = vmatpush1.msra.mxu0 %v814
        %2295 = vmatprep.subr.mxu0 %v821
        %2296 = vmatpush1.msra.mxu0 %v820
        %2297 = vmatprep.subr.mxu0 %v827
        %2298 = vmatpush1.msra.mxu0 %v826
        %2299 = vmatprep.subr.mxu0 %v833
        %2300 = vmatpush1.msra.mxu0 %v832
        %2301 = vmatprep.subr.mxu0 %v839
        %2302 = vmatpush1.msra.mxu0 %v838
        %2303 = vmatprep.subr.mxu0 %v845
        %2304 = vmatpush1.msra.mxu0 %v844
        %2305 = vmatprep.subr.mxu0 %v851
        %2306 = vmatpush1.msra.mxu0 %v850
        %2307 = vmatprep.subr.mxu0 %v857
        %2308 = vmatpush1.msra.mxu0 %v856
        %2309 = vmatprep.subr.mxu0 %v863
        %2310 = vmatpush1.msra.mxu0 %v862
        %2311 = vmatprep.subr.mxu0 %v869
        %2312 = vmatpush1.msra.mxu0 %v868
        %2313 = vmatprep.subr.mxu0 %v875
        %2314 = vmatpush1.msra.mxu0 %v874
        %2315 = vmatprep.subr.mxu0 %v881
        %2316 = vmatpush1.msra.mxu0 %v880
        %2317 = vmatprep.subr.mxu0 %v887
        %2318 = vmatpush1.msra.mxu0 %v886
        %2319 = vmatprep.subr.mxu0 %v893
        %2320 = vmatpush1.msra.mxu0 %v892
        %2321 = vmatprep.subr.mxu0 %v899
        %2322 = vmatpush1.msra.mxu0 %v898
        %2323 = vmatprep.subr.mxu0 %v905
        %2324 = vmatpush1.msra.mxu0 %v904
        %2325 = vmatprep.subr.mxu0 %v911
        %2326 = vmatpush1.msra.mxu0 %v910
        %2327 = vmatprep.subr.mxu0 %v917
        %2328 = vmatpush1.msra.mxu0 %v916
        %2329 = vmatprep.subr.mxu0 %v923
        %2330 = vmatpush1.msra.mxu0 %v922
        %2331 = vmatprep.subr.mxu0 %v929
        %2332 = vmatpush1.msra.mxu0 %v928
        %2333 = vmatprep.subr.mxu0 %v935
        %2334 = vmatpush1.msra.mxu0 %v934
        %2335 = vmatprep.subr.mxu0 %v941
        %2336 = vmatpush1.msra.mxu0 %v940
        %2337 = vmatprep.subr.mxu0 %v947
        %2338 = vmatpush1.msra.mxu0 %v946
        %2339 = vmatprep.subr.mxu0 %v953
        %2340 = vmatpush1.msra.mxu0 %v952
        %2341 = vmatprep.subr.mxu0 %v959
        %2342 = vmatpush1.msra.mxu0 %v958
        %2343 = vmatprep.subr.mxu0 %v965
        %2344 = vmatpush1.msra.mxu0 %v964
        %2345 = vmatprep.subr.mxu0 %v971
        %2346 = vmatpush1.msra.mxu0 %v970
        %2347 = vmatprep.subr.mxu0 %v977
        %2348 = vmatpush1.msra.mxu0 %v976
        %2349 = vmatprep.subr.mxu0 %v983
        %2350 = vmatpush1.msra.mxu0 %v982
        %2351 = vmatprep.subr.mxu0 %v989
        %2352 = vmatpush1.msra.mxu0 %v988
        %2353 = vmatprep.subr.mxu0 %v995
        %2354 = vmatpush1.msra.mxu0 %v994
        %2355 = vmatprep.subr.mxu0 %v1001
        %2356 = vmatpush1.msra.mxu0 %v1000
        %2357 = vmatprep.mubr.f32.mxu0 %v2148
        %2358 = vmatmul.mubr.f32.gmra.mrb[0].mxu0 %v2147
        %v2359 = vpop.f32.mrb[0].mxu0
        %v2360 = vadd.f32 %v1034, %v2359
        %v2361 = vpop.f32.mrb[0].mxu0
        %v2362 = vadd.f32 %v1038, %v2361
        %2363 = vdwg.mxu0
        %v2366 = vrot.slane %v2218, 4
        %v2367 = vrot.slane %v2220, 4
        %v2370 = vadd.f32 %v645, %v2366
        %v2371 = vadd.f32 %v647, %v2367
        %v2372 = vxor.u32 %v2370, 2147483648
        %v2373 = vxor.u32 %v2371, 2147483648
        %v2374 = vmul.f32 %v2372, 1.442695
        %v2375 = vpow.pop %v2374
        %v2376 = vmul.f32 %v2373, 1.442695
        %v2377 = vpow.pop %v2376
        %v2378 = vadd.f32 %v2375, 1.0
        %v2379 = vadd.f32 %v2377, 1.0
        %v2380 = vrcp.pop %v2378
        %v2381 = vmul.f32 1.0, %v2380
        %v2382 = vrcp.pop %v2379
        %v2383 = vmul.f32 1.0, %v2382
        %v2386 = vrot.slane %v2289, 4
        %v2387 = vrot.slane %v2291, 4
        %v2390 = vadd.f32 %v722, %v2386
        %v2391 = vadd.f32 %v724, %v2387
        %v2392 = vxor.u32 %v2390, 2147483648
        %v2393 = vxor.u32 %v2391, 2147483648
        %v2394 = vmul.f32 %v2392, 1.442695
        %v2395 = vpow.pop %v2394
        %v2396 = vmul.f32 %v2393, 1.442695
        %v2397 = vpow.pop %v2396
        %v2398 = vadd.f32 %v2395, 1.0
        %v2399 = vadd.f32 %v2397, 1.0
        %v2400 = vrcp.pop %v2398
        %v2401 = vmul.f32 1.0, %v2400
        %v2402 = vrcp.pop %v2399
        %v2403 = vmul.f32 1.0, %v2402
        %v2406 = vrot.slane %v2360, 4
        %v2407 = vrot.slane %v2362, 4
        %v2410 = vmul.f32 %v2381, %v2406
        %v2411 = vmul.f32 %v2383, %v2407
        %v2412 = vadd.f32 %v799, %v2410
        %v2413 = vadd.f32 %v801, %v2411
        %v2414 = vtanh.pop %v2412
        %v2415 = vtanh.pop %v2413
        %v2416 = vsub.f32 1.0, %v2401
        %v2417 = vsub.f32 1.0, %v2403
        %v2418 = vmul.f32 %v2416, %v2414
        %v2419 = vmul.f32 %v2417, %v2415
        %v2420 = vrot.slane %v2143, 7
        %v2421 = vrot.slane %v2144, 7
        %v2424 = vmul.f32 %v2401, %v2420
        %v2425 = vmul.f32 %v2403, %v2421
        %v2426 = vadd.f32 %v2418, %v2424
        %v2427 = vadd.f32 %v2419, %v2425
        %v2430 = vrot.slane %v2426, 4
        %v2431 = vrot.slane %v2427, 4
        %2434 = vmatprep.subr.mxu0 %v811
        %2435 = vmatpush1.msra.mxu0 %v810
        %2436 = vmatprep.subr.mxu0 %v817
        %2437 = vmatpush1.msra.mxu0 %v816
        %2438 = vmatprep.subr.mxu0 %v823
        %2439 = vmatpush1.msra.mxu0 %v822
        %2440 = vmatprep.subr.mxu0 %v829
        %2441 = vmatpush1.msra.mxu0 %v828
        %2442 = vmatprep.subr.mxu0 %v835
        %2443 = vmatpush1.msra.mxu0 %v834
        %2444 = vmatprep.subr.mxu0 %v841
        %2445 = vmatpush1.msra.mxu0 %v840
        %2446 = vmatprep.subr.mxu0 %v847
        %2447 = vmatpush1.msra.mxu0 %v846
        %2448 = vmatprep.subr.mxu0 %v853
        %2449 = vmatpush1.msra.mxu0 %v852
        %2450 = vmatprep.subr.mxu0 %v859
        %2451 = vmatpush1.msra.mxu0 %v858
        %2452 = vmatprep.subr.mxu0 %v865
        %2453 = vmatpush1.msra.mxu0 %v864
        %2454 = vmatprep.subr.mxu0 %v871
        %2455 = vmatpush1.msra.mxu0 %v870
        %2456 = vmatprep.subr.mxu0 %v877
        %2457 = vmatpush1.msra.mxu0 %v876
        %2458 = vmatprep.subr.mxu0 %v883
        %2459 = vmatpush1.msra.mxu0 %v882
        %2460 = vmatprep.subr.mxu0 %v889
        %2461 = vmatpush1.msra.mxu0 %v888
        %2462 = vmatprep.subr.mxu0 %v895
        %2463 = vmatpush1.msra.mxu0 %v894
        %2464 = vmatprep.subr.mxu0 %v901
        %2465 = vmatpush1.msra.mxu0 %v900
        %2466 = vmatprep.subr.mxu0 %v907
        %2467 = vmatpush1.msra.mxu0 %v906
        %2468 = vmatprep.subr.mxu0 %v913
        %2469 = vmatpush1.msra.mxu0 %v912
        %2470 = vmatprep.subr.mxu0 %v919
        %2471 = vmatpush1.msra.mxu0 %v918
        %2472 = vmatprep.subr.mxu0 %v925
        %2473 = vmatpush1.msra.mxu0 %v924
        %2474 = vmatprep.subr.mxu0 %v931
        %2475 = vmatpush1.msra.mxu0 %v930
        %2476 = vmatprep.subr.mxu0 %v937
        %2477 = vmatpush1.msra.mxu0 %v936
        %2478 = vmatprep.subr.mxu0 %v943
        %2479 = vmatpush1.msra.mxu0 %v942
        %2480 = vmatprep.subr.mxu0 %v949
        %2481 = vmatpush1.msra.mxu0 %v948
        %2482 = vmatprep.subr.mxu0 %v955
        %2483 = vmatpush1.msra.mxu0 %v954
        %2484 = vmatprep.subr.mxu0 %v961
        %2485 = vmatpush1.msra.mxu0 %v960
        %2486 = vmatprep.subr.mxu0 %v967
        %2487 = vmatpush1.msra.mxu0 %v966
        %2488 = vmatprep.subr.mxu0 %v973
        %2489 = vmatpush1.msra.mxu0 %v972
        %2490 = vmatprep.subr.mxu0 %v979
        %2491 = vmatpush1.msra.mxu0 %v978
        %2492 = vmatprep.subr.mxu0 %v985
        %2493 = vmatpush1.msra.mxu0 %v984
        %2494 = vmatprep.subr.mxu0 %v991
        %2495 = vmatpush1.msra.mxu0 %v990
        %2496 = vmatprep.subr.mxu0 %v997
        %2497 = vmatpush1.msra.mxu0 %v996
        %2498 = vmatprep.mubr.f32.mxu0 %v2431
        %2499 = vmatmul.mubr.f32.gmra.mrb[0].mxu0 %v2430
        %v2500 = vpop.f32.mrb[0].mxu0
        %v2501 = vadd.f32 %v1018, %v2500
        %v2502 = vpop.f32.mrb[0].mxu0
        %v2503 = vadd.f32 %v1022, %v2502
        %2504 = vdwg.mxu0
        %2505 = vmatprep.subr.mxu0 %v813
        %2506 = vmatpush1.msra.mxu0 %v812
        %2507 = vmatprep.subr.mxu0 %v819
        %2508 = vmatpush1.msra.mxu0 %v818
        %2509 = vmatprep.subr.mxu0 %v825
        %2510 = vmatpush1.msra.mxu0 %v824
        %2511 = vmatprep.subr.mxu0 %v831
        %2512 = vmatpush1.msra.mxu0 %v830
        %2513 = vmatprep.subr.mxu0 %v837
        %2514 = vmatpush1.msra.mxu0 %v836
        %2515 = vmatprep.subr.mxu0 %v843
        %2516 = vmatpush1.msra.mxu0 %v842
        %2517 = vmatprep.subr.mxu0 %v849
        %2518 = vmatpush1.msra.mxu0 %v848
        %2519 = vmatprep.subr.mxu0 %v855
        %2520 = vmatpush1.msra.mxu0 %v854
        %2521 = vmatprep.subr.mxu0 %v861
        %2522 = vmatpush1.msra.mxu0 %v860
        %2523 = vmatprep.subr.mxu0 %v867
        %2524 = vmatpush1.msra.mxu0 %v866
        %2525 = vmatprep.subr.mxu0 %v873
        %2526 = vmatpush1.msra.mxu0 %v872
        %2527 = vmatprep.subr.mxu0 %v879
        %2528 = vmatpush1.msra.mxu0 %v878
        %2529 = vmatprep.subr.mxu0 %v885
        %2530 = vmatpush1.msra.mxu0 %v884
        %2531 = vmatprep.subr.mxu0 %v891
        %2532 = vmatpush1.msra.mxu0 %v890
        %2533 = vmatprep.subr.mxu0 %v897
        %2534 = vmatpush1.msra.mxu0 %v896
        %2535 = vmatprep.subr.mxu0 %v903
        %2536 = vmatpush1.msra.mxu0 %v902
        %2537 = vmatprep.subr.mxu0 %v909
        %2538 = vmatpush1.msra.mxu0 %v908
        %2539 = vmatprep.subr.mxu0 %v915
        %2540 = vmatpush1.msra.mxu0 %v914
        %2541 = vmatprep.subr.mxu0 %v921
        %2542 = vmatpush1.msra.mxu0 %v920
        %2543 = vmatprep.subr.mxu0 %v927
        %2544 = vmatpush1.msra.mxu0 %v926
        %2545 = vmatprep.subr.mxu0 %v933
        %2546 = vmatpush1.msra.mxu0 %v932
        %2547 = vmatprep.subr.mxu0 %v939
        %2548 = vmatpush1.msra.mxu0 %v938
        %2549 = vmatprep.subr.mxu0 %v945
        %2550 = vmatpush1.msra.mxu0 %v944
        %2551 = vmatprep.subr.mxu0 %v951
        %2552 = vmatpush1.msra.mxu0 %v950
        %2553 = vmatprep.subr.mxu0 %v957
        %2554 = vmatpush1.msra.mxu0 %v956
        %2555 = vmatprep.subr.mxu0 %v963
        %2556 = vmatpush1.msra.mxu0 %v962
        %2557 = vmatprep.subr.mxu0 %v969
        %2558 = vmatpush1.msra.mxu0 %v968
        %2559 = vmatprep.subr.mxu0 %v975
        %2560 = vmatpush1.msra.mxu0 %v974
        %2561 = vmatprep.subr.mxu0 %v981
        %2562 = vmatpush1.msra.mxu0 %v980
        %2563 = vmatprep.subr.mxu0 %v987
        %2564 = vmatpush1.msra.mxu0 %v986
        %2565 = vmatprep.subr.mxu0 %v993
        %2566 = vmatpush1.msra.mxu0 %v992
        %2567 = vmatprep.subr.mxu0 %v999
        %2568 = vmatpush1.msra.mxu0 %v998
        %2569 = vmatprep.mubr.f32.mxu0 %v2431
        %2570 = vmatmul.mubr.f32.gmra.mrb[0].mxu0 %v2430
        %v2571 = vpop.f32.mrb[0].mxu0
        %v2572 = vadd.f32 %v1026, %v2571
        %v2573 = vpop.f32.mrb[0].mxu0
        %v2574 = vadd.f32 %v1030, %v2573
        %2575 = vdwg.mxu0
        %2576 = vmatprep.subr.mxu0 %v815
        %2577 = vmatpush1.msra.mxu0 %v814
        %2578 = vmatprep.subr.mxu0 %v821
        %2579 = vmatpush1.msra.mxu0 %v820
        %2580 = vmatprep.subr.mxu0 %v827
        %2581 = vmatpush1.msra.mxu0 %v826
        %2582 = vmatprep.subr.mxu0 %v833
        %2583 = vmatpush1.msra.mxu0 %v832
        %2584 = vmatprep.subr.mxu0 %v839
        %2585 = vmatpush1.msra.mxu0 %v838
        %2586 = vmatprep.subr.mxu0 %v845
        %2587 = vmatpush1.msra.mxu0 %v844
        %2588 = vmatprep.subr.mxu0 %v851
        %2589 = vmatpush1.msra.mxu0 %v850
        %2590 = vmatprep.subr.mxu0 %v857
        %2591 = vmatpush1.msra.mxu0 %v856
        %2592 = vmatprep.subr.mxu0 %v863
        %2593 = vmatpush1.msra.mxu0 %v862
        %2594 = vmatprep.subr.mxu0 %v869
        %2595 = vmatpush1.msra.mxu0 %v868
        %2596 = vmatprep.subr.mxu0 %v875
        %2597 = vmatpush1.msra.mxu0 %v874
        %2598 = vmatprep.subr.mxu0 %v881
        %2599 = vmatpush1.msra.mxu0 %v880
        %2600 = vmatprep.subr.mxu0 %v887
        %2601 = vmatpush1.msra.mxu0 %v886
        %2602 = vmatprep.subr.mxu0 %v893
        %2603 = vmatpush1.msra.mxu0 %v892
        %2604 = vmatprep.subr.mxu0 %v899
        %2605 = vmatpush1.msra.mxu0 %v898
        %2606 = vmatprep.subr.mxu0 %v905
        %2607 = vmatpush1.msra.mxu0 %v904
        %2608 = vmatprep.subr.mxu0 %v911
        %2609 = vmatpush1.msra.mxu0 %v910
        %2610 = vmatprep.subr.mxu0 %v917
        %2611 = vmatpush1.msra.mxu0 %v916
        %2612 = vmatprep.subr.mxu0 %v923
        %2613 = vmatpush1.msra.mxu0 %v922
        %2614 = vmatprep.subr.mxu0 %v929
        %2615 = vmatpush1.msra.mxu0 %v928
        %2616 = vmatprep.subr.mxu0 %v935
        %2617 = vmatpush1.msra.mxu0 %v934
        %2618 = vmatprep.subr.mxu0 %v941
        %2619 = vmatpush1.msra.mxu0 %v940
        %2620 = vmatprep.subr.mxu0 %v947
        %2621 = vmatpush1.msra.mxu0 %v946
        %2622 = vmatprep.subr.mxu0 %v953
        %2623 = vmatpush1.msra.mxu0 %v952
        %2624 = vmatprep.subr.mxu0 %v959
        %2625 = vmatpush1.msra.mxu0 %v958
        %2626 = vmatprep.subr.mxu0 %v965
        %2627 = vmatpush1.msra.mxu0 %v964
        %2628 = vmatprep.subr.mxu0 %v971
        %2629 = vmatpush1.msra.mxu0 %v970
        %2630 = vmatprep.subr.mxu0 %v977
        %2631 = vmatpush1.msra.mxu0 %v976
        %2632 = vmatprep.subr.mxu0 %v983
        %2633 = vmatpush1.msra.mxu0 %v982
        %2634 = vmatprep.subr.mxu0 %v989
        %2635 = vmatpush1.msra.mxu0 %v988
        %2636 = vmatprep.subr.mxu0 %v995
        %2637 = vmatpush1.msra.mxu0 %v994
        %2638 = vmatprep.subr.mxu0 %v1001
        %2639 = vmatpush1.msra.mxu0 %v1000
        %2640 = vmatprep.mubr.f32.mxu0 %v2431
        %2641 = vmatmul.mubr.f32.gmra.mrb[0].mxu0 %v2430
        %v2642 = vpop.f32.mrb[0].mxu0
        %v2643 = vadd.f32 %v1034, %v2642
        %v2644 = vpop.f32.mrb[0].mxu0
        %v2645 = vadd.f32 %v1038, %v2644
        %2646 = vdwg.mxu0
        %v2649 = vrot.slane %v2501, 3
        %v2650 = vrot.slane %v2503, 3
        %v2653 = vadd.f32 %v645, %v2649
        %v2654 = vadd.f32 %v647, %v2650
        %v2655 = vxor.u32 %v2653, 2147483648
        %v2656 = vxor.u32 %v2654, 2147483648
        %v2657 = vmul.f32 %v2655, 1.442695
        %v2658 = vpow.pop %v2657
        %v2659 = vmul.f32 %v2656, 1.442695
        %v2660 = vpow.pop %v2659
        %v2661 = vadd.f32 %v2658, 1.0
        %v2662 = vadd.f32 %v2660, 1.0
        %v2663 = vrcp.pop %v2661
        %v2664 = vmul.f32 1.0, %v2663
        %v2665 = vrcp.pop %v2662
        %v2666 = vmul.f32 1.0, %v2665
        %v2669 = vrot.slane %v2572, 3
        %v2670 = vrot.slane %v2574, 3
        %v2673 = vadd.f32 %v722, %v2669
        %v2674 = vadd.f32 %v724, %v2670
        %v2675 = vxor.u32 %v2673, 2147483648
        %v2676 = vxor.u32 %v2674, 2147483648
        %v2677 = vmul.f32 %v2675, 1.442695
        %v2678 = vpow.pop %v2677
        %v2679 = vmul.f32 %v2676, 1.442695
        %v2680 = vpow.pop %v2679
        %v2681 = vadd.f32 %v2678, 1.0
        %v2682 = vadd.f32 %v2680, 1.0
        %v2683 = vrcp.pop %v2681
        %v2684 = vmul.f32 1.0, %v2683
        %v2685 = vrcp.pop %v2682
        %v2686 = vmul.f32 1.0, %v2685
        %v2689 = vrot.slane %v2643, 3
        %v2690 = vrot.slane %v2645, 3
        %v2693 = vmul.f32 %v2664, %v2689
        %v2694 = vmul.f32 %v2666, %v2690
        %v2695 = vadd.f32 %v799, %v2693
        %v2696 = vadd.f32 %v801, %v2694
        %v2697 = vtanh.pop %v2695
        %v2698 = vtanh.pop %v2696
        %v2699 = vsub.f32 1.0, %v2684
        %v2700 = vsub.f32 1.0, %v2686
        %v2701 = vmul.f32 %v2699, %v2697
        %v2702 = vmul.f32 %v2700, %v2698
        %v2703 = vrot.slane %v2426, 7
        %v2704 = vrot.slane %v2427, 7
        %v2707 = vmul.f32 %v2684, %v2703
        %v2708 = vmul.f32 %v2686, %v2704
        %v2709 = vadd.f32 %v2701, %v2707
        %v2710 = vadd.f32 %v2702, %v2708
        %v2713 = vrot.slane %v2709, 5
        %v2714 = vrot.slane %v2710, 5
        %2717 = vmatprep.subr.mxu0 %v811
        %2718 = vmatpush1.msra.mxu0 %v810
        %2719 = vmatprep.subr.mxu0 %v817
        %2720 = vmatpush1.msra.mxu0 %v816
        %2721 = vmatprep.subr.mxu0 %v823
        %2722 = vmatpush1.msra.mxu0 %v822
        %2723 = vmatprep.subr.mxu0 %v829
        %2724 = vmatpush1.msra.mxu0 %v828
        %2725 = vmatprep.subr.mxu0 %v835
        %2726 = vmatpush1.msra.mxu0 %v834
        %2727 = vmatprep.subr.mxu0 %v841
        %2728 = vmatpush1.msra.mxu0 %v840
        %2729 = vmatprep.subr.mxu0 %v847
        %2730 = vmatpush1.msra.mxu0 %v846
        %2731 = vmatprep.subr.mxu0 %v853
        %2732 = vmatpush1.msra.mxu0 %v852
        %2733 = vmatprep.subr.mxu0 %v859
        %2734 = vmatpush1.msra.mxu0 %v858
        %2735 = vmatprep.subr.mxu0 %v865
        %2736 = vmatpush1.msra.mxu0 %v864
        %2737 = vmatprep.subr.mxu0 %v871
        %2738 = vmatpush1.msra.mxu0 %v870
        %2739 = vmatprep.subr.mxu0 %v877
        %2740 = vmatpush1.msra.mxu0 %v876
        %2741 = vmatprep.subr.mxu0 %v883
        %2742 = vmatpush1.msra.mxu0 %v882
        %2743 = vmatprep.subr.mxu0 %v889
        %2744 = vmatpush1.msra.mxu0 %v888
        %2745 = vmatprep.subr.mxu0 %v895
        %2746 = vmatpush1.msra.mxu0 %v894
        %2747 = vmatprep.subr.mxu0 %v901
        %2748 = vmatpush1.msra.mxu0 %v900
        %2749 = vmatprep.subr.mxu0 %v907
        %2750 = vmatpush1.msra.mxu0 %v906
        %2751 = vmatprep.subr.mxu0 %v913
        %2752 = vmatpush1.msra.mxu0 %v912
        %2753 = vmatprep.subr.mxu0 %v919
        %2754 = vmatpush1.msra.mxu0 %v918
        %2755 = vmatprep.subr.mxu0 %v925
        %2756 = vmatpush1.msra.mxu0 %v924
        %2757 = vmatprep.subr.mxu0 %v931
        %2758 = vmatpush1.msra.mxu0 %v930
        %2759 = vmatprep.subr.mxu0 %v937
        %2760 = vmatpush1.msra.mxu0 %v936
        %2761 = vmatprep.subr.mxu0 %v943
        %2762 = vmatpush1.msra.mxu0 %v942
        %2763 = vmatprep.subr.mxu0 %v949
        %2764 = vmatpush1.msra.mxu0 %v948
        %2765 = vmatprep.subr.mxu0 %v955
        %2766 = vmatpush1.msra.mxu0 %v954
        %2767 = vmatprep.subr.mxu0 %v961
        %2768 = vmatpush1.msra.mxu0 %v960
        %2769 = vmatprep.subr.mxu0 %v967
        %2770 = vmatpush1.msra.mxu0 %v966
        %2771 = vmatprep.subr.mxu0 %v973
        %2772 = vmatpush1.msra.mxu0 %v972
        %2773 = vmatprep.subr.mxu0 %v979
        %2774 = vmatpush1.msra.mxu0 %v978
        %2775 = vmatprep.subr.mxu0 %v985
        %2776 = vmatpush1.msra.mxu0 %v984
        %2777 = vmatprep.subr.mxu0 %v991
        %2778 = vmatpush1.msra.mxu0 %v990
        %2779 = vmatprep.subr.mxu0 %v997
        %2780 = vmatpush1.msra.mxu0 %v996
        %2781 = vmatprep.mubr.f32.mxu0 %v2714
        %2782 = vmatmul.mubr.f32.gmra.mrb[0].mxu0 %v2713
        %v2783 = vpop.f32.mrb[0].mxu0
        %v2784 = vadd.f32 %v1018, %v2783
        %v2785 = vpop.f32.mrb[0].mxu0
        %v2786 = vadd.f32 %v1022, %v2785
        %2787 = vdwg.mxu0
        %2788 = vmatprep.subr.mxu0 %v813
        %2789 = vmatpush1.msra.mxu0 %v812
        %2790 = vmatprep.subr.mxu0 %v819
        %2791 = vmatpush1.msra.mxu0 %v818
        %2792 = vmatprep.subr.mxu0 %v825
        %2793 = vmatpush1.msra.mxu0 %v824
        %2794 = vmatprep.subr.mxu0 %v831
        %2795 = vmatpush1.msra.mxu0 %v830
        %2796 = vmatprep.subr.mxu0 %v837
        %2797 = vmatpush1.msra.mxu0 %v836
        %2798 = vmatprep.subr.mxu0 %v843
        %2799 = vmatpush1.msra.mxu0 %v842
        %2800 = vmatprep.subr.mxu0 %v849
        %2801 = vmatpush1.msra.mxu0 %v848
        %2802 = vmatprep.subr.mxu0 %v855
        %2803 = vmatpush1.msra.mxu0 %v854
        %2804 = vmatprep.subr.mxu0 %v861
        %2805 = vmatpush1.msra.mxu0 %v860
        %2806 = vmatprep.subr.mxu0 %v867
        %2807 = vmatpush1.msra.mxu0 %v866
        %2808 = vmatprep.subr.mxu0 %v873
        %2809 = vmatpush1.msra.mxu0 %v872
        %2810 = vmatprep.subr.mxu0 %v879
        %2811 = vmatpush1.msra.mxu0 %v878
        %2812 = vmatprep.subr.mxu0 %v885
        %2813 = vmatpush1.msra.mxu0 %v884
        %2814 = vmatprep.subr.mxu0 %v891
        %2815 = vmatpush1.msra.mxu0 %v890
        %2816 = vmatprep.subr.mxu0 %v897
        %2817 = vmatpush1.msra.mxu0 %v896
        %2818 = vmatprep.subr.mxu0 %v903
        %2819 = vmatpush1.msra.mxu0 %v902
        %2820 = vmatprep.subr.mxu0 %v909
        %2821 = vmatpush1.msra.mxu0 %v908
        %2822 = vmatprep.subr.mxu0 %v915
        %2823 = vmatpush1.msra.mxu0 %v914
        %2824 = vmatprep.subr.mxu0 %v921
        %2825 = vmatpush1.msra.mxu0 %v920
        %2826 = vmatprep.subr.mxu0 %v927
        %2827 = vmatpush1.msra.mxu0 %v926
        %2828 = vmatprep.subr.mxu0 %v933
        %2829 = vmatpush1.msra.mxu0 %v932
        %2830 = vmatprep.subr.mxu0 %v939
        %2831 = vmatpush1.msra.mxu0 %v938
        %2832 = vmatprep.subr.mxu0 %v945
        %2833 = vmatpush1.msra.mxu0 %v944
        %2834 = vmatprep.subr.mxu0 %v951
        %2835 = vmatpush1.msra.mxu0 %v950
        %2836 = vmatprep.subr.mxu0 %v957
        %2837 = vmatpush1.msra.mxu0 %v956
        %2838 = vmatprep.subr.mxu0 %v963
        %2839 = vmatpush1.msra.mxu0 %v962
        %2840 = vmatprep.subr.mxu0 %v969
        %2841 = vmatpush1.msra.mxu0 %v968
        %2842 = vmatprep.subr.mxu0 %v975
        %2843 = vmatpush1.msra.mxu0 %v974
        %2844 = vmatprep.subr.mxu0 %v981
        %2845 = vmatpush1.msra.mxu0 %v980
        %2846 = vmatprep.subr.mxu0 %v987
        %2847 = vmatpush1.msra.mxu0 %v986
        %2848 = vmatprep.subr.mxu0 %v993
        %2849 = vmatpush1.msra.mxu0 %v992
        %2850 = vmatprep.subr.mxu0 %v999
        %2851 = vmatpush1.msra.mxu0 %v998
        %2852 = vmatprep.mubr.f32.mxu0 %v2714
        %2853 = vmatmul.mubr.f32.gmra.mrb[0].mxu0 %v2713
        %v2854 = vpop.f32.mrb[0].mxu0
        %v2855 = vadd.f32 %v1026, %v2854
        %v2856 = vpop.f32.mrb[0].mxu0
        %v2857 = vadd.f32 %v1030, %v2856
        %2858 = vdwg.mxu0
        %2859 = vmatprep.subr.mxu0 %v815
        %2860 = vmatpush1.msra.mxu0 %v814
        %2861 = vmatprep.subr.mxu0 %v821
        %2862 = vmatpush1.msra.mxu0 %v820
        %2863 = vmatprep.subr.mxu0 %v827
        %2864 = vmatpush1.msra.mxu0 %v826
        %2865 = vmatprep.subr.mxu0 %v833
        %2866 = vmatpush1.msra.mxu0 %v832
        %2867 = vmatprep.subr.mxu0 %v839
        %2868 = vmatpush1.msra.mxu0 %v838
        %2869 = vmatprep.subr.mxu0 %v845
        %2870 = vmatpush1.msra.mxu0 %v844
        %2871 = vmatprep.subr.mxu0 %v851
        %2872 = vmatpush1.msra.mxu0 %v850
        %2873 = vmatprep.subr.mxu0 %v857
        %2874 = vmatpush1.msra.mxu0 %v856
        %2875 = vmatprep.subr.mxu0 %v863
        %2876 = vmatpush1.msra.mxu0 %v862
        %2877 = vmatprep.subr.mxu0 %v869
        %2878 = vmatpush1.msra.mxu0 %v868
        %2879 = vmatprep.subr.mxu0 %v875
        %2880 = vmatpush1.msra.mxu0 %v874
        %2881 = vmatprep.subr.mxu0 %v881
        %2882 = vmatpush1.msra.mxu0 %v880
        %2883 = vmatprep.subr.mxu0 %v887
        %2884 = vmatpush1.msra.mxu0 %v886
        %2885 = vmatprep.subr.mxu0 %v893
        %2886 = vmatpush1.msra.mxu0 %v892
        %2887 = vmatprep.subr.mxu0 %v899
        %2888 = vmatpush1.msra.mxu0 %v898
        %2889 = vmatprep.subr.mxu0 %v905
        %2890 = vmatpush1.msra.mxu0 %v904
        %2891 = vmatprep.subr.mxu0 %v911
        %2892 = vmatpush1.msra.mxu0 %v910
        %2893 = vmatprep.subr.mxu0 %v917
        %2894 = vmatpush1.msra.mxu0 %v916
        %2895 = vmatprep.subr.mxu0 %v923
        %2896 = vmatpush1.msra.mxu0 %v922
        %2897 = vmatprep.subr.mxu0 %v929
        %2898 = vmatpush1.msra.mxu0 %v928
        %2899 = vmatprep.subr.mxu0 %v935
        %2900 = vmatpush1.msra.mxu0 %v934
        %2901 = vmatprep.subr.mxu0 %v941
        %2902 = vmatpush1.msra.mxu0 %v940
        %2903 = vmatprep.subr.mxu0 %v947
        %2904 = vmatpush1.msra.mxu0 %v946
        %2905 = vmatprep.subr.mxu0 %v953
        %2906 = vmatpush1.msra.mxu0 %v952
        %2907 = vmatprep.subr.mxu0 %v959
        %2908 = vmatpush1.msra.mxu0 %v958
        %2909 = vmatprep.subr.mxu0 %v965
        %2910 = vmatpush1.msra.mxu0 %v964
        %2911 = vmatprep.subr.mxu0 %v971
        %2912 = vmatpush1.msra.mxu0 %v970
        %2913 = vmatprep.subr.mxu0 %v977
        %2914 = vmatpush1.msra.mxu0 %v976
        %2915 = vmatprep.subr.mxu0 %v983
        %2916 = vmatpush1.msra.mxu0 %v982
        %2917 = vmatprep.subr.mxu0 %v989
        %2918 = vmatpush1.msra.mxu0 %v988
        %2919 = vmatprep.subr.mxu0 %v995
        %2920 = vmatpush1.msra.mxu0 %v994
        %2921 = vmatprep.subr.mxu0 %v1001
        %2922 = vmatpush1.msra.mxu0 %v1000
        %2923 = vmatprep.mubr.f32.mxu0 %v2714
        %2924 = vmatmul.mubr.f32.gmra.mrb[0].mxu0 %v2713
        %v2925 = vpop.f32.mrb[0].mxu0
        %v2926 = vadd.f32 %v1034, %v2925
        %v2927 = vpop.f32.mrb[0].mxu0
        %v2928 = vadd.f32 %v1038, %v2927
        %2929 = vdwg.mxu0
        %v2932 = vrot.slane %v2784, 2
        %v2933 = vrot.slane %v2786, 2
        %v2936 = vadd.f32 %v645, %v2932
        %v2937 = vadd.f32 %v647, %v2933
        %v2938 = vxor.u32 %v2936, 2147483648
        %v2939 = vxor.u32 %v2937, 2147483648
        %v2940 = vmul.f32 %v2938, 1.442695
        %v2941 = vpow.pop %v2940
        %v2942 = vmul.f32 %v2939, 1.442695
        %v2943 = vpow.pop %v2942
        %v2944 = vadd.f32 %v2941, 1.0
        %v2945 = vadd.f32 %v2943, 1.0
        %v2946 = vrcp.pop %v2944
        %v2947 = vmul.f32 1.0, %v2946
        %v2948 = vrcp.pop %v2945
        %v2949 = vmul.f32 1.0, %v2948
        %v2952 = vrot.slane %v2855, 2
        %v2953 = vrot.slane %v2857, 2
        %v2956 = vadd.f32 %v722, %v2952
        %v2957 = vadd.f32 %v724, %v2953
        %v2958 = vxor.u32 %v2956, 2147483648
        %v2959 = vxor.u32 %v2957, 2147483648
        %v2960 = vmul.f32 %v2958, 1.442695
        %v2961 = vpow.pop %v2960
        %v2962 = vmul.f32 %v2959, 1.442695
        %v2963 = vpow.pop %v2962
        %v2964 = vadd.f32 %v2961, 1.0
        %v2965 = vadd.f32 %v2963, 1.0
        %v2966 = vrcp.pop %v2964
        %v2967 = vmul.f32 1.0, %v2966
        %v2968 = vrcp.pop %v2965
        %v2969 = vmul.f32 1.0, %v2968
        %v2972 = vrot.slane %v2926, 2
        %v2973 = vrot.slane %v2928, 2
        %v2976 = vmul.f32 %v2947, %v2972
        %v2977 = vmul.f32 %v2949, %v2973
        %v2978 = vadd.f32 %v799, %v2976
        %v2979 = vadd.f32 %v801, %v2977
        %v2980 = vtanh.pop %v2978
        %v2981 = vtanh.pop %v2979
        %v2982 = vsub.f32 1.0, %v2967
        %v2983 = vsub.f32 1.0, %v2969
        %v2984 = vmul.f32 %v2982, %v2980
        %v2985 = vmul.f32 %v2983, %v2981
        %v2986 = vrot.slane %v2709, 7
        %v2987 = vrot.slane %v2710, 7
        %v2990 = vmul.f32 %v2967, %v2986
        %v2991 = vmul.f32 %v2969, %v2987
        %v2992 = vadd.f32 %v2984, %v2990
        %v2993 = vadd.f32 %v2985, %v2991
        %v2996 = vrot.slane %v2992, 6
        %v2997 = vrot.slane %v2993, 6
        %3000 = vmatprep.subr.mxu0 %v811
        %3001 = vmatpush1.msra.mxu0 %v810
        %3002 = vmatprep.subr.mxu0 %v817
        %3003 = vmatpush1.msra.mxu0 %v816
        %3004 = vmatprep.subr.mxu0 %v823
        %3005 = vmatpush1.msra.mxu0 %v822
        %3006 = vmatprep.subr.mxu0 %v829
        %3007 = vmatpush1.msra.mxu0 %v828
        %3008 = vmatprep.subr.mxu0 %v835
        %3009 = vmatpush1.msra.mxu0 %v834
        %3010 = vmatprep.subr.mxu0 %v841
        %3011 = vmatpush1.msra.mxu0 %v840
        %3012 = vmatprep.subr.mxu0 %v847
        %3013 = vmatpush1.msra.mxu0 %v846
        %3014 = vmatprep.subr.mxu0 %v853
        %3015 = vmatpush1.msra.mxu0 %v852
        %3016 = vmatprep.subr.mxu0 %v859
        %3017 = vmatpush1.msra.mxu0 %v858
        %3018 = vmatprep.subr.mxu0 %v865
        %3019 = vmatpush1.msra.mxu0 %v864
        %3020 = vmatprep.subr.mxu0 %v871
        %3021 = vmatpush1.msra.mxu0 %v870
        %3022 = vmatprep.subr.mxu0 %v877
        %3023 = vmatpush1.msra.mxu0 %v876
        %3024 = vmatprep.subr.mxu0 %v883
        %3025 = vmatpush1.msra.mxu0 %v882
        %3026 = vmatprep.subr.mxu0 %v889
        %3027 = vmatpush1.msra.mxu0 %v888
        %3028 = vmatprep.subr.mxu0 %v895
        %3029 = vmatpush1.msra.mxu0 %v894
        %3030 = vmatprep.subr.mxu0 %v901
        %3031 = vmatpush1.msra.mxu0 %v900
        %3032 = vmatprep.subr.mxu0 %v907
        %3033 = vmatpush1.msra.mxu0 %v906
        %3034 = vmatprep.subr.mxu0 %v913
        %3035 = vmatpush1.msra.mxu0 %v912
        %3036 = vmatprep.subr.mxu0 %v919
        %3037 = vmatpush1.msra.mxu0 %v918
        %3038 = vmatprep.subr.mxu0 %v925
        %3039 = vmatpush1.msra.mxu0 %v924
        %3040 = vmatprep.subr.mxu0 %v931
        %3041 = vmatpush1.msra.mxu0 %v930
        %3042 = vmatprep.subr.mxu0 %v937
        %3043 = vmatpush1.msra.mxu0 %v936
        %3044 = vmatprep.subr.mxu0 %v943
        %3045 = vmatpush1.msra.mxu0 %v942
        %3046 = vmatprep.subr.mxu0 %v949
        %3047 = vmatpush1.msra.mxu0 %v948
        %3048 = vmatprep.subr.mxu0 %v955
        %3049 = vmatpush1.msra.mxu0 %v954
        %3050 = vmatprep.subr.mxu0 %v961
        %3051 = vmatpush1.msra.mxu0 %v960
        %3052 = vmatprep.subr.mxu0 %v967
        %3053 = vmatpush1.msra.mxu0 %v966
        %3054 = vmatprep.subr.mxu0 %v973
        %3055 = vmatpush1.msra.mxu0 %v972
        %3056 = vmatprep.subr.mxu0 %v979
        %3057 = vmatpush1.msra.mxu0 %v978
        %3058 = vmatprep.subr.mxu0 %v985
        %3059 = vmatpush1.msra.mxu0 %v984
        %3060 = vmatprep.subr.mxu0 %v991
        %3061 = vmatpush1.msra.mxu0 %v990
        %3062 = vmatprep.subr.mxu0 %v997
        %3063 = vmatpush1.msra.mxu0 %v996
        %3064 = vmatprep.mubr.f32.mxu0 %v2997
        %3065 = vmatmul.mubr.f32.gmra.mrb[0].mxu0 %v2996
        %v3066 = vpop.f32.mrb[0].mxu0
        %v3067 = vadd.f32 %v1018, %v3066
        %v3068 = vpop.f32.mrb[0].mxu0
        %v3069 = vadd.f32 %v1022, %v3068
        %3070 = vdwg.mxu0
        %3071 = vmatprep.subr.mxu0 %v813
        %3072 = vmatpush1.msra.mxu0 %v812
        %3073 = vmatprep.subr.mxu0 %v819
        %3074 = vmatpush1.msra.mxu0 %v818
        %3075 = vmatprep.subr.mxu0 %v825
        %3076 = vmatpush1.msra.mxu0 %v824
        %3077 = vmatprep.subr.mxu0 %v831
        %3078 = vmatpush1.msra.mxu0 %v830
        %3079 = vmatprep.subr.mxu0 %v837
        %3080 = vmatpush1.msra.mxu0 %v836
        %3081 = vmatprep.subr.mxu0 %v843
        %3082 = vmatpush1.msra.mxu0 %v842
        %3083 = vmatprep.subr.mxu0 %v849
        %3084 = vmatpush1.msra.mxu0 %v848
        %3085 = vmatprep.subr.mxu0 %v855
        %3086 = vmatpush1.msra.mxu0 %v854
        %3087 = vmatprep.subr.mxu0 %v861
        %3088 = vmatpush1.msra.mxu0 %v860
        %3089 = vmatprep.subr.mxu0 %v867
        %3090 = vmatpush1.msra.mxu0 %v866
        %3091 = vmatprep.subr.mxu0 %v873
        %3092 = vmatpush1.msra.mxu0 %v872
        %3093 = vmatprep.subr.mxu0 %v879
        %3094 = vmatpush1.msra.mxu0 %v878
        %3095 = vmatprep.subr.mxu0 %v885
        %3096 = vmatpush1.msra.mxu0 %v884
        %3097 = vmatprep.subr.mxu0 %v891
        %3098 = vmatpush1.msra.mxu0 %v890
        %3099 = vmatprep.subr.mxu0 %v897
        %3100 = vmatpush1.msra.mxu0 %v896
        %3101 = vmatprep.subr.mxu0 %v903
        %3102 = vmatpush1.msra.mxu0 %v902
        %3103 = vmatprep.subr.mxu0 %v909
        %3104 = vmatpush1.msra.mxu0 %v908
        %3105 = vmatprep.subr.mxu0 %v915
        %3106 = vmatpush1.msra.mxu0 %v914
        %3107 = vmatprep.subr.mxu0 %v921
        %3108 = vmatpush1.msra.mxu0 %v920
        %3109 = vmatprep.subr.mxu0 %v927
        %3110 = vmatpush1.msra.mxu0 %v926
        %3111 = vmatprep.subr.mxu0 %v933
        %3112 = vmatpush1.msra.mxu0 %v932
        %3113 = vmatprep.subr.mxu0 %v939
        %3114 = vmatpush1.msra.mxu0 %v938
        %3115 = vmatprep.subr.mxu0 %v945
        %3116 = vmatpush1.msra.mxu0 %v944
        %3117 = vmatprep.subr.mxu0 %v951
        %3118 = vmatpush1.msra.mxu0 %v950
        %3119 = vmatprep.subr.mxu0 %v957
        %3120 = vmatpush1.msra.mxu0 %v956
        %3121 = vmatprep.subr.mxu0 %v963
        %3122 = vmatpush1.msra.mxu0 %v962
        %3123 = vmatprep.subr.mxu0 %v969
        %3124 = vmatpush1.msra.mxu0 %v968
        %3125 = vmatprep.subr.mxu0 %v975
        %3126 = vmatpush1.msra.mxu0 %v974
        %3127 = vmatprep.subr.mxu0 %v981
        %3128 = vmatpush1.msra.mxu0 %v980
        %3129 = vmatprep.subr.mxu0 %v987
        %3130 = vmatpush1.msra.mxu0 %v986
        %3131 = vmatprep.subr.mxu0 %v993
        %3132 = vmatpush1.msra.mxu0 %v992
        %3133 = vmatprep.subr.mxu0 %v999
        %3134 = vmatpush1.msra.mxu0 %v998
        %3135 = vmatprep.mubr.f32.mxu0 %v2997
        %3136 = vmatmul.mubr.f32.gmra.mrb[0].mxu0 %v2996
        %v3137 = vpop.f32.mrb[0].mxu0
        %v3138 = vadd.f32 %v1026, %v3137
        %v3139 = vpop.f32.mrb[0].mxu0
        %v3140 = vadd.f32 %v1030, %v3139
        %3141 = vdwg.mxu0
        %3142 = vmatprep.subr.mxu0 %v815
        %3143 = vmatpush1.msra.mxu0 %v814
        %3144 = vmatprep.subr.mxu0 %v821
        %3145 = vmatpush1.msra.mxu0 %v820
        %3146 = vmatprep.subr.mxu0 %v827
        %3147 = vmatpush1.msra.mxu0 %v826
        %3148 = vmatprep.subr.mxu0 %v833
        %3149 = vmatpush1.msra.mxu0 %v832
        %3150 = vmatprep.subr.mxu0 %v839
        %3151 = vmatpush1.msra.mxu0 %v838
        %3152 = vmatprep.subr.mxu0 %v845
        %3153 = vmatpush1.msra.mxu0 %v844
        %3154 = vmatprep.subr.mxu0 %v851
        %3155 = vmatpush1.msra.mxu0 %v850
        %3156 = vmatprep.subr.mxu0 %v857
        %3157 = vmatpush1.msra.mxu0 %v856
        %3158 = vmatprep.subr.mxu0 %v863
        %3159 = vmatpush1.msra.mxu0 %v862
        %3160 = vmatprep.subr.mxu0 %v869
        %3161 = vmatpush1.msra.mxu0 %v868
        %3162 = vmatprep.subr.mxu0 %v875
        %3163 = vmatpush1.msra.mxu0 %v874
        %3164 = vmatprep.subr.mxu0 %v881
        %3165 = vmatpush1.msra.mxu0 %v880
        %3166 = vmatprep.subr.mxu0 %v887
        %3167 = vmatpush1.msra.mxu0 %v886
        %3168 = vmatprep.subr.mxu0 %v893
        %3169 = vmatpush1.msra.mxu0 %v892
        %3170 = vmatprep.subr.mxu0 %v899
        %3171 = vmatpush1.msra.mxu0 %v898
        %3172 = vmatprep.subr.mxu0 %v905
        %3173 = vmatpush1.msra.mxu0 %v904
        %3174 = vmatprep.subr.mxu0 %v911
        %3175 = vmatpush1.msra.mxu0 %v910
        %3176 = vmatprep.subr.mxu0 %v917
        %3177 = vmatpush1.msra.mxu0 %v916
        %3178 = vmatprep.subr.mxu0 %v923
        %3179 = vmatpush1.msra.mxu0 %v922
        %3180 = vmatprep.subr.mxu0 %v929
        %3181 = vmatpush1.msra.mxu0 %v928
        %3182 = vmatprep.subr.mxu0 %v935
        %3183 = vmatpush1.msra.mxu0 %v934
        %3184 = vmatprep.subr.mxu0 %v941
        %3185 = vmatpush1.msra.mxu0 %v940
        %3186 = vmatprep.subr.mxu0 %v947
        %3187 = vmatpush1.msra.mxu0 %v946
        %3188 = vmatprep.subr.mxu0 %v953
        %3189 = vmatpush1.msra.mxu0 %v952
        %3190 = vmatprep.subr.mxu0 %v959
        %3191 = vmatpush1.msra.mxu0 %v958
        %3192 = vmatprep.subr.mxu0 %v965
        %3193 = vmatpush1.msra.mxu0 %v964
        %3194 = vmatprep.subr.mxu0 %v971
        %3195 = vmatpush1.msra.mxu0 %v970
        %3196 = vmatprep.subr.mxu0 %v977
        %3197 = vmatpush1.msra.mxu0 %v976
        %3198 = vmatprep.subr.mxu0 %v983
        %3199 = vmatpush1.msra.mxu0 %v982
        %3200 = vmatprep.subr.mxu0 %v989
        %3201 = vmatpush1.msra.mxu0 %v988
        %3202 = vmatprep.subr.mxu0 %v995
        %3203 = vmatpush1.msra.mxu0 %v994
        %3204 = vmatprep.subr.mxu0 %v1001
        %3205 = vmatpush1.msra.mxu0 %v1000
        %3206 = vmatprep.mubr.f32.mxu0 %v2997
        %3207 = vmatmul.mubr.f32.gmra.mrb[0].mxu0 %v2996
        %v3208 = vpop.f32.mrb[0].mxu0
        %v3209 = vadd.f32 %v1034, %v3208
        %v3210 = vpop.f32.mrb[0].mxu0
        %v3211 = vadd.f32 %v1038, %v3210
        %3212 = vdwg.mxu0
        %v3215 = vrot.slane %v3067, 1
        %v3216 = vrot.slane %v3069, 1
        %v3219 = vadd.f32 %v645, %v3215
        %v3220 = vadd.f32 %v647, %v3216
        %v3221 = vxor.u32 %v3219, 2147483648
        %v3222 = vxor.u32 %v3220, 2147483648
        %v3223 = vmul.f32 %v3221, 1.442695
        %v3224 = vpow.pop %v3223
        %v3225 = vmul.f32 %v3222, 1.442695
        %v3226 = vpow.pop %v3225
        %v3227 = vadd.f32 %v3224, 1.0
        %v3228 = vadd.f32 %v3226, 1.0
        %v3229 = vrcp.pop %v3227
        %v3230 = vmul.f32 1.0, %v3229
        %v3231 = vrcp.pop %v3228
        %v3232 = vmul.f32 1.0, %v3231
        %v3235 = vrot.slane %v3138, 1
        %v3236 = vrot.slane %v3140, 1
        %v3239 = vadd.f32 %v722, %v3235
        %v3240 = vadd.f32 %v724, %v3236
        %v3241 = vxor.u32 %v3239, 2147483648
        %v3242 = vxor.u32 %v3240, 2147483648
        %v3243 = vmul.f32 %v3241, 1.442695
        %v3244 = vpow.pop %v3243
        %v3245 = vmul.f32 %v3242, 1.442695
        %v3246 = vpow.pop %v3245
        %v3247 = vadd.f32 %v3244, 1.0
        %v3248 = vadd.f32 %v3246, 1.0
        %v3249 = vrcp.pop %v3247
        %v3250 = vmul.f32 1.0, %v3249
        %v3251 = vrcp.pop %v3248
        %v3252 = vmul.f32 1.0, %v3251
        %v3255 = vrot.slane %v3209, 1
        %v3256 = vrot.slane %v3211, 1
        %v3259 = vmul.f32 %v3230, %v3255
        %v3260 = vmul.f32 %v3232, %v3256
        %v3261 = vadd.f32 %v799, %v3259
        %v3262 = vadd.f32 %v801, %v3260
        %v3263 = vtanh.pop %v3261
        %v3264 = vtanh.pop %v3262
        %v3265 = vsub.f32 1.0, %v3250
        %v3266 = vsub.f32 1.0, %v3252
        %v3267 = vmul.f32 %v3265, %v3263
        %v3268 = vmul.f32 %v3266, %v3264
        %v3269 = vrot.slane %v2992, 7
        %v3270 = vrot.slane %v2993, 7
        %v3273 = vmul.f32 %v3250, %v3269
        %v3274 = vmul.f32 %v3252, %v3270
        %v3275 = vadd.f32 %v3267, %v3273
        %v3276 = vadd.f32 %v3268, %v3274
        %vm3277 = vcmask 1040384
        %v3278 = vsel %vm3277, %v1298, %v1577
        %v3279 = vsel %vm3277, %v1299, %v1578
        %vm3280 = vcmask 1041408
        %v3281 = vsel %vm3280, %v3278, %v1860
        %v3282 = vsel %vm3280, %v3279, %v1861
        %vm3283 = vcmask 1042432
        %v3284 = vsel %vm3283, %v3281, %v2143
        %v3285 = vsel %vm3283, %v3282, %v2144
        %vm3286 = vcmask 1043456
        %v3287 = vsel %vm3286, %v3284, %v2426
        %v3288 = vsel %vm3286, %v3285, %v2427
        %vm3289 = vcmask 1044480
        %v3290 = vsel %vm3289, %v3287, %v2709
        %v3291 = vsel %vm3289, %v3288, %v2710
        %vm3292 = vcmask 1045504
        %v3293 = vsel %vm3292, %v3290, %v2992
        %v3294 = vsel %vm3292, %v3291, %v2993
        %vm3295 = vcmask 1046528
        %v3296 = vsel %vm3295, %v3293, %v3275
        %v3297 = vsel %vm3295, %v3294, %v3276
        %3298 = vst [vmem:[%s337] sm:$0xff] %v3296
        %3299 = vst [vmem:[%s337 + $0x8] sm:$0xff] %v3297
        %v3302 = vrot.slane %v3275, 7
        %v3303 = vrot.slane %v3276, 7
        %3306 = vmatprep.subr.mxu0 %v811
        %3307 = vmatpush1.msra.mxu0 %v810
        %3308 = vmatprep.subr.mxu0 %v817
        %3309 = vmatpush1.msra.mxu0 %v816
        %3310 = vmatprep.subr.mxu0 %v823
        %3311 = vmatpush1.msra.mxu0 %v822
        %3312 = vmatprep.subr.mxu0 %v829
        %3313 = vmatpush1.msra.mxu0 %v828
        %3314 = vmatprep.subr.mxu0 %v835
        %3315 = vmatpush1.msra.mxu0 %v834
        %3316 = vmatprep.subr.mxu0 %v841
        %3317 = vmatpush1.msra.mxu0 %v840
        %3318 = vmatprep.subr.mxu0 %v847
        %3319 = vmatpush1.msra.mxu0 %v846
        %3320 = vmatprep.subr.mxu0 %v853
        %3321 = vmatpush1.msra.mxu0 %v852
        %3322 = vmatprep.subr.mxu0 %v859
        %3323 = vmatpush1.msra.mxu0 %v858
        %3324 = vmatprep.subr.mxu0 %v865
        %3325 = vmatpush1.msra.mxu0 %v864
        %3326 = vmatprep.subr.mxu0 %v871
        %3327 = vmatpush1.msra.mxu0 %v870
        %3328 = vmatprep.subr.mxu0 %v877
        %3329 = vmatpush1.msra.mxu0 %v876
        %3330 = vmatprep.subr.mxu0 %v883
        %3331 = vmatpush1.msra.mxu0 %v882
        %3332 = vmatprep.subr.mxu0 %v889
        %3333 = vmatpush1.msra.mxu0 %v888
        %3334 = vmatprep.subr.mxu0 %v895
        %3335 = vmatpush1.msra.mxu0 %v894
        %3336 = vmatprep.subr.mxu0 %v901
        %3337 = vmatpush1.msra.mxu0 %v900
        %3338 = vmatprep.subr.mxu0 %v907
        %3339 = vmatpush1.msra.mxu0 %v906
        %3340 = vmatprep.subr.mxu0 %v913
        %3341 = vmatpush1.msra.mxu0 %v912
        %3342 = vmatprep.subr.mxu0 %v919
        %3343 = vmatpush1.msra.mxu0 %v918
        %3344 = vmatprep.subr.mxu0 %v925
        %3345 = vmatpush1.msra.mxu0 %v924
        %3346 = vmatprep.subr.mxu0 %v931
        %3347 = vmatpush1.msra.mxu0 %v930
        %3348 = vmatprep.subr.mxu0 %v937
        %3349 = vmatpush1.msra.mxu0 %v936
        %3350 = vmatprep.subr.mxu0 %v943
        %3351 = vmatpush1.msra.mxu0 %v942
        %3352 = vmatprep.subr.mxu0 %v949
        %3353 = vmatpush1.msra.mxu0 %v948
        %3354 = vmatprep.subr.mxu0 %v955
        %3355 = vmatpush1.msra.mxu0 %v954
        %3356 = vmatprep.subr.mxu0 %v961
        %3357 = vmatpush1.msra.mxu0 %v960
        %3358 = vmatprep.subr.mxu0 %v967
        %3359 = vmatpush1.msra.mxu0 %v966
        %3360 = vmatprep.subr.mxu0 %v973
        %3361 = vmatpush1.msra.mxu0 %v972
        %3362 = vmatprep.subr.mxu0 %v979
        %3363 = vmatpush1.msra.mxu0 %v978
        %3364 = vmatprep.subr.mxu0 %v985
        %3365 = vmatpush1.msra.mxu0 %v984
        %3366 = vmatprep.subr.mxu0 %v991
        %3367 = vmatpush1.msra.mxu0 %v990
        %3368 = vmatprep.subr.mxu0 %v997
        %3369 = vmatpush1.msra.mxu0 %v996
        %3370 = vmatprep.mubr.f32.mxu0 %v3303
        %3371 = vmatmul.mubr.f32.gmra.mrb[0].mxu0 %v3302
        %v3372 = vpop.f32.mrb[0].mxu0
        %v3373 = vadd.f32 %v1018, %v3372
        %v3374 = vpop.f32.mrb[0].mxu0
        %v3375 = vadd.f32 %v1022, %v3374
        %3376 = vdwg.mxu0
        %3377 = vmatprep.subr.mxu0 %v813
        %3378 = vmatpush1.msra.mxu0 %v812
        %3379 = vmatprep.subr.mxu0 %v819
        %3380 = vmatpush1.msra.mxu0 %v818
        %3381 = vmatprep.subr.mxu0 %v825
        %3382 = vmatpush1.msra.mxu0 %v824
        %3383 = vmatprep.subr.mxu0 %v831
        %3384 = vmatpush1.msra.mxu0 %v830
        %3385 = vmatprep.subr.mxu0 %v837
        %3386 = vmatpush1.msra.mxu0 %v836
        %3387 = vmatprep.subr.mxu0 %v843
        %3388 = vmatpush1.msra.mxu0 %v842
        %3389 = vmatprep.subr.mxu0 %v849
        %3390 = vmatpush1.msra.mxu0 %v848
        %3391 = vmatprep.subr.mxu0 %v855
        %3392 = vmatpush1.msra.mxu0 %v854
        %3393 = vmatprep.subr.mxu0 %v861
        %3394 = vmatpush1.msra.mxu0 %v860
        %3395 = vmatprep.subr.mxu0 %v867
        %3396 = vmatpush1.msra.mxu0 %v866
        %3397 = vmatprep.subr.mxu0 %v873
        %3398 = vmatpush1.msra.mxu0 %v872
        %3399 = vmatprep.subr.mxu0 %v879
        %3400 = vmatpush1.msra.mxu0 %v878
        %3401 = vmatprep.subr.mxu0 %v885
        %3402 = vmatpush1.msra.mxu0 %v884
        %3403 = vmatprep.subr.mxu0 %v891
        %3404 = vmatpush1.msra.mxu0 %v890
        %3405 = vmatprep.subr.mxu0 %v897
        %3406 = vmatpush1.msra.mxu0 %v896
        %3407 = vmatprep.subr.mxu0 %v903
        %3408 = vmatpush1.msra.mxu0 %v902
        %3409 = vmatprep.subr.mxu0 %v909
        %3410 = vmatpush1.msra.mxu0 %v908
        %3411 = vmatprep.subr.mxu0 %v915
        %3412 = vmatpush1.msra.mxu0 %v914
        %3413 = vmatprep.subr.mxu0 %v921
        %3414 = vmatpush1.msra.mxu0 %v920
        %3415 = vmatprep.subr.mxu0 %v927
        %3416 = vmatpush1.msra.mxu0 %v926
        %3417 = vmatprep.subr.mxu0 %v933
        %3418 = vmatpush1.msra.mxu0 %v932
        %3419 = vmatprep.subr.mxu0 %v939
        %3420 = vmatpush1.msra.mxu0 %v938
        %3421 = vmatprep.subr.mxu0 %v945
        %3422 = vmatpush1.msra.mxu0 %v944
        %3423 = vmatprep.subr.mxu0 %v951
        %3424 = vmatpush1.msra.mxu0 %v950
        %3425 = vmatprep.subr.mxu0 %v957
        %3426 = vmatpush1.msra.mxu0 %v956
        %3427 = vmatprep.subr.mxu0 %v963
        %3428 = vmatpush1.msra.mxu0 %v962
        %3429 = vmatprep.subr.mxu0 %v969
        %3430 = vmatpush1.msra.mxu0 %v968
        %3431 = vmatprep.subr.mxu0 %v975
        %3432 = vmatpush1.msra.mxu0 %v974
        %3433 = vmatprep.subr.mxu0 %v981
        %3434 = vmatpush1.msra.mxu0 %v980
        %3435 = vmatprep.subr.mxu0 %v987
        %3436 = vmatpush1.msra.mxu0 %v986
        %3437 = vmatprep.subr.mxu0 %v993
        %3438 = vmatpush1.msra.mxu0 %v992
        %3439 = vmatprep.subr.mxu0 %v999
        %3440 = vmatpush1.msra.mxu0 %v998
        %3441 = vmatprep.mubr.f32.mxu0 %v3303
        %3442 = vmatmul.mubr.f32.gmra.mrb[0].mxu0 %v3302
        %v3443 = vpop.f32.mrb[0].mxu0
        %v3444 = vadd.f32 %v1026, %v3443
        %v3445 = vpop.f32.mrb[0].mxu0
        %v3446 = vadd.f32 %v1030, %v3445
        %3447 = vdwg.mxu0
        %3448 = vmatprep.subr.mxu0 %v815
        %3449 = vmatpush1.msra.mxu0 %v814
        %3450 = vmatprep.subr.mxu0 %v821
        %3451 = vmatpush1.msra.mxu0 %v820
        %3452 = vmatprep.subr.mxu0 %v827
        %3453 = vmatpush1.msra.mxu0 %v826
        %3454 = vmatprep.subr.mxu0 %v833
        %3455 = vmatpush1.msra.mxu0 %v832
        %3456 = vmatprep.subr.mxu0 %v839
        %3457 = vmatpush1.msra.mxu0 %v838
        %3458 = vmatprep.subr.mxu0 %v845
        %3459 = vmatpush1.msra.mxu0 %v844
        %3460 = vmatprep.subr.mxu0 %v851
        %3461 = vmatpush1.msra.mxu0 %v850
        %3462 = vmatprep.subr.mxu0 %v857
        %3463 = vmatpush1.msra.mxu0 %v856
        %3464 = vmatprep.subr.mxu0 %v863
        %3465 = vmatpush1.msra.mxu0 %v862
        %3466 = vmatprep.subr.mxu0 %v869
        %3467 = vmatpush1.msra.mxu0 %v868
        %3468 = vmatprep.subr.mxu0 %v875
        %3469 = vmatpush1.msra.mxu0 %v874
        %3470 = vmatprep.subr.mxu0 %v881
        %3471 = vmatpush1.msra.mxu0 %v880
        %3472 = vmatprep.subr.mxu0 %v887
        %3473 = vmatpush1.msra.mxu0 %v886
        %3474 = vmatprep.subr.mxu0 %v893
        %3475 = vmatpush1.msra.mxu0 %v892
        %3476 = vmatprep.subr.mxu0 %v899
        %3477 = vmatpush1.msra.mxu0 %v898
        %3478 = vmatprep.subr.mxu0 %v905
        %3479 = vmatpush1.msra.mxu0 %v904
        %3480 = vmatprep.subr.mxu0 %v911
        %3481 = vmatpush1.msra.mxu0 %v910
        %3482 = vmatprep.subr.mxu0 %v917
        %3483 = vmatpush1.msra.mxu0 %v916
        %3484 = vmatprep.subr.mxu0 %v923
        %3485 = vmatpush1.msra.mxu0 %v922
        %3486 = vmatprep.subr.mxu0 %v929
        %3487 = vmatpush1.msra.mxu0 %v928
        %3488 = vmatprep.subr.mxu0 %v935
        %3489 = vmatpush1.msra.mxu0 %v934
        %3490 = vmatprep.subr.mxu0 %v941
        %3491 = vmatpush1.msra.mxu0 %v940
        %3492 = vmatprep.subr.mxu0 %v947
        %3493 = vmatpush1.msra.mxu0 %v946
        %3494 = vmatprep.subr.mxu0 %v953
        %3495 = vmatpush1.msra.mxu0 %v952
        %3496 = vmatprep.subr.mxu0 %v959
        %3497 = vmatpush1.msra.mxu0 %v958
        %3498 = vmatprep.subr.mxu0 %v965
        %3499 = vmatpush1.msra.mxu0 %v964
        %3500 = vmatprep.subr.mxu0 %v971
        %3501 = vmatpush1.msra.mxu0 %v970
        %3502 = vmatprep.subr.mxu0 %v977
        %3503 = vmatpush1.msra.mxu0 %v976
        %3504 = vmatprep.subr.mxu0 %v983
        %3505 = vmatpush1.msra.mxu0 %v982
        %3506 = vmatprep.subr.mxu0 %v989
        %3507 = vmatpush1.msra.mxu0 %v988
        %3508 = vmatprep.subr.mxu0 %v995
        %3509 = vmatpush1.msra.mxu0 %v994
        %3510 = vmatprep.subr.mxu0 %v1001
        %3511 = vmatpush1.msra.mxu0 %v1000
        %3512 = vmatprep.mubr.f32.mxu0 %v3303
        %3513 = vmatmul.mubr.f32.gmra.mrb[0].mxu0 %v3302
        %v3514 = vpop.f32.mrb[0].mxu0
        %v3515 = vadd.f32 %v1034, %v3514
        %v3516 = vpop.f32.mrb[0].mxu0
        %v3517 = vadd.f32 %v1038, %v3516
        %3518 = vdwg.mxu0
        %v3519 = vadd.f32 %v651, %v3373
        %v3520 = vadd.f32 %v653, %v3375
        %v3521 = vxor.u32 %v3519, 2147483648
        %v3522 = vxor.u32 %v3520, 2147483648
        %v3523 = vmul.f32 %v3521, 1.442695
        %v3524 = vpow.pop %v3523
        %v3525 = vmul.f32 %v3522, 1.442695
        %v3526 = vpow.pop %v3525
        %v3527 = vadd.f32 %v3524, 1.0
        %v3528 = vadd.f32 %v3526, 1.0
        %v3529 = vrcp.pop %v3527
        %v3530 = vmul.f32 1.0, %v3529
        %v3531 = vrcp.pop %v3528
        %v3532 = vmul.f32 1.0, %v3531
        %v3533 = vadd.f32 %v728, %v3444
        %v3534 = vadd.f32 %v730, %v3446
        %v3535 = vxor.u32 %v3533, 2147483648
        %v3536 = vxor.u32 %v3534, 2147483648
        %v3537 = vmul.f32 %v3535, 1.442695
        %v3538 = vpow.pop %v3537
        %v3539 = vmul.f32 %v3536, 1.442695
        %v3540 = vpow.pop %v3539
        %v3541 = vadd.f32 %v3538, 1.0
        %v3542 = vadd.f32 %v3540, 1.0
        %v3543 = vrcp.pop %v3541
        %v3544 = vmul.f32 1.0, %v3543
        %v3545 = vrcp.pop %v3542
        %v3546 = vmul.f32 1.0, %v3545
        %v3547 = vmul.f32 %v3530, %v3515
        %v3548 = vmul.f32 %v3532, %v3517
        %v3549 = vadd.f32 %v805, %v3547
        %v3550 = vadd.f32 %v807, %v3548
        %v3551 = vtanh.pop %v3549
        %v3552 = vtanh.pop %v3550
        %v3553 = vsub.f32 1.0, %v3544
        %v3554 = vsub.f32 1.0, %v3546
        %v3555 = vmul.f32 %v3553, %v3551
        %v3556 = vmul.f32 %v3554, %v3552
        %v3557 = vmul.f32 %v3544, %v3302
        %v3558 = vmul.f32 %v3546, %v3303
        %v3559 = vadd.f32 %v3555, %v3557
        %v3560 = vadd.f32 %v3556, %v3558
        %3561 = vmatprep.subr.mxu0 %v811
        %3562 = vmatpush1.msra.mxu0 %v810
        %3563 = vmatprep.subr.mxu0 %v817
        %3564 = vmatpush1.msra.mxu0 %v816
        %3565 = vmatprep.subr.mxu0 %v823
        %3566 = vmatpush1.msra.mxu0 %v822
        %3567 = vmatprep.subr.mxu0 %v829
        %3568 = vmatpush1.msra.mxu0 %v828
        %3569 = vmatprep.subr.mxu0 %v835
        %3570 = vmatpush1.msra.mxu0 %v834
        %3571 = vmatprep.subr.mxu0 %v841
        %3572 = vmatpush1.msra.mxu0 %v840
        %3573 = vmatprep.subr.mxu0 %v847
        %3574 = vmatpush1.msra.mxu0 %v846
        %3575 = vmatprep.subr.mxu0 %v853
        %3576 = vmatpush1.msra.mxu0 %v852
        %3577 = vmatprep.subr.mxu0 %v859
        %3578 = vmatpush1.msra.mxu0 %v858
        %3579 = vmatprep.subr.mxu0 %v865
        %3580 = vmatpush1.msra.mxu0 %v864
        %3581 = vmatprep.subr.mxu0 %v871
        %3582 = vmatpush1.msra.mxu0 %v870
        %3583 = vmatprep.subr.mxu0 %v877
        %3584 = vmatpush1.msra.mxu0 %v876
        %3585 = vmatprep.subr.mxu0 %v883
        %3586 = vmatpush1.msra.mxu0 %v882
        %3587 = vmatprep.subr.mxu0 %v889
        %3588 = vmatpush1.msra.mxu0 %v888
        %3589 = vmatprep.subr.mxu0 %v895
        %3590 = vmatpush1.msra.mxu0 %v894
        %3591 = vmatprep.subr.mxu0 %v901
        %3592 = vmatpush1.msra.mxu0 %v900
        %3593 = vmatprep.subr.mxu0 %v907
        %3594 = vmatpush1.msra.mxu0 %v906
        %3595 = vmatprep.subr.mxu0 %v913
        %3596 = vmatpush1.msra.mxu0 %v912
        %3597 = vmatprep.subr.mxu0 %v919
        %3598 = vmatpush1.msra.mxu0 %v918
        %3599 = vmatprep.subr.mxu0 %v925
        %3600 = vmatpush1.msra.mxu0 %v924
        %3601 = vmatprep.subr.mxu0 %v931
        %3602 = vmatpush1.msra.mxu0 %v930
        %3603 = vmatprep.subr.mxu0 %v937
        %3604 = vmatpush1.msra.mxu0 %v936
        %3605 = vmatprep.subr.mxu0 %v943
        %3606 = vmatpush1.msra.mxu0 %v942
        %3607 = vmatprep.subr.mxu0 %v949
        %3608 = vmatpush1.msra.mxu0 %v948
        %3609 = vmatprep.subr.mxu0 %v955
        %3610 = vmatpush1.msra.mxu0 %v954
        %3611 = vmatprep.subr.mxu0 %v961
        %3612 = vmatpush1.msra.mxu0 %v960
        %3613 = vmatprep.subr.mxu0 %v967
        %3614 = vmatpush1.msra.mxu0 %v966
        %3615 = vmatprep.subr.mxu0 %v973
        %3616 = vmatpush1.msra.mxu0 %v972
        %3617 = vmatprep.subr.mxu0 %v979
        %3618 = vmatpush1.msra.mxu0 %v978
        %3619 = vmatprep.subr.mxu0 %v985
        %3620 = vmatpush1.msra.mxu0 %v984
        %3621 = vmatprep.subr.mxu0 %v991
        %3622 = vmatpush1.msra.mxu0 %v990
        %3623 = vmatprep.subr.mxu0 %v997
        %3624 = vmatpush1.msra.mxu0 %v996
        %3625 = vmatprep.mubr.f32.mxu0 %v3560
        %3626 = vmatmul.mubr.f32.gmra.mrb[0].mxu0 %v3559
        %v3627 = vpop.f32.mrb[0].mxu0
        %v3628 = vadd.f32 %v1018, %v3627
        %v3629 = vpop.f32.mrb[0].mxu0
        %v3630 = vadd.f32 %v1022, %v3629
        %3631 = vdwg.mxu0
        %3632 = vmatprep.subr.mxu0 %v813
        %3633 = vmatpush1.msra.mxu0 %v812
        %3634 = vmatprep.subr.mxu0 %v819
        %3635 = vmatpush1.msra.mxu0 %v818
        %3636 = vmatprep.subr.mxu0 %v825
        %3637 = vmatpush1.msra.mxu0 %v824
        %3638 = vmatprep.subr.mxu0 %v831
        %3639 = vmatpush1.msra.mxu0 %v830
        %3640 = vmatprep.subr.mxu0 %v837
        %3641 = vmatpush1.msra.mxu0 %v836
        %3642 = vmatprep.subr.mxu0 %v843
        %3643 = vmatpush1.msra.mxu0 %v842
        %3644 = vmatprep.subr.mxu0 %v849
        %3645 = vmatpush1.msra.mxu0 %v848
        %3646 = vmatprep.subr.mxu0 %v855
        %3647 = vmatpush1.msra.mxu0 %v854
        %3648 = vmatprep.subr.mxu0 %v861
        %3649 = vmatpush1.msra.mxu0 %v860
        %3650 = vmatprep.subr.mxu0 %v867
        %3651 = vmatpush1.msra.mxu0 %v866
        %3652 = vmatprep.subr.mxu0 %v873
        %3653 = vmatpush1.msra.mxu0 %v872
        %3654 = vmatprep.subr.mxu0 %v879
        %3655 = vmatpush1.msra.mxu0 %v878
        %3656 = vmatprep.subr.mxu0 %v885
        %3657 = vmatpush1.msra.mxu0 %v884
        %3658 = vmatprep.subr.mxu0 %v891
        %3659 = vmatpush1.msra.mxu0 %v890
        %3660 = vmatprep.subr.mxu0 %v897
        %3661 = vmatpush1.msra.mxu0 %v896
        %3662 = vmatprep.subr.mxu0 %v903
        %3663 = vmatpush1.msra.mxu0 %v902
        %3664 = vmatprep.subr.mxu0 %v909
        %3665 = vmatpush1.msra.mxu0 %v908
        %3666 = vmatprep.subr.mxu0 %v915
        %3667 = vmatpush1.msra.mxu0 %v914
        %3668 = vmatprep.subr.mxu0 %v921
        %3669 = vmatpush1.msra.mxu0 %v920
        %3670 = vmatprep.subr.mxu0 %v927
        %3671 = vmatpush1.msra.mxu0 %v926
        %3672 = vmatprep.subr.mxu0 %v933
        %3673 = vmatpush1.msra.mxu0 %v932
        %3674 = vmatprep.subr.mxu0 %v939
        %3675 = vmatpush1.msra.mxu0 %v938
        %3676 = vmatprep.subr.mxu0 %v945
        %3677 = vmatpush1.msra.mxu0 %v944
        %3678 = vmatprep.subr.mxu0 %v951
        %3679 = vmatpush1.msra.mxu0 %v950
        %3680 = vmatprep.subr.mxu0 %v957
        %3681 = vmatpush1.msra.mxu0 %v956
        %3682 = vmatprep.subr.mxu0 %v963
        %3683 = vmatpush1.msra.mxu0 %v962
        %3684 = vmatprep.subr.mxu0 %v969
        %3685 = vmatpush1.msra.mxu0 %v968
        %3686 = vmatprep.subr.mxu0 %v975
        %3687 = vmatpush1.msra.mxu0 %v974
        %3688 = vmatprep.subr.mxu0 %v981
        %3689 = vmatpush1.msra.mxu0 %v980
        %3690 = vmatprep.subr.mxu0 %v987
        %3691 = vmatpush1.msra.mxu0 %v986
        %3692 = vmatprep.subr.mxu0 %v993
        %3693 = vmatpush1.msra.mxu0 %v992
        %3694 = vmatprep.subr.mxu0 %v999
        %3695 = vmatpush1.msra.mxu0 %v998
        %3696 = vmatprep.mubr.f32.mxu0 %v3560
        %3697 = vmatmul.mubr.f32.gmra.mrb[0].mxu0 %v3559
        %v3698 = vpop.f32.mrb[0].mxu0
        %v3699 = vadd.f32 %v1026, %v3698
        %v3700 = vpop.f32.mrb[0].mxu0
        %v3701 = vadd.f32 %v1030, %v3700
        %3702 = vdwg.mxu0
        %3703 = vmatprep.subr.mxu0 %v815
        %3704 = vmatpush1.msra.mxu0 %v814
        %3705 = vmatprep.subr.mxu0 %v821
        %3706 = vmatpush1.msra.mxu0 %v820
        %3707 = vmatprep.subr.mxu0 %v827
        %3708 = vmatpush1.msra.mxu0 %v826
        %3709 = vmatprep.subr.mxu0 %v833
        %3710 = vmatpush1.msra.mxu0 %v832
        %3711 = vmatprep.subr.mxu0 %v839
        %3712 = vmatpush1.msra.mxu0 %v838
        %3713 = vmatprep.subr.mxu0 %v845
        %3714 = vmatpush1.msra.mxu0 %v844
        %3715 = vmatprep.subr.mxu0 %v851
        %3716 = vmatpush1.msra.mxu0 %v850
        %3717 = vmatprep.subr.mxu0 %v857
        %3718 = vmatpush1.msra.mxu0 %v856
        %3719 = vmatprep.subr.mxu0 %v863
        %3720 = vmatpush1.msra.mxu0 %v862
        %3721 = vmatprep.subr.mxu0 %v869
        %3722 = vmatpush1.msra.mxu0 %v868
        %3723 = vmatprep.subr.mxu0 %v875
        %3724 = vmatpush1.msra.mxu0 %v874
        %3725 = vmatprep.subr.mxu0 %v881
        %3726 = vmatpush1.msra.mxu0 %v880
        %3727 = vmatprep.subr.mxu0 %v887
        %3728 = vmatpush1.msra.mxu0 %v886
        %3729 = vmatprep.subr.mxu0 %v893
        %3730 = vmatpush1.msra.mxu0 %v892
        %3731 = vmatprep.subr.mxu0 %v899
        %3732 = vmatpush1.msra.mxu0 %v898
        %3733 = vmatprep.subr.mxu0 %v905
        %3734 = vmatpush1.msra.mxu0 %v904
        %3735 = vmatprep.subr.mxu0 %v911
        %3736 = vmatpush1.msra.mxu0 %v910
        %3737 = vmatprep.subr.mxu0 %v917
        %3738 = vmatpush1.msra.mxu0 %v916
        %3739 = vmatprep.subr.mxu0 %v923
        %3740 = vmatpush1.msra.mxu0 %v922
        %3741 = vmatprep.subr.mxu0 %v929
        %3742 = vmatpush1.msra.mxu0 %v928
        %3743 = vmatprep.subr.mxu0 %v935
        %3744 = vmatpush1.msra.mxu0 %v934
        %3745 = vmatprep.subr.mxu0 %v941
        %3746 = vmatpush1.msra.mxu0 %v940
        %3747 = vmatprep.subr.mxu0 %v947
        %3748 = vmatpush1.msra.mxu0 %v946
        %3749 = vmatprep.subr.mxu0 %v953
        %3750 = vmatpush1.msra.mxu0 %v952
        %3751 = vmatprep.subr.mxu0 %v959
        %3752 = vmatpush1.msra.mxu0 %v958
        %3753 = vmatprep.subr.mxu0 %v965
        %3754 = vmatpush1.msra.mxu0 %v964
        %3755 = vmatprep.subr.mxu0 %v971
        %3756 = vmatpush1.msra.mxu0 %v970
        %3757 = vmatprep.subr.mxu0 %v977
        %3758 = vmatpush1.msra.mxu0 %v976
        %3759 = vmatprep.subr.mxu0 %v983
        %3760 = vmatpush1.msra.mxu0 %v982
        %3761 = vmatprep.subr.mxu0 %v989
        %3762 = vmatpush1.msra.mxu0 %v988
        %3763 = vmatprep.subr.mxu0 %v995
        %3764 = vmatpush1.msra.mxu0 %v994
        %3765 = vmatprep.subr.mxu0 %v1001
        %3766 = vmatpush1.msra.mxu0 %v1000
        %3767 = vmatprep.mubr.f32.mxu0 %v3560
        %3768 = vmatmul.mubr.f32.gmra.mrb[0].mxu0 %v3559
        %v3769 = vpop.f32.mrb[0].mxu0
        %v3770 = vadd.f32 %v1034, %v3769
        %v3771 = vpop.f32.mrb[0].mxu0
        %v3772 = vadd.f32 %v1038, %v3771
        %3773 = vdwg.mxu0
        %v3776 = vrot.slane %v3628, 7
        %v3777 = vrot.slane %v3630, 7
        %v3780 = vadd.f32 %v651, %v3776
        %v3781 = vadd.f32 %v653, %v3777
        %v3782 = vxor.u32 %v3780, 2147483648
        %v3783 = vxor.u32 %v3781, 2147483648
        %v3784 = vmul.f32 %v3782, 1.442695
        %v3785 = vpow.pop %v3784
        %v3786 = vmul.f32 %v3783, 1.442695
        %v3787 = vpow.pop %v3786
        %v3788 = vadd.f32 %v3785, 1.0
        %v3789 = vadd.f32 %v3787, 1.0
        %v3790 = vrcp.pop %v3788
        %v3791 = vmul.f32 1.0, %v3790
        %v3792 = vrcp.pop %v3789
        %v3793 = vmul.f32 1.0, %v3792
        %v3796 = vrot.slane %v3699, 7
        %v3797 = vrot.slane %v3701, 7
        %v3800 = vadd.f32 %v728, %v3796
        %v3801 = vadd.f32 %v730, %v3797
        %v3802 = vxor.u32 %v3800, 2147483648
        %v3803 = vxor.u32 %v3801, 2147483648
        %v3804 = vmul.f32 %v3802, 1.442695
        %v3805 = vpow.pop %v3804
        %v3806 = vmul.f32 %v3803, 1.442695
        %v3807 = vpow.pop %v3806
        %v3808 = vadd.f32 %v3805, 1.0
        %v3809 = vadd.f32 %v3807, 1.0
        %v3810 = vrcp.pop %v3808
        %v3811 = vmul.f32 1.0, %v3810
        %v3812 = vrcp.pop %v3809
        %v3813 = vmul.f32 1.0, %v3812
        %v3816 = vrot.slane %v3770, 7
        %v3817 = vrot.slane %v3772, 7
        %v3820 = vmul.f32 %v3791, %v3816
        %v3821 = vmul.f32 %v3793, %v3817
        %v3822 = vadd.f32 %v805, %v3820
        %v3823 = vadd.f32 %v807, %v3821
        %v3824 = vtanh.pop %v3822
        %v3825 = vtanh.pop %v3823
        %v3826 = vsub.f32 1.0, %v3811
        %v3827 = vsub.f32 1.0, %v3813
        %v3828 = vmul.f32 %v3826, %v3824
        %v3829 = vmul.f32 %v3827, %v3825
        %v3832 = vrot.slane %v3559, 7
        %v3833 = vrot.slane %v3560, 7
        %v3836 = vmul.f32 %v3811, %v3832
        %v3837 = vmul.f32 %v3813, %v3833
        %v3838 = vadd.f32 %v3828, %v3836
        %v3839 = vadd.f32 %v3829, %v3837
        %v3842 = vrot.slane %v3838, 1
        %v3843 = vrot.slane %v3839, 1
        %3846 = vmatprep.subr.mxu0 %v811
        %3847 = vmatpush1.msra.mxu0 %v810
        %3848 = vmatprep.subr.mxu0 %v817
        %3849 = vmatpush1.msra.mxu0 %v816
        %3850 = vmatprep.subr.mxu0 %v823
        %3851 = vmatpush1.msra.mxu0 %v822
        %3852 = vmatprep.subr.mxu0 %v829
        %3853 = vmatpush1.msra.mxu0 %v828
        %3854 = vmatprep.subr.mxu0 %v835
        %3855 = vmatpush1.msra.mxu0 %v834
        %3856 = vmatprep.subr.mxu0 %v841
        %3857 = vmatpush1.msra.mxu0 %v840
        %3858 = vmatprep.subr.mxu0 %v847
        %3859 = vmatpush1.msra.mxu0 %v846
        %3860 = vmatprep.subr.mxu0 %v853
        %3861 = vmatpush1.msra.mxu0 %v852
        %3862 = vmatprep.subr.mxu0 %v859
        %3863 = vmatpush1.msra.mxu0 %v858
        %3864 = vmatprep.subr.mxu0 %v865
        %3865 = vmatpush1.msra.mxu0 %v864
        %3866 = vmatprep.subr.mxu0 %v871
        %3867 = vmatpush1.msra.mxu0 %v870
        %3868 = vmatprep.subr.mxu0 %v877
        %3869 = vmatpush1.msra.mxu0 %v876
        %3870 = vmatprep.subr.mxu0 %v883
        %3871 = vmatpush1.msra.mxu0 %v882
        %3872 = vmatprep.subr.mxu0 %v889
        %3873 = vmatpush1.msra.mxu0 %v888
        %3874 = vmatprep.subr.mxu0 %v895
        %3875 = vmatpush1.msra.mxu0 %v894
        %3876 = vmatprep.subr.mxu0 %v901
        %3877 = vmatpush1.msra.mxu0 %v900
        %3878 = vmatprep.subr.mxu0 %v907
        %3879 = vmatpush1.msra.mxu0 %v906
        %3880 = vmatprep.subr.mxu0 %v913
        %3881 = vmatpush1.msra.mxu0 %v912
        %3882 = vmatprep.subr.mxu0 %v919
        %3883 = vmatpush1.msra.mxu0 %v918
        %3884 = vmatprep.subr.mxu0 %v925
        %3885 = vmatpush1.msra.mxu0 %v924
        %3886 = vmatprep.subr.mxu0 %v931
        %3887 = vmatpush1.msra.mxu0 %v930
        %3888 = vmatprep.subr.mxu0 %v937
        %3889 = vmatpush1.msra.mxu0 %v936
        %3890 = vmatprep.subr.mxu0 %v943
        %3891 = vmatpush1.msra.mxu0 %v942
        %3892 = vmatprep.subr.mxu0 %v949
        %3893 = vmatpush1.msra.mxu0 %v948
        %3894 = vmatprep.subr.mxu0 %v955
        %3895 = vmatpush1.msra.mxu0 %v954
        %3896 = vmatprep.subr.mxu0 %v961
        %3897 = vmatpush1.msra.mxu0 %v960
        %3898 = vmatprep.subr.mxu0 %v967
        %3899 = vmatpush1.msra.mxu0 %v966
        %3900 = vmatprep.subr.mxu0 %v973
        %3901 = vmatpush1.msra.mxu0 %v972
        %3902 = vmatprep.subr.mxu0 %v979
        %3903 = vmatpush1.msra.mxu0 %v978
        %3904 = vmatprep.subr.mxu0 %v985
        %3905 = vmatpush1.msra.mxu0 %v984
        %3906 = vmatprep.subr.mxu0 %v991
        %3907 = vmatpush1.msra.mxu0 %v990
        %3908 = vmatprep.subr.mxu0 %v997
        %3909 = vmatpush1.msra.mxu0 %v996
        %3910 = vmatprep.mubr.f32.mxu0 %v3843
        %3911 = vmatmul.mubr.f32.gmra.mrb[0].mxu0 %v3842
        %v3912 = vpop.f32.mrb[0].mxu0
        %v3913 = vadd.f32 %v1018, %v3912
        %v3914 = vpop.f32.mrb[0].mxu0
        %v3915 = vadd.f32 %v1022, %v3914
        %3916 = vdwg.mxu0
        %3917 = vmatprep.subr.mxu0 %v813
        %3918 = vmatpush1.msra.mxu0 %v812
        %3919 = vmatprep.subr.mxu0 %v819
        %3920 = vmatpush1.msra.mxu0 %v818
        %3921 = vmatprep.subr.mxu0 %v825
        %3922 = vmatpush1.msra.mxu0 %v824
        %3923 = vmatprep.subr.mxu0 %v831
        %3924 = vmatpush1.msra.mxu0 %v830
        %3925 = vmatprep.subr.mxu0 %v837
        %3926 = vmatpush1.msra.mxu0 %v836
        %3927 = vmatprep.subr.mxu0 %v843
        %3928 = vmatpush1.msra.mxu0 %v842
        %3929 = vmatprep.subr.mxu0 %v849
        %3930 = vmatpush1.msra.mxu0 %v848
        %3931 = vmatprep.subr.mxu0 %v855
        %3932 = vmatpush1.msra.mxu0 %v854
        %3933 = vmatprep.subr.mxu0 %v861
        %3934 = vmatpush1.msra.mxu0 %v860
        %3935 = vmatprep.subr.mxu0 %v867
        %3936 = vmatpush1.msra.mxu0 %v866
        %3937 = vmatprep.subr.mxu0 %v873
        %3938 = vmatpush1.msra.mxu0 %v872
        %3939 = vmatprep.subr.mxu0 %v879
        %3940 = vmatpush1.msra.mxu0 %v878
        %3941 = vmatprep.subr.mxu0 %v885
        %3942 = vmatpush1.msra.mxu0 %v884
        %3943 = vmatprep.subr.mxu0 %v891
        %3944 = vmatpush1.msra.mxu0 %v890
        %3945 = vmatprep.subr.mxu0 %v897
        %3946 = vmatpush1.msra.mxu0 %v896
        %3947 = vmatprep.subr.mxu0 %v903
        %3948 = vmatpush1.msra.mxu0 %v902
        %3949 = vmatprep.subr.mxu0 %v909
        %3950 = vmatpush1.msra.mxu0 %v908
        %3951 = vmatprep.subr.mxu0 %v915
        %3952 = vmatpush1.msra.mxu0 %v914
        %3953 = vmatprep.subr.mxu0 %v921
        %3954 = vmatpush1.msra.mxu0 %v920
        %3955 = vmatprep.subr.mxu0 %v927
        %3956 = vmatpush1.msra.mxu0 %v926
        %3957 = vmatprep.subr.mxu0 %v933
        %3958 = vmatpush1.msra.mxu0 %v932
        %3959 = vmatprep.subr.mxu0 %v939
        %3960 = vmatpush1.msra.mxu0 %v938
        %3961 = vmatprep.subr.mxu0 %v945
        %3962 = vmatpush1.msra.mxu0 %v944
        %3963 = vmatprep.subr.mxu0 %v951
        %3964 = vmatpush1.msra.mxu0 %v950
        %3965 = vmatprep.subr.mxu0 %v957
        %3966 = vmatpush1.msra.mxu0 %v956
        %3967 = vmatprep.subr.mxu0 %v963
        %3968 = vmatpush1.msra.mxu0 %v962
        %3969 = vmatprep.subr.mxu0 %v969
        %3970 = vmatpush1.msra.mxu0 %v968
        %3971 = vmatprep.subr.mxu0 %v975
        %3972 = vmatpush1.msra.mxu0 %v974
        %3973 = vmatprep.subr.mxu0 %v981
        %3974 = vmatpush1.msra.mxu0 %v980
        %3975 = vmatprep.subr.mxu0 %v987
        %3976 = vmatpush1.msra.mxu0 %v986
        %3977 = vmatprep.subr.mxu0 %v993
        %3978 = vmatpush1.msra.mxu0 %v992
        %3979 = vmatprep.subr.mxu0 %v999
        %3980 = vmatpush1.msra.mxu0 %v998
        %3981 = vmatprep.mubr.f32.mxu0 %v3843
        %3982 = vmatmul.mubr.f32.gmra.mrb[0].mxu0 %v3842
        %v3983 = vpop.f32.mrb[0].mxu0
        %v3984 = vadd.f32 %v1026, %v3983
        %v3985 = vpop.f32.mrb[0].mxu0
        %v3986 = vadd.f32 %v1030, %v3985
        %3987 = vdwg.mxu0
        %3988 = vmatprep.subr.mxu0 %v815
        %3989 = vmatpush1.msra.mxu0 %v814
        %3990 = vmatprep.subr.mxu0 %v821
        %3991 = vmatpush1.msra.mxu0 %v820
        %3992 = vmatprep.subr.mxu0 %v827
        %3993 = vmatpush1.msra.mxu0 %v826
        %3994 = vmatprep.subr.mxu0 %v833
        %3995 = vmatpush1.msra.mxu0 %v832
        %3996 = vmatprep.subr.mxu0 %v839
        %3997 = vmatpush1.msra.mxu0 %v838
        %3998 = vmatprep.subr.mxu0 %v845
        %3999 = vmatpush1.msra.mxu0 %v844
        %4000 = vmatprep.subr.mxu0 %v851
        %4001 = vmatpush1.msra.mxu0 %v850
        %4002 = vmatprep.subr.mxu0 %v857
        %4003 = vmatpush1.msra.mxu0 %v856
        %4004 = vmatprep.subr.mxu0 %v863
        %4005 = vmatpush1.msra.mxu0 %v862
        %4006 = vmatprep.subr.mxu0 %v869
        %4007 = vmatpush1.msra.mxu0 %v868
        %4008 = vmatprep.subr.mxu0 %v875
        %4009 = vmatpush1.msra.mxu0 %v874
        %4010 = vmatprep.subr.mxu0 %v881
        %4011 = vmatpush1.msra.mxu0 %v880
        %4012 = vmatprep.subr.mxu0 %v887
        %4013 = vmatpush1.msra.mxu0 %v886
        %4014 = vmatprep.subr.mxu0 %v893
        %4015 = vmatpush1.msra.mxu0 %v892
        %4016 = vmatprep.subr.mxu0 %v899
        %4017 = vmatpush1.msra.mxu0 %v898
        %4018 = vmatprep.subr.mxu0 %v905
        %4019 = vmatpush1.msra.mxu0 %v904
        %4020 = vmatprep.subr.mxu0 %v911
        %4021 = vmatpush1.msra.mxu0 %v910
        %4022 = vmatprep.subr.mxu0 %v917
        %4023 = vmatpush1.msra.mxu0 %v916
        %4024 = vmatprep.subr.mxu0 %v923
        %4025 = vmatpush1.msra.mxu0 %v922
        %4026 = vmatprep.subr.mxu0 %v929
        %4027 = vmatpush1.msra.mxu0 %v928
        %4028 = vmatprep.subr.mxu0 %v935
        %4029 = vmatpush1.msra.mxu0 %v934
        %4030 = vmatprep.subr.mxu0 %v941
        %4031 = vmatpush1.msra.mxu0 %v940
        %4032 = vmatprep.subr.mxu0 %v947
        %4033 = vmatpush1.msra.mxu0 %v946
        %4034 = vmatprep.subr.mxu0 %v953
        %4035 = vmatpush1.msra.mxu0 %v952
        %4036 = vmatprep.subr.mxu0 %v959
        %4037 = vmatpush1.msra.mxu0 %v958
        %4038 = vmatprep.subr.mxu0 %v965
        %4039 = vmatpush1.msra.mxu0 %v964
        %4040 = vmatprep.subr.mxu0 %v971
        %4041 = vmatpush1.msra.mxu0 %v970
        %4042 = vmatprep.subr.mxu0 %v977
        %4043 = vmatpush1.msra.mxu0 %v976
        %4044 = vmatprep.subr.mxu0 %v983
        %4045 = vmatpush1.msra.mxu0 %v982
        %4046 = vmatprep.subr.mxu0 %v989
        %4047 = vmatpush1.msra.mxu0 %v988
        %4048 = vmatprep.subr.mxu0 %v995
        %4049 = vmatpush1.msra.mxu0 %v994
        %4050 = vmatprep.subr.mxu0 %v1001
        %4051 = vmatpush1.msra.mxu0 %v1000
        %4052 = vmatprep.mubr.f32.mxu0 %v3843
        %4053 = vmatmul.mubr.f32.gmra.mrb[0].mxu0 %v3842
        %v4054 = vpop.f32.mrb[0].mxu0
        %v4055 = vadd.f32 %v1034, %v4054
        %v4056 = vpop.f32.mrb[0].mxu0
        %v4057 = vadd.f32 %v1038, %v4056
        %4058 = vdwg.mxu0
        %v4061 = vrot.slane %v3913, 6
        %v4062 = vrot.slane %v3915, 6
        %v4065 = vadd.f32 %v651, %v4061
        %v4066 = vadd.f32 %v653, %v4062
        %v4067 = vxor.u32 %v4065, 2147483648
        %v4068 = vxor.u32 %v4066, 2147483648
        %v4069 = vmul.f32 %v4067, 1.442695
        %v4070 = vpow.pop %v4069
        %v4071 = vmul.f32 %v4068, 1.442695
        %v4072 = vpow.pop %v4071
        %v4073 = vadd.f32 %v4070, 1.0
        %v4074 = vadd.f32 %v4072, 1.0
        %v4075 = vrcp.pop %v4073
        %v4076 = vmul.f32 1.0, %v4075
        %v4077 = vrcp.pop %v4074
        %v4078 = vmul.f32 1.0, %v4077
        %v4081 = vrot.slane %v3984, 6
        %v4082 = vrot.slane %v3986, 6
        %v4085 = vadd.f32 %v728, %v4081
        %v4086 = vadd.f32 %v730, %v4082
        %v4087 = vxor.u32 %v4085, 2147483648
        %v4088 = vxor.u32 %v4086, 2147483648
        %v4089 = vmul.f32 %v4087, 1.442695
        %v4090 = vpow.pop %v4089
        %v4091 = vmul.f32 %v4088, 1.442695
        %v4092 = vpow.pop %v4091
        %v4093 = vadd.f32 %v4090, 1.0
        %v4094 = vadd.f32 %v4092, 1.0
        %v4095 = vrcp.pop %v4093
        %v4096 = vmul.f32 1.0, %v4095
        %v4097 = vrcp.pop %v4094
        %v4098 = vmul.f32 1.0, %v4097
        %v4101 = vrot.slane %v4055, 6
        %v4102 = vrot.slane %v4057, 6
        %v4105 = vmul.f32 %v4076, %v4101
        %v4106 = vmul.f32 %v4078, %v4102
        %v4107 = vadd.f32 %v805, %v4105
        %v4108 = vadd.f32 %v807, %v4106
        %v4109 = vtanh.pop %v4107
        %v4110 = vtanh.pop %v4108
        %v4111 = vsub.f32 1.0, %v4096
        %v4112 = vsub.f32 1.0, %v4098
        %v4113 = vmul.f32 %v4111, %v4109
        %v4114 = vmul.f32 %v4112, %v4110
        %v4115 = vrot.slane %v3838, 7
        %v4116 = vrot.slane %v3839, 7
        %v4119 = vmul.f32 %v4096, %v4115
        %v4120 = vmul.f32 %v4098, %v4116
        %v4121 = vadd.f32 %v4113, %v4119
        %v4122 = vadd.f32 %v4114, %v4120
        %v4125 = vrot.slane %v4121, 2
        %v4126 = vrot.slane %v4122, 2
        %4129 = vmatprep.subr.mxu0 %v811
        %4130 = vmatpush1.msra.mxu0 %v810
        %4131 = vmatprep.subr.mxu0 %v817
        %4132 = vmatpush1.msra.mxu0 %v816
        %4133 = vmatprep.subr.mxu0 %v823
        %4134 = vmatpush1.msra.mxu0 %v822
        %4135 = vmatprep.subr.mxu0 %v829
        %4136 = vmatpush1.msra.mxu0 %v828
        %4137 = vmatprep.subr.mxu0 %v835
        %4138 = vmatpush1.msra.mxu0 %v834
        %4139 = vmatprep.subr.mxu0 %v841
        %4140 = vmatpush1.msra.mxu0 %v840
        %4141 = vmatprep.subr.mxu0 %v847
        %4142 = vmatpush1.msra.mxu0 %v846
        %4143 = vmatprep.subr.mxu0 %v853
        %4144 = vmatpush1.msra.mxu0 %v852
        %4145 = vmatprep.subr.mxu0 %v859
        %4146 = vmatpush1.msra.mxu0 %v858
        %4147 = vmatprep.subr.mxu0 %v865
        %4148 = vmatpush1.msra.mxu0 %v864
        %4149 = vmatprep.subr.mxu0 %v871
        %4150 = vmatpush1.msra.mxu0 %v870
        %4151 = vmatprep.subr.mxu0 %v877
        %4152 = vmatpush1.msra.mxu0 %v876
        %4153 = vmatprep.subr.mxu0 %v883
        %4154 = vmatpush1.msra.mxu0 %v882
        %4155 = vmatprep.subr.mxu0 %v889
        %4156 = vmatpush1.msra.mxu0 %v888
        %4157 = vmatprep.subr.mxu0 %v895
        %4158 = vmatpush1.msra.mxu0 %v894
        %4159 = vmatprep.subr.mxu0 %v901
        %4160 = vmatpush1.msra.mxu0 %v900
        %4161 = vmatprep.subr.mxu0 %v907
        %4162 = vmatpush1.msra.mxu0 %v906
        %4163 = vmatprep.subr.mxu0 %v913
        %4164 = vmatpush1.msra.mxu0 %v912
        %4165 = vmatprep.subr.mxu0 %v919
        %4166 = vmatpush1.msra.mxu0 %v918
        %4167 = vmatprep.subr.mxu0 %v925
        %4168 = vmatpush1.msra.mxu0 %v924
        %4169 = vmatprep.subr.mxu0 %v931
        %4170 = vmatpush1.msra.mxu0 %v930
        %4171 = vmatprep.subr.mxu0 %v937
        %4172 = vmatpush1.msra.mxu0 %v936
        %4173 = vmatprep.subr.mxu0 %v943
        %4174 = vmatpush1.msra.mxu0 %v942
        %4175 = vmatprep.subr.mxu0 %v949
        %4176 = vmatpush1.msra.mxu0 %v948
        %4177 = vmatprep.subr.mxu0 %v955
        %4178 = vmatpush1.msra.mxu0 %v954
        %4179 = vmatprep.subr.mxu0 %v961
        %4180 = vmatpush1.msra.mxu0 %v960
        %4181 = vmatprep.subr.mxu0 %v967
        %4182 = vmatpush1.msra.mxu0 %v966
        %4183 = vmatprep.subr.mxu0 %v973
        %4184 = vmatpush1.msra.mxu0 %v972
        %4185 = vmatprep.subr.mxu0 %v979
        %4186 = vmatpush1.msra.mxu0 %v978
        %4187 = vmatprep.subr.mxu0 %v985
        %4188 = vmatpush1.msra.mxu0 %v984
        %4189 = vmatprep.subr.mxu0 %v991
        %4190 = vmatpush1.msra.mxu0 %v990
        %4191 = vmatprep.subr.mxu0 %v997
        %4192 = vmatpush1.msra.mxu0 %v996
        %4193 = vmatprep.mubr.f32.mxu0 %v4126
        %4194 = vmatmul.mubr.f32.gmra.mrb[0].mxu0 %v4125
        %v4195 = vpop.f32.mrb[0].mxu0
        %v4196 = vadd.f32 %v1018, %v4195
        %v4197 = vpop.f32.mrb[0].mxu0
        %v4198 = vadd.f32 %v1022, %v4197
        %4199 = vdwg.mxu0
        %4200 = vmatprep.subr.mxu0 %v813
        %4201 = vmatpush1.msra.mxu0 %v812
        %4202 = vmatprep.subr.mxu0 %v819
        %4203 = vmatpush1.msra.mxu0 %v818
        %4204 = vmatprep.subr.mxu0 %v825
        %4205 = vmatpush1.msra.mxu0 %v824
        %4206 = vmatprep.subr.mxu0 %v831
        %4207 = vmatpush1.msra.mxu0 %v830
        %4208 = vmatprep.subr.mxu0 %v837
        %4209 = vmatpush1.msra.mxu0 %v836
        %4210 = vmatprep.subr.mxu0 %v843
        %4211 = vmatpush1.msra.mxu0 %v842
        %4212 = vmatprep.subr.mxu0 %v849
        %4213 = vmatpush1.msra.mxu0 %v848
        %4214 = vmatprep.subr.mxu0 %v855
        %4215 = vmatpush1.msra.mxu0 %v854
        %4216 = vmatprep.subr.mxu0 %v861
        %4217 = vmatpush1.msra.mxu0 %v860
        %4218 = vmatprep.subr.mxu0 %v867
        %4219 = vmatpush1.msra.mxu0 %v866
        %4220 = vmatprep.subr.mxu0 %v873
        %4221 = vmatpush1.msra.mxu0 %v872
        %4222 = vmatprep.subr.mxu0 %v879
        %4223 = vmatpush1.msra.mxu0 %v878
        %4224 = vmatprep.subr.mxu0 %v885
        %4225 = vmatpush1.msra.mxu0 %v884
        %4226 = vmatprep.subr.mxu0 %v891
        %4227 = vmatpush1.msra.mxu0 %v890
        %4228 = vmatprep.subr.mxu0 %v897
        %4229 = vmatpush1.msra.mxu0 %v896
        %4230 = vmatprep.subr.mxu0 %v903
        %4231 = vmatpush1.msra.mxu0 %v902
        %4232 = vmatprep.subr.mxu0 %v909
        %4233 = vmatpush1.msra.mxu0 %v908
        %4234 = vmatprep.subr.mxu0 %v915
        %4235 = vmatpush1.msra.mxu0 %v914
        %4236 = vmatprep.subr.mxu0 %v921
        %4237 = vmatpush1.msra.mxu0 %v920
        %4238 = vmatprep.subr.mxu0 %v927
        %4239 = vmatpush1.msra.mxu0 %v926
        %4240 = vmatprep.subr.mxu0 %v933
        %4241 = vmatpush1.msra.mxu0 %v932
        %4242 = vmatprep.subr.mxu0 %v939
        %4243 = vmatpush1.msra.mxu0 %v938
        %4244 = vmatprep.subr.mxu0 %v945
        %4245 = vmatpush1.msra.mxu0 %v944
        %4246 = vmatprep.subr.mxu0 %v951
        %4247 = vmatpush1.msra.mxu0 %v950
        %4248 = vmatprep.subr.mxu0 %v957
        %4249 = vmatpush1.msra.mxu0 %v956
        %4250 = vmatprep.subr.mxu0 %v963
        %4251 = vmatpush1.msra.mxu0 %v962
        %4252 = vmatprep.subr.mxu0 %v969
        %4253 = vmatpush1.msra.mxu0 %v968
        %4254 = vmatprep.subr.mxu0 %v975
        %4255 = vmatpush1.msra.mxu0 %v974
        %4256 = vmatprep.subr.mxu0 %v981
        %4257 = vmatpush1.msra.mxu0 %v980
        %4258 = vmatprep.subr.mxu0 %v987
        %4259 = vmatpush1.msra.mxu0 %v986
        %4260 = vmatprep.subr.mxu0 %v993
        %4261 = vmatpush1.msra.mxu0 %v992
        %4262 = vmatprep.subr.mxu0 %v999
        %4263 = vmatpush1.msra.mxu0 %v998
        %4264 = vmatprep.mubr.f32.mxu0 %v4126
        %4265 = vmatmul.mubr.f32.gmra.mrb[0].mxu0 %v4125
        %v4266 = vpop.f32.mrb[0].mxu0
        %v4267 = vadd.f32 %v1026, %v4266
        %v4268 = vpop.f32.mrb[0].mxu0
        %v4269 = vadd.f32 %v1030, %v4268
        %4270 = vdwg.mxu0
        %4271 = vmatprep.subr.mxu0 %v815
        %4272 = vmatpush1.msra.mxu0 %v814
        %4273 = vmatprep.subr.mxu0 %v821
        %4274 = vmatpush1.msra.mxu0 %v820
        %4275 = vmatprep.subr.mxu0 %v827
        %4276 = vmatpush1.msra.mxu0 %v826
        %4277 = vmatprep.subr.mxu0 %v833
        %4278 = vmatpush1.msra.mxu0 %v832
        %4279 = vmatprep.subr.mxu0 %v839
        %4280 = vmatpush1.msra.mxu0 %v838
        %4281 = vmatprep.subr.mxu0 %v845
        %4282 = vmatpush1.msra.mxu0 %v844
        %4283 = vmatprep.subr.mxu0 %v851
        %4284 = vmatpush1.msra.mxu0 %v850
        %4285 = vmatprep.subr.mxu0 %v857
        %4286 = vmatpush1.msra.mxu0 %v856
        %4287 = vmatprep.subr.mxu0 %v863
        %4288 = vmatpush1.msra.mxu0 %v862
        %4289 = vmatprep.subr.mxu0 %v869
        %4290 = vmatpush1.msra.mxu0 %v868
        %4291 = vmatprep.subr.mxu0 %v875
        %4292 = vmatpush1.msra.mxu0 %v874
        %4293 = vmatprep.subr.mxu0 %v881
        %4294 = vmatpush1.msra.mxu0 %v880
        %4295 = vmatprep.subr.mxu0 %v887
        %4296 = vmatpush1.msra.mxu0 %v886
        %4297 = vmatprep.subr.mxu0 %v893
        %4298 = vmatpush1.msra.mxu0 %v892
        %4299 = vmatprep.subr.mxu0 %v899
        %4300 = vmatpush1.msra.mxu0 %v898
        %4301 = vmatprep.subr.mxu0 %v905
        %4302 = vmatpush1.msra.mxu0 %v904
        %4303 = vmatprep.subr.mxu0 %v911
        %4304 = vmatpush1.msra.mxu0 %v910
        %4305 = vmatprep.subr.mxu0 %v917
        %4306 = vmatpush1.msra.mxu0 %v916
        %4307 = vmatprep.subr.mxu0 %v923
        %4308 = vmatpush1.msra.mxu0 %v922
        %4309 = vmatprep.subr.mxu0 %v929
        %4310 = vmatpush1.msra.mxu0 %v928
        %4311 = vmatprep.subr.mxu0 %v935
        %4312 = vmatpush1.msra.mxu0 %v934
        %4313 = vmatprep.subr.mxu0 %v941
        %4314 = vmatpush1.msra.mxu0 %v940
        %4315 = vmatprep.subr.mxu0 %v947
        %4316 = vmatpush1.msra.mxu0 %v946
        %4317 = vmatprep.subr.mxu0 %v953
        %4318 = vmatpush1.msra.mxu0 %v952
        %4319 = vmatprep.subr.mxu0 %v959
        %4320 = vmatpush1.msra.mxu0 %v958
        %4321 = vmatprep.subr.mxu0 %v965
        %4322 = vmatpush1.msra.mxu0 %v964
        %4323 = vmatprep.subr.mxu0 %v971
        %4324 = vmatpush1.msra.mxu0 %v970
        %4325 = vmatprep.subr.mxu0 %v977
        %4326 = vmatpush1.msra.mxu0 %v976
        %4327 = vmatprep.subr.mxu0 %v983
        %4328 = vmatpush1.msra.mxu0 %v982
        %4329 = vmatprep.subr.mxu0 %v989
        %4330 = vmatpush1.msra.mxu0 %v988
        %4331 = vmatprep.subr.mxu0 %v995
        %4332 = vmatpush1.msra.mxu0 %v994
        %4333 = vmatprep.subr.mxu0 %v1001
        %4334 = vmatpush1.msra.mxu0 %v1000
        %4335 = vmatprep.mubr.f32.mxu0 %v4126
        %4336 = vmatmul.mubr.f32.gmra.mrb[0].mxu0 %v4125
        %v4337 = vpop.f32.mrb[0].mxu0
        %v4338 = vadd.f32 %v1034, %v4337
        %v4339 = vpop.f32.mrb[0].mxu0
        %v4340 = vadd.f32 %v1038, %v4339
        %4341 = vdwg.mxu0
        %v4344 = vrot.slane %v4196, 5
        %v4345 = vrot.slane %v4198, 5
        %v4348 = vadd.f32 %v651, %v4344
        %v4349 = vadd.f32 %v653, %v4345
        %v4350 = vxor.u32 %v4348, 2147483648
        %v4351 = vxor.u32 %v4349, 2147483648
        %v4352 = vmul.f32 %v4350, 1.442695
        %v4353 = vpow.pop %v4352
        %v4354 = vmul.f32 %v4351, 1.442695
        %v4355 = vpow.pop %v4354
        %v4356 = vadd.f32 %v4353, 1.0
        %v4357 = vadd.f32 %v4355, 1.0
        %v4358 = vrcp.pop %v4356
        %v4359 = vmul.f32 1.0, %v4358
        %v4360 = vrcp.pop %v4357
        %v4361 = vmul.f32 1.0, %v4360
        %v4364 = vrot.slane %v4267, 5
        %v4365 = vrot.slane %v4269, 5
        %v4368 = vadd.f32 %v728, %v4364
        %v4369 = vadd.f32 %v730, %v4365
        %v4370 = vxor.u32 %v4368, 2147483648
        %v4371 = vxor.u32 %v4369, 2147483648
        %v4372 = vmul.f32 %v4370, 1.442695
        %v4373 = vpow.pop %v4372
        %v4374 = vmul.f32 %v4371, 1.442695
        %v4375 = vpow.pop %v4374
        %v4376 = vadd.f32 %v4373, 1.0
        %v4377 = vadd.f32 %v4375, 1.0
        %v4378 = vrcp.pop %v4376
        %v4379 = vmul.f32 1.0, %v4378
        %v4380 = vrcp.pop %v4377
        %v4381 = vmul.f32 1.0, %v4380
        %v4384 = vrot.slane %v4338, 5
        %v4385 = vrot.slane %v4340, 5
        %v4388 = vmul.f32 %v4359, %v4384
        %v4389 = vmul.f32 %v4361, %v4385
        %v4390 = vadd.f32 %v805, %v4388
        %v4391 = vadd.f32 %v807, %v4389
        %v4392 = vtanh.pop %v4390
        %v4393 = vtanh.pop %v4391
        %v4394 = vsub.f32 1.0, %v4379
        %v4395 = vsub.f32 1.0, %v4381
        %v4396 = vmul.f32 %v4394, %v4392
        %v4397 = vmul.f32 %v4395, %v4393
        %v4398 = vrot.slane %v4121, 7
        %v4399 = vrot.slane %v4122, 7
        %v4402 = vmul.f32 %v4379, %v4398
        %v4403 = vmul.f32 %v4381, %v4399
        %v4404 = vadd.f32 %v4396, %v4402
        %v4405 = vadd.f32 %v4397, %v4403
        %v4408 = vrot.slane %v4404, 3
        %v4409 = vrot.slane %v4405, 3
        %4412 = vmatprep.subr.mxu0 %v811
        %4413 = vmatpush1.msra.mxu0 %v810
        %4414 = vmatprep.subr.mxu0 %v817
        %4415 = vmatpush1.msra.mxu0 %v816
        %4416 = vmatprep.subr.mxu0 %v823
        %4417 = vmatpush1.msra.mxu0 %v822
        %4418 = vmatprep.subr.mxu0 %v829
        %4419 = vmatpush1.msra.mxu0 %v828
        %4420 = vmatprep.subr.mxu0 %v835
        %4421 = vmatpush1.msra.mxu0 %v834
        %4422 = vmatprep.subr.mxu0 %v841
        %4423 = vmatpush1.msra.mxu0 %v840
        %4424 = vmatprep.subr.mxu0 %v847
        %4425 = vmatpush1.msra.mxu0 %v846
        %4426 = vmatprep.subr.mxu0 %v853
        %4427 = vmatpush1.msra.mxu0 %v852
        %4428 = vmatprep.subr.mxu0 %v859
        %4429 = vmatpush1.msra.mxu0 %v858
        %4430 = vmatprep.subr.mxu0 %v865
        %4431 = vmatpush1.msra.mxu0 %v864
        %4432 = vmatprep.subr.mxu0 %v871
        %4433 = vmatpush1.msra.mxu0 %v870
        %4434 = vmatprep.subr.mxu0 %v877
        %4435 = vmatpush1.msra.mxu0 %v876
        %4436 = vmatprep.subr.mxu0 %v883
        %4437 = vmatpush1.msra.mxu0 %v882
        %4438 = vmatprep.subr.mxu0 %v889
        %4439 = vmatpush1.msra.mxu0 %v888
        %4440 = vmatprep.subr.mxu0 %v895
        %4441 = vmatpush1.msra.mxu0 %v894
        %4442 = vmatprep.subr.mxu0 %v901
        %4443 = vmatpush1.msra.mxu0 %v900
        %4444 = vmatprep.subr.mxu0 %v907
        %4445 = vmatpush1.msra.mxu0 %v906
        %4446 = vmatprep.subr.mxu0 %v913
        %4447 = vmatpush1.msra.mxu0 %v912
        %4448 = vmatprep.subr.mxu0 %v919
        %4449 = vmatpush1.msra.mxu0 %v918
        %4450 = vmatprep.subr.mxu0 %v925
        %4451 = vmatpush1.msra.mxu0 %v924
        %4452 = vmatprep.subr.mxu0 %v931
        %4453 = vmatpush1.msra.mxu0 %v930
        %4454 = vmatprep.subr.mxu0 %v937
        %4455 = vmatpush1.msra.mxu0 %v936
        %4456 = vmatprep.subr.mxu0 %v943
        %4457 = vmatpush1.msra.mxu0 %v942
        %4458 = vmatprep.subr.mxu0 %v949
        %4459 = vmatpush1.msra.mxu0 %v948
        %4460 = vmatprep.subr.mxu0 %v955
        %4461 = vmatpush1.msra.mxu0 %v954
        %4462 = vmatprep.subr.mxu0 %v961
        %4463 = vmatpush1.msra.mxu0 %v960
        %4464 = vmatprep.subr.mxu0 %v967
        %4465 = vmatpush1.msra.mxu0 %v966
        %4466 = vmatprep.subr.mxu0 %v973
        %4467 = vmatpush1.msra.mxu0 %v972
        %4468 = vmatprep.subr.mxu0 %v979
        %4469 = vmatpush1.msra.mxu0 %v978
        %4470 = vmatprep.subr.mxu0 %v985
        %4471 = vmatpush1.msra.mxu0 %v984
        %4472 = vmatprep.subr.mxu0 %v991
        %4473 = vmatpush1.msra.mxu0 %v990
        %4474 = vmatprep.subr.mxu0 %v997
        %4475 = vmatpush1.msra.mxu0 %v996
        %4476 = vmatprep.mubr.f32.mxu0 %v4409
        %4477 = vmatmul.mubr.f32.gmra.mrb[0].mxu0 %v4408
        %v4478 = vpop.f32.mrb[0].mxu0
        %v4479 = vadd.f32 %v1018, %v4478
        %v4480 = vpop.f32.mrb[0].mxu0
        %v4481 = vadd.f32 %v1022, %v4480
        %4482 = vdwg.mxu0
        %4483 = vmatprep.subr.mxu0 %v813
        %4484 = vmatpush1.msra.mxu0 %v812
        %4485 = vmatprep.subr.mxu0 %v819
        %4486 = vmatpush1.msra.mxu0 %v818
        %4487 = vmatprep.subr.mxu0 %v825
        %4488 = vmatpush1.msra.mxu0 %v824
        %4489 = vmatprep.subr.mxu0 %v831
        %4490 = vmatpush1.msra.mxu0 %v830
        %4491 = vmatprep.subr.mxu0 %v837
        %4492 = vmatpush1.msra.mxu0 %v836
        %4493 = vmatprep.subr.mxu0 %v843
        %4494 = vmatpush1.msra.mxu0 %v842
        %4495 = vmatprep.subr.mxu0 %v849
        %4496 = vmatpush1.msra.mxu0 %v848
        %4497 = vmatprep.subr.mxu0 %v855
        %4498 = vmatpush1.msra.mxu0 %v854
        %4499 = vmatprep.subr.mxu0 %v861
        %4500 = vmatpush1.msra.mxu0 %v860
        %4501 = vmatprep.subr.mxu0 %v867
        %4502 = vmatpush1.msra.mxu0 %v866
        %4503 = vmatprep.subr.mxu0 %v873
        %4504 = vmatpush1.msra.mxu0 %v872
        %4505 = vmatprep.subr.mxu0 %v879
        %4506 = vmatpush1.msra.mxu0 %v878
        %4507 = vmatprep.subr.mxu0 %v885
        %4508 = vmatpush1.msra.mxu0 %v884
        %4509 = vmatprep.subr.mxu0 %v891
        %4510 = vmatpush1.msra.mxu0 %v890
        %4511 = vmatprep.subr.mxu0 %v897
        %4512 = vmatpush1.msra.mxu0 %v896
        %4513 = vmatprep.subr.mxu0 %v903
        %4514 = vmatpush1.msra.mxu0 %v902
        %4515 = vmatprep.subr.mxu0 %v909
        %4516 = vmatpush1.msra.mxu0 %v908
        %4517 = vmatprep.subr.mxu0 %v915
        %4518 = vmatpush1.msra.mxu0 %v914
        %4519 = vmatprep.subr.mxu0 %v921
        %4520 = vmatpush1.msra.mxu0 %v920
        %4521 = vmatprep.subr.mxu0 %v927
        %4522 = vmatpush1.msra.mxu0 %v926
        %4523 = vmatprep.subr.mxu0 %v933
        %4524 = vmatpush1.msra.mxu0 %v932
        %4525 = vmatprep.subr.mxu0 %v939
        %4526 = vmatpush1.msra.mxu0 %v938
        %4527 = vmatprep.subr.mxu0 %v945
        %4528 = vmatpush1.msra.mxu0 %v944
        %4529 = vmatprep.subr.mxu0 %v951
        %4530 = vmatpush1.msra.mxu0 %v950
        %4531 = vmatprep.subr.mxu0 %v957
        %4532 = vmatpush1.msra.mxu0 %v956
        %4533 = vmatprep.subr.mxu0 %v963
        %4534 = vmatpush1.msra.mxu0 %v962
        %4535 = vmatprep.subr.mxu0 %v969
        %4536 = vmatpush1.msra.mxu0 %v968
        %4537 = vmatprep.subr.mxu0 %v975
        %4538 = vmatpush1.msra.mxu0 %v974
        %4539 = vmatprep.subr.mxu0 %v981
        %4540 = vmatpush1.msra.mxu0 %v980
        %4541 = vmatprep.subr.mxu0 %v987
        %4542 = vmatpush1.msra.mxu0 %v986
        %4543 = vmatprep.subr.mxu0 %v993
        %4544 = vmatpush1.msra.mxu0 %v992
        %4545 = vmatprep.subr.mxu0 %v999
        %4546 = vmatpush1.msra.mxu0 %v998
        %4547 = vmatprep.mubr.f32.mxu0 %v4409
        %4548 = vmatmul.mubr.f32.gmra.mrb[0].mxu0 %v4408
        %v4549 = vpop.f32.mrb[0].mxu0
        %v4550 = vadd.f32 %v1026, %v4549
        %v4551 = vpop.f32.mrb[0].mxu0
        %v4552 = vadd.f32 %v1030, %v4551
        %4553 = vdwg.mxu0
        %4554 = vmatprep.subr.mxu0 %v815
        %4555 = vmatpush1.msra.mxu0 %v814
        %4556 = vmatprep.subr.mxu0 %v821
        %4557 = vmatpush1.msra.mxu0 %v820
        %4558 = vmatprep.subr.mxu0 %v827
        %4559 = vmatpush1.msra.mxu0 %v826
        %4560 = vmatprep.subr.mxu0 %v833
        %4561 = vmatpush1.msra.mxu0 %v832
        %4562 = vmatprep.subr.mxu0 %v839
        %4563 = vmatpush1.msra.mxu0 %v838
        %4564 = vmatprep.subr.mxu0 %v845
        %4565 = vmatpush1.msra.mxu0 %v844
        %4566 = vmatprep.subr.mxu0 %v851
        %4567 = vmatpush1.msra.mxu0 %v850
        %4568 = vmatprep.subr.mxu0 %v857
        %4569 = vmatpush1.msra.mxu0 %v856
        %4570 = vmatprep.subr.mxu0 %v863
        %4571 = vmatpush1.msra.mxu0 %v862
        %4572 = vmatprep.subr.mxu0 %v869
        %4573 = vmatpush1.msra.mxu0 %v868
        %4574 = vmatprep.subr.mxu0 %v875
        %4575 = vmatpush1.msra.mxu0 %v874
        %4576 = vmatprep.subr.mxu0 %v881
        %4577 = vmatpush1.msra.mxu0 %v880
        %4578 = vmatprep.subr.mxu0 %v887
        %4579 = vmatpush1.msra.mxu0 %v886
        %4580 = vmatprep.subr.mxu0 %v893
        %4581 = vmatpush1.msra.mxu0 %v892
        %4582 = vmatprep.subr.mxu0 %v899
        %4583 = vmatpush1.msra.mxu0 %v898
        %4584 = vmatprep.subr.mxu0 %v905
        %4585 = vmatpush1.msra.mxu0 %v904
        %4586 = vmatprep.subr.mxu0 %v911
        %4587 = vmatpush1.msra.mxu0 %v910
        %4588 = vmatprep.subr.mxu0 %v917
        %4589 = vmatpush1.msra.mxu0 %v916
        %4590 = vmatprep.subr.mxu0 %v923
        %4591 = vmatpush1.msra.mxu0 %v922
        %4592 = vmatprep.subr.mxu0 %v929
        %4593 = vmatpush1.msra.mxu0 %v928
        %4594 = vmatprep.subr.mxu0 %v935
        %4595 = vmatpush1.msra.mxu0 %v934
        %4596 = vmatprep.subr.mxu0 %v941
        %4597 = vmatpush1.msra.mxu0 %v940
        %4598 = vmatprep.subr.mxu0 %v947
        %4599 = vmatpush1.msra.mxu0 %v946
        %4600 = vmatprep.subr.mxu0 %v953
        %4601 = vmatpush1.msra.mxu0 %v952
        %4602 = vmatprep.subr.mxu0 %v959
        %4603 = vmatpush1.msra.mxu0 %v958
        %4604 = vmatprep.subr.mxu0 %v965
        %4605 = vmatpush1.msra.mxu0 %v964
        %4606 = vmatprep.subr.mxu0 %v971
        %4607 = vmatpush1.msra.mxu0 %v970
        %4608 = vmatprep.subr.mxu0 %v977
        %4609 = vmatpush1.msra.mxu0 %v976
        %4610 = vmatprep.subr.mxu0 %v983
        %4611 = vmatpush1.msra.mxu0 %v982
        %4612 = vmatprep.subr.mxu0 %v989
        %4613 = vmatpush1.msra.mxu0 %v988
        %4614 = vmatprep.subr.mxu0 %v995
        %4615 = vmatpush1.msra.mxu0 %v994
        %4616 = vmatprep.subr.mxu0 %v1001
        %4617 = vmatpush1.msra.mxu0 %v1000
        %4618 = vmatprep.mubr.f32.mxu0 %v4409
        %4619 = vmatmul.mubr.f32.gmra.mrb[0].mxu0 %v4408
        %v4620 = vpop.f32.mrb[0].mxu0
        %v4621 = vadd.f32 %v1034, %v4620
        %v4622 = vpop.f32.mrb[0].mxu0
        %v4623 = vadd.f32 %v1038, %v4622
        %4624 = vdwg.mxu0
        %v4627 = vrot.slane %v4479, 4
        %v4628 = vrot.slane %v4481, 4
        %v4631 = vadd.f32 %v651, %v4627
        %v4632 = vadd.f32 %v653, %v4628
        %v4633 = vxor.u32 %v4631, 2147483648
        %v4634 = vxor.u32 %v4632, 2147483648
        %v4635 = vmul.f32 %v4633, 1.442695
        %v4636 = vpow.pop %v4635
        %v4637 = vmul.f32 %v4634, 1.442695
        %v4638 = vpow.pop %v4637
        %v4639 = vadd.f32 %v4636, 1.0
        %v4640 = vadd.f32 %v4638, 1.0
        %v4641 = vrcp.pop %v4639
        %v4642 = vmul.f32 1.0, %v4641
        %v4643 = vrcp.pop %v4640
        %v4644 = vmul.f32 1.0, %v4643
        %v4647 = vrot.slane %v4550, 4
        %v4648 = vrot.slane %v4552, 4
        %v4651 = vadd.f32 %v728, %v4647
        %v4652 = vadd.f32 %v730, %v4648
        %v4653 = vxor.u32 %v4651, 2147483648
        %v4654 = vxor.u32 %v4652, 2147483648
        %v4655 = vmul.f32 %v4653, 1.442695
        %v4656 = vpow.pop %v4655
        %v4657 = vmul.f32 %v4654, 1.442695
        %v4658 = vpow.pop %v4657
        %v4659 = vadd.f32 %v4656, 1.0
        %v4660 = vadd.f32 %v4658, 1.0
        %v4661 = vrcp.pop %v4659
        %v4662 = vmul.f32 1.0, %v4661
        %v4663 = vrcp.pop %v4660
        %v4664 = vmul.f32 1.0, %v4663
        %v4667 = vrot.slane %v4621, 4
        %v4668 = vrot.slane %v4623, 4
        %v4671 = vmul.f32 %v4642, %v4667
        %v4672 = vmul.f32 %v4644, %v4668
        %v4673 = vadd.f32 %v805, %v4671
        %v4674 = vadd.f32 %v807, %v4672
        %v4675 = vtanh.pop %v4673
        %v4676 = vtanh.pop %v4674
        %v4677 = vsub.f32 1.0, %v4662
        %v4678 = vsub.f32 1.0, %v4664
        %v4679 = vmul.f32 %v4677, %v4675
        %v4680 = vmul.f32 %v4678, %v4676
        %v4681 = vrot.slane %v4404, 7
        %v4682 = vrot.slane %v4405, 7
        %v4685 = vmul.f32 %v4662, %v4681
        %v4686 = vmul.f32 %v4664, %v4682
        %v4687 = vadd.f32 %v4679, %v4685
        %v4688 = vadd.f32 %v4680, %v4686
        %v4691 = vrot.slane %v4687, 4
        %v4692 = vrot.slane %v4688, 4
        %4695 = vmatprep.subr.mxu0 %v811
        %4696 = vmatpush1.msra.mxu0 %v810
        %4697 = vmatprep.subr.mxu0 %v817
        %4698 = vmatpush1.msra.mxu0 %v816
        %4699 = vmatprep.subr.mxu0 %v823
        %4700 = vmatpush1.msra.mxu0 %v822
        %4701 = vmatprep.subr.mxu0 %v829
        %4702 = vmatpush1.msra.mxu0 %v828
        %4703 = vmatprep.subr.mxu0 %v835
        %4704 = vmatpush1.msra.mxu0 %v834
        %4705 = vmatprep.subr.mxu0 %v841
        %4706 = vmatpush1.msra.mxu0 %v840
        %4707 = vmatprep.subr.mxu0 %v847
        %4708 = vmatpush1.msra.mxu0 %v846
        %4709 = vmatprep.subr.mxu0 %v853
        %4710 = vmatpush1.msra.mxu0 %v852
        %4711 = vmatprep.subr.mxu0 %v859
        %4712 = vmatpush1.msra.mxu0 %v858
        %4713 = vmatprep.subr.mxu0 %v865
        %4714 = vmatpush1.msra.mxu0 %v864
        %4715 = vmatprep.subr.mxu0 %v871
        %4716 = vmatpush1.msra.mxu0 %v870
        %4717 = vmatprep.subr.mxu0 %v877
        %4718 = vmatpush1.msra.mxu0 %v876
        %4719 = vmatprep.subr.mxu0 %v883
        %4720 = vmatpush1.msra.mxu0 %v882
        %4721 = vmatprep.subr.mxu0 %v889
        %4722 = vmatpush1.msra.mxu0 %v888
        %4723 = vmatprep.subr.mxu0 %v895
        %4724 = vmatpush1.msra.mxu0 %v894
        %4725 = vmatprep.subr.mxu0 %v901
        %4726 = vmatpush1.msra.mxu0 %v900
        %4727 = vmatprep.subr.mxu0 %v907
        %4728 = vmatpush1.msra.mxu0 %v906
        %4729 = vmatprep.subr.mxu0 %v913
        %4730 = vmatpush1.msra.mxu0 %v912
        %4731 = vmatprep.subr.mxu0 %v919
        %4732 = vmatpush1.msra.mxu0 %v918
        %4733 = vmatprep.subr.mxu0 %v925
        %4734 = vmatpush1.msra.mxu0 %v924
        %4735 = vmatprep.subr.mxu0 %v931
        %4736 = vmatpush1.msra.mxu0 %v930
        %4737 = vmatprep.subr.mxu0 %v937
        %4738 = vmatpush1.msra.mxu0 %v936
        %4739 = vmatprep.subr.mxu0 %v943
        %4740 = vmatpush1.msra.mxu0 %v942
        %4741 = vmatprep.subr.mxu0 %v949
        %4742 = vmatpush1.msra.mxu0 %v948
        %4743 = vmatprep.subr.mxu0 %v955
        %4744 = vmatpush1.msra.mxu0 %v954
        %4745 = vmatprep.subr.mxu0 %v961
        %4746 = vmatpush1.msra.mxu0 %v960
        %4747 = vmatprep.subr.mxu0 %v967
        %4748 = vmatpush1.msra.mxu0 %v966
        %4749 = vmatprep.subr.mxu0 %v973
        %4750 = vmatpush1.msra.mxu0 %v972
        %4751 = vmatprep.subr.mxu0 %v979
        %4752 = vmatpush1.msra.mxu0 %v978
        %4753 = vmatprep.subr.mxu0 %v985
        %4754 = vmatpush1.msra.mxu0 %v984
        %4755 = vmatprep.subr.mxu0 %v991
        %4756 = vmatpush1.msra.mxu0 %v990
        %4757 = vmatprep.subr.mxu0 %v997
        %4758 = vmatpush1.msra.mxu0 %v996
        %4759 = vmatprep.mubr.f32.mxu0 %v4692
        %4760 = vmatmul.mubr.f32.gmra.mrb[0].mxu0 %v4691
        %v4761 = vpop.f32.mrb[0].mxu0
        %v4762 = vadd.f32 %v1018, %v4761
        %v4763 = vpop.f32.mrb[0].mxu0
        %v4764 = vadd.f32 %v1022, %v4763
        %4765 = vdwg.mxu0
        %4766 = vmatprep.subr.mxu0 %v813
        %4767 = vmatpush1.msra.mxu0 %v812
        %4768 = vmatprep.subr.mxu0 %v819
        %4769 = vmatpush1.msra.mxu0 %v818
        %4770 = vmatprep.subr.mxu0 %v825
        %4771 = vmatpush1.msra.mxu0 %v824
        %4772 = vmatprep.subr.mxu0 %v831
        %4773 = vmatpush1.msra.mxu0 %v830
        %4774 = vmatprep.subr.mxu0 %v837
        %4775 = vmatpush1.msra.mxu0 %v836
        %4776 = vmatprep.subr.mxu0 %v843
        %4777 = vmatpush1.msra.mxu0 %v842
        %4778 = vmatprep.subr.mxu0 %v849
        %4779 = vmatpush1.msra.mxu0 %v848
        %4780 = vmatprep.subr.mxu0 %v855
        %4781 = vmatpush1.msra.mxu0 %v854
        %4782 = vmatprep.subr.mxu0 %v861
        %4783 = vmatpush1.msra.mxu0 %v860
        %4784 = vmatprep.subr.mxu0 %v867
        %4785 = vmatpush1.msra.mxu0 %v866
        %4786 = vmatprep.subr.mxu0 %v873
        %4787 = vmatpush1.msra.mxu0 %v872
        %4788 = vmatprep.subr.mxu0 %v879
        %4789 = vmatpush1.msra.mxu0 %v878
        %4790 = vmatprep.subr.mxu0 %v885
        %4791 = vmatpush1.msra.mxu0 %v884
        %4792 = vmatprep.subr.mxu0 %v891
        %4793 = vmatpush1.msra.mxu0 %v890
        %4794 = vmatprep.subr.mxu0 %v897
        %4795 = vmatpush1.msra.mxu0 %v896
        %4796 = vmatprep.subr.mxu0 %v903
        %4797 = vmatpush1.msra.mxu0 %v902
        %4798 = vmatprep.subr.mxu0 %v909
        %4799 = vmatpush1.msra.mxu0 %v908
        %4800 = vmatprep.subr.mxu0 %v915
        %4801 = vmatpush1.msra.mxu0 %v914
        %4802 = vmatprep.subr.mxu0 %v921
        %4803 = vmatpush1.msra.mxu0 %v920
        %4804 = vmatprep.subr.mxu0 %v927
        %4805 = vmatpush1.msra.mxu0 %v926
        %4806 = vmatprep.subr.mxu0 %v933
        %4807 = vmatpush1.msra.mxu0 %v932
        %4808 = vmatprep.subr.mxu0 %v939
        %4809 = vmatpush1.msra.mxu0 %v938
        %4810 = vmatprep.subr.mxu0 %v945
        %4811 = vmatpush1.msra.mxu0 %v944
        %4812 = vmatprep.subr.mxu0 %v951
        %4813 = vmatpush1.msra.mxu0 %v950
        %4814 = vmatprep.subr.mxu0 %v957
        %4815 = vmatpush1.msra.mxu0 %v956
        %4816 = vmatprep.subr.mxu0 %v963
        %4817 = vmatpush1.msra.mxu0 %v962
        %4818 = vmatprep.subr.mxu0 %v969
        %4819 = vmatpush1.msra.mxu0 %v968
        %4820 = vmatprep.subr.mxu0 %v975
        %4821 = vmatpush1.msra.mxu0 %v974
        %4822 = vmatprep.subr.mxu0 %v981
        %4823 = vmatpush1.msra.mxu0 %v980
        %4824 = vmatprep.subr.mxu0 %v987
        %4825 = vmatpush1.msra.mxu0 %v986
        %4826 = vmatprep.subr.mxu0 %v993
        %4827 = vmatpush1.msra.mxu0 %v992
        %4828 = vmatprep.subr.mxu0 %v999
        %4829 = vmatpush1.msra.mxu0 %v998
        %4830 = vmatprep.mubr.f32.mxu0 %v4692
        %4831 = vmatmul.mubr.f32.gmra.mrb[0].mxu0 %v4691
        %v4832 = vpop.f32.mrb[0].mxu0
        %v4833 = vadd.f32 %v1026, %v4832
        %v4834 = vpop.f32.mrb[0].mxu0
        %v4835 = vadd.f32 %v1030, %v4834
        %4836 = vdwg.mxu0
        %4837 = vmatprep.subr.mxu0 %v815
        %4838 = vmatpush1.msra.mxu0 %v814
        %4839 = vmatprep.subr.mxu0 %v821
        %4840 = vmatpush1.msra.mxu0 %v820
        %4841 = vmatprep.subr.mxu0 %v827
        %4842 = vmatpush1.msra.mxu0 %v826
        %4843 = vmatprep.subr.mxu0 %v833
        %4844 = vmatpush1.msra.mxu0 %v832
        %4845 = vmatprep.subr.mxu0 %v839
        %4846 = vmatpush1.msra.mxu0 %v838
        %4847 = vmatprep.subr.mxu0 %v845
        %4848 = vmatpush1.msra.mxu0 %v844
        %4849 = vmatprep.subr.mxu0 %v851
        %4850 = vmatpush1.msra.mxu0 %v850
        %4851 = vmatprep.subr.mxu0 %v857
        %4852 = vmatpush1.msra.mxu0 %v856
        %4853 = vmatprep.subr.mxu0 %v863
        %4854 = vmatpush1.msra.mxu0 %v862
        %4855 = vmatprep.subr.mxu0 %v869
        %4856 = vmatpush1.msra.mxu0 %v868
        %4857 = vmatprep.subr.mxu0 %v875
        %4858 = vmatpush1.msra.mxu0 %v874
        %4859 = vmatprep.subr.mxu0 %v881
        %4860 = vmatpush1.msra.mxu0 %v880
        %4861 = vmatprep.subr.mxu0 %v887
        %4862 = vmatpush1.msra.mxu0 %v886
        %4863 = vmatprep.subr.mxu0 %v893
        %4864 = vmatpush1.msra.mxu0 %v892
        %4865 = vmatprep.subr.mxu0 %v899
        %4866 = vmatpush1.msra.mxu0 %v898
        %4867 = vmatprep.subr.mxu0 %v905
        %4868 = vmatpush1.msra.mxu0 %v904
        %4869 = vmatprep.subr.mxu0 %v911
        %4870 = vmatpush1.msra.mxu0 %v910
        %4871 = vmatprep.subr.mxu0 %v917
        %4872 = vmatpush1.msra.mxu0 %v916
        %4873 = vmatprep.subr.mxu0 %v923
        %4874 = vmatpush1.msra.mxu0 %v922
        %4875 = vmatprep.subr.mxu0 %v929
        %4876 = vmatpush1.msra.mxu0 %v928
        %4877 = vmatprep.subr.mxu0 %v935
        %4878 = vmatpush1.msra.mxu0 %v934
        %4879 = vmatprep.subr.mxu0 %v941
        %4880 = vmatpush1.msra.mxu0 %v940
        %4881 = vmatprep.subr.mxu0 %v947
        %4882 = vmatpush1.msra.mxu0 %v946
        %4883 = vmatprep.subr.mxu0 %v953
        %4884 = vmatpush1.msra.mxu0 %v952
        %4885 = vmatprep.subr.mxu0 %v959
        %4886 = vmatpush1.msra.mxu0 %v958
        %4887 = vmatprep.subr.mxu0 %v965
        %4888 = vmatpush1.msra.mxu0 %v964
        %4889 = vmatprep.subr.mxu0 %v971
        %4890 = vmatpush1.msra.mxu0 %v970
        %4891 = vmatprep.subr.mxu0 %v977
        %4892 = vmatpush1.msra.mxu0 %v976
        %4893 = vmatprep.subr.mxu0 %v983
        %4894 = vmatpush1.msra.mxu0 %v982
        %4895 = vmatprep.subr.mxu0 %v989
        %4896 = vmatpush1.msra.mxu0 %v988
        %4897 = vmatprep.subr.mxu0 %v995
        %4898 = vmatpush1.msra.mxu0 %v994
        %4899 = vmatprep.subr.mxu0 %v1001
        %4900 = vmatpush1.msra.mxu0 %v1000
        %4901 = vmatprep.mubr.f32.mxu0 %v4692
        %4902 = vmatmul.mubr.f32.gmra.mrb[0].mxu0 %v4691
        %v4903 = vpop.f32.mrb[0].mxu0
        %v4904 = vadd.f32 %v1034, %v4903
        %v4905 = vpop.f32.mrb[0].mxu0
        %v4906 = vadd.f32 %v1038, %v4905
        %4907 = vdwg.mxu0
        %v4910 = vrot.slane %v4762, 3
        %v4911 = vrot.slane %v4764, 3
        %v4914 = vadd.f32 %v651, %v4910
        %v4915 = vadd.f32 %v653, %v4911
        %v4916 = vxor.u32 %v4914, 2147483648
        %v4917 = vxor.u32 %v4915, 2147483648
        %v4918 = vmul.f32 %v4916, 1.442695
        %v4919 = vpow.pop %v4918
        %v4920 = vmul.f32 %v4917, 1.442695
        %v4921 = vpow.pop %v4920
        %v4922 = vadd.f32 %v4919, 1.0
        %v4923 = vadd.f32 %v4921, 1.0
        %v4924 = vrcp.pop %v4922
        %v4925 = vmul.f32 1.0, %v4924
        %v4926 = vrcp.pop %v4923
        %v4927 = vmul.f32 1.0, %v4926
        %v4930 = vrot.slane %v4833, 3
        %v4931 = vrot.slane %v4835, 3
        %v4934 = vadd.f32 %v728, %v4930
        %v4935 = vadd.f32 %v730, %v4931
        %v4936 = vxor.u32 %v4934, 2147483648
        %v4937 = vxor.u32 %v4935, 2147483648
        %v4938 = vmul.f32 %v4936, 1.442695
        %v4939 = vpow.pop %v4938
        %v4940 = vmul.f32 %v4937, 1.442695
        %v4941 = vpow.pop %v4940
        %v4942 = vadd.f32 %v4939, 1.0
        %v4943 = vadd.f32 %v4941, 1.0
        %v4944 = vrcp.pop %v4942
        %v4945 = vmul.f32 1.0, %v4944
        %v4946 = vrcp.pop %v4943
        %v4947 = vmul.f32 1.0, %v4946
        %v4950 = vrot.slane %v4904, 3
        %v4951 = vrot.slane %v4906, 3
        %v4954 = vmul.f32 %v4925, %v4950
        %v4955 = vmul.f32 %v4927, %v4951
        %v4956 = vadd.f32 %v805, %v4954
        %v4957 = vadd.f32 %v807, %v4955
        %v4958 = vtanh.pop %v4956
        %v4959 = vtanh.pop %v4957
        %v4960 = vsub.f32 1.0, %v4945
        %v4961 = vsub.f32 1.0, %v4947
        %v4962 = vmul.f32 %v4960, %v4958
        %v4963 = vmul.f32 %v4961, %v4959
        %v4964 = vrot.slane %v4687, 7
        %v4965 = vrot.slane %v4688, 7
        %v4968 = vmul.f32 %v4945, %v4964
        %v4969 = vmul.f32 %v4947, %v4965
        %v4970 = vadd.f32 %v4962, %v4968
        %v4971 = vadd.f32 %v4963, %v4969
        %v4974 = vrot.slane %v4970, 5
        %v4975 = vrot.slane %v4971, 5
        %4978 = vmatprep.subr.mxu0 %v811
        %4979 = vmatpush1.msra.mxu0 %v810
        %4980 = vmatprep.subr.mxu0 %v817
        %4981 = vmatpush1.msra.mxu0 %v816
        %4982 = vmatprep.subr.mxu0 %v823
        %4983 = vmatpush1.msra.mxu0 %v822
        %4984 = vmatprep.subr.mxu0 %v829
        %4985 = vmatpush1.msra.mxu0 %v828
        %4986 = vmatprep.subr.mxu0 %v835
        %4987 = vmatpush1.msra.mxu0 %v834
        %4988 = vmatprep.subr.mxu0 %v841
        %4989 = vmatpush1.msra.mxu0 %v840
        %4990 = vmatprep.subr.mxu0 %v847
        %4991 = vmatpush1.msra.mxu0 %v846
        %4992 = vmatprep.subr.mxu0 %v853
        %4993 = vmatpush1.msra.mxu0 %v852
        %4994 = vmatprep.subr.mxu0 %v859
        %4995 = vmatpush1.msra.mxu0 %v858
        %4996 = vmatprep.subr.mxu0 %v865
        %4997 = vmatpush1.msra.mxu0 %v864
        %4998 = vmatprep.subr.mxu0 %v871
        %4999 = vmatpush1.msra.mxu0 %v870
        %5000 = vmatprep.subr.mxu0 %v877
        %5001 = vmatpush1.msra.mxu0 %v876
        %5002 = vmatprep.subr.mxu0 %v883
        %5003 = vmatpush1.msra.mxu0 %v882
        %5004 = vmatprep.subr.mxu0 %v889
        %5005 = vmatpush1.msra.mxu0 %v888
        %5006 = vmatprep.subr.mxu0 %v895
        %5007 = vmatpush1.msra.mxu0 %v894
        %5008 = vmatprep.subr.mxu0 %v901
        %5009 = vmatpush1.msra.mxu0 %v900
        %5010 = vmatprep.subr.mxu0 %v907
        %5011 = vmatpush1.msra.mxu0 %v906
        %5012 = vmatprep.subr.mxu0 %v913
        %5013 = vmatpush1.msra.mxu0 %v912
        %5014 = vmatprep.subr.mxu0 %v919
        %5015 = vmatpush1.msra.mxu0 %v918
        %5016 = vmatprep.subr.mxu0 %v925
        %5017 = vmatpush1.msra.mxu0 %v924
        %5018 = vmatprep.subr.mxu0 %v931
        %5019 = vmatpush1.msra.mxu0 %v930
        %5020 = vmatprep.subr.mxu0 %v937
        %5021 = vmatpush1.msra.mxu0 %v936
        %5022 = vmatprep.subr.mxu0 %v943
        %5023 = vmatpush1.msra.mxu0 %v942
        %5024 = vmatprep.subr.mxu0 %v949
        %5025 = vmatpush1.msra.mxu0 %v948
        %5026 = vmatprep.subr.mxu0 %v955
        %5027 = vmatpush1.msra.mxu0 %v954
        %5028 = vmatprep.subr.mxu0 %v961
        %5029 = vmatpush1.msra.mxu0 %v960
        %5030 = vmatprep.subr.mxu0 %v967
        %5031 = vmatpush1.msra.mxu0 %v966
        %5032 = vmatprep.subr.mxu0 %v973
        %5033 = vmatpush1.msra.mxu0 %v972
        %5034 = vmatprep.subr.mxu0 %v979
        %5035 = vmatpush1.msra.mxu0 %v978
        %5036 = vmatprep.subr.mxu0 %v985
        %5037 = vmatpush1.msra.mxu0 %v984
        %5038 = vmatprep.subr.mxu0 %v991
        %5039 = vmatpush1.msra.mxu0 %v990
        %5040 = vmatprep.subr.mxu0 %v997
        %5041 = vmatpush1.msra.mxu0 %v996
        %5042 = vmatprep.mubr.f32.mxu0 %v4975
        %5043 = vmatmul.mubr.f32.gmra.mrb[0].mxu0 %v4974
        %v5044 = vpop.f32.mrb[0].mxu0
        %v5045 = vadd.f32 %v1018, %v5044
        %v5046 = vpop.f32.mrb[0].mxu0
        %v5047 = vadd.f32 %v1022, %v5046
        %5048 = vdwg.mxu0
        %5049 = vmatprep.subr.mxu0 %v813
        %5050 = vmatpush1.msra.mxu0 %v812
        %5051 = vmatprep.subr.mxu0 %v819
        %5052 = vmatpush1.msra.mxu0 %v818
        %5053 = vmatprep.subr.mxu0 %v825
        %5054 = vmatpush1.msra.mxu0 %v824
        %5055 = vmatprep.subr.mxu0 %v831
        %5056 = vmatpush1.msra.mxu0 %v830
        %5057 = vmatprep.subr.mxu0 %v837
        %5058 = vmatpush1.msra.mxu0 %v836
        %5059 = vmatprep.subr.mxu0 %v843
        %5060 = vmatpush1.msra.mxu0 %v842
        %5061 = vmatprep.subr.mxu0 %v849
        %5062 = vmatpush1.msra.mxu0 %v848
        %5063 = vmatprep.subr.mxu0 %v855
        %5064 = vmatpush1.msra.mxu0 %v854
        %5065 = vmatprep.subr.mxu0 %v861
        %5066 = vmatpush1.msra.mxu0 %v860
        %5067 = vmatprep.subr.mxu0 %v867
        %5068 = vmatpush1.msra.mxu0 %v866
        %5069 = vmatprep.subr.mxu0 %v873
        %5070 = vmatpush1.msra.mxu0 %v872
        %5071 = vmatprep.subr.mxu0 %v879
        %5072 = vmatpush1.msra.mxu0 %v878
        %5073 = vmatprep.subr.mxu0 %v885
        %5074 = vmatpush1.msra.mxu0 %v884
        %5075 = vmatprep.subr.mxu0 %v891
        %5076 = vmatpush1.msra.mxu0 %v890
        %5077 = vmatprep.subr.mxu0 %v897
        %5078 = vmatpush1.msra.mxu0 %v896
        %5079 = vmatprep.subr.mxu0 %v903
        %5080 = vmatpush1.msra.mxu0 %v902
        %5081 = vmatprep.subr.mxu0 %v909
        %5082 = vmatpush1.msra.mxu0 %v908
        %5083 = vmatprep.subr.mxu0 %v915
        %5084 = vmatpush1.msra.mxu0 %v914
        %5085 = vmatprep.subr.mxu0 %v921
        %5086 = vmatpush1.msra.mxu0 %v920
        %5087 = vmatprep.subr.mxu0 %v927
        %5088 = vmatpush1.msra.mxu0 %v926
        %5089 = vmatprep.subr.mxu0 %v933
        %5090 = vmatpush1.msra.mxu0 %v932
        %5091 = vmatprep.subr.mxu0 %v939
        %5092 = vmatpush1.msra.mxu0 %v938
        %5093 = vmatprep.subr.mxu0 %v945
        %5094 = vmatpush1.msra.mxu0 %v944
        %5095 = vmatprep.subr.mxu0 %v951
        %5096 = vmatpush1.msra.mxu0 %v950
        %5097 = vmatprep.subr.mxu0 %v957
        %5098 = vmatpush1.msra.mxu0 %v956
        %5099 = vmatprep.subr.mxu0 %v963
        %5100 = vmatpush1.msra.mxu0 %v962
        %5101 = vmatprep.subr.mxu0 %v969
        %5102 = vmatpush1.msra.mxu0 %v968
        %5103 = vmatprep.subr.mxu0 %v975
        %5104 = vmatpush1.msra.mxu0 %v974
        %5105 = vmatprep.subr.mxu0 %v981
        %5106 = vmatpush1.msra.mxu0 %v980
        %5107 = vmatprep.subr.mxu0 %v987
        %5108 = vmatpush1.msra.mxu0 %v986
        %5109 = vmatprep.subr.mxu0 %v993
        %5110 = vmatpush1.msra.mxu0 %v992
        %5111 = vmatprep.subr.mxu0 %v999
        %5112 = vmatpush1.msra.mxu0 %v998
        %5113 = vmatprep.mubr.f32.mxu0 %v4975
        %5114 = vmatmul.mubr.f32.gmra.mrb[0].mxu0 %v4974
        %v5115 = vpop.f32.mrb[0].mxu0
        %v5116 = vadd.f32 %v1026, %v5115
        %v5117 = vpop.f32.mrb[0].mxu0
        %v5118 = vadd.f32 %v1030, %v5117
        %5119 = vdwg.mxu0
        %5120 = vmatprep.subr.mxu0 %v815
        %5121 = vmatpush1.msra.mxu0 %v814
        %5122 = vmatprep.subr.mxu0 %v821
        %5123 = vmatpush1.msra.mxu0 %v820
        %5124 = vmatprep.subr.mxu0 %v827
        %5125 = vmatpush1.msra.mxu0 %v826
        %5126 = vmatprep.subr.mxu0 %v833
        %5127 = vmatpush1.msra.mxu0 %v832
        %5128 = vmatprep.subr.mxu0 %v839
        %5129 = vmatpush1.msra.mxu0 %v838
        %5130 = vmatprep.subr.mxu0 %v845
        %5131 = vmatpush1.msra.mxu0 %v844
        %5132 = vmatprep.subr.mxu0 %v851
        %5133 = vmatpush1.msra.mxu0 %v850
        %5134 = vmatprep.subr.mxu0 %v857
        %5135 = vmatpush1.msra.mxu0 %v856
        %5136 = vmatprep.subr.mxu0 %v863
        %5137 = vmatpush1.msra.mxu0 %v862
        %5138 = vmatprep.subr.mxu0 %v869
        %5139 = vmatpush1.msra.mxu0 %v868
        %5140 = vmatprep.subr.mxu0 %v875
        %5141 = vmatpush1.msra.mxu0 %v874
        %5142 = vmatprep.subr.mxu0 %v881
        %5143 = vmatpush1.msra.mxu0 %v880
        %5144 = vmatprep.subr.mxu0 %v887
        %5145 = vmatpush1.msra.mxu0 %v886
        %5146 = vmatprep.subr.mxu0 %v893
        %5147 = vmatpush1.msra.mxu0 %v892
        %5148 = vmatprep.subr.mxu0 %v899
        %5149 = vmatpush1.msra.mxu0 %v898
        %5150 = vmatprep.subr.mxu0 %v905
        %5151 = vmatpush1.msra.mxu0 %v904
        %5152 = vmatprep.subr.mxu0 %v911
        %5153 = vmatpush1.msra.mxu0 %v910
        %5154 = vmatprep.subr.mxu0 %v917
        %5155 = vmatpush1.msra.mxu0 %v916
        %5156 = vmatprep.subr.mxu0 %v923
        %5157 = vmatpush1.msra.mxu0 %v922
        %5158 = vmatprep.subr.mxu0 %v929
        %5159 = vmatpush1.msra.mxu0 %v928
        %5160 = vmatprep.subr.mxu0 %v935
        %5161 = vmatpush1.msra.mxu0 %v934
        %5162 = vmatprep.subr.mxu0 %v941
        %5163 = vmatpush1.msra.mxu0 %v940
        %5164 = vmatprep.subr.mxu0 %v947
        %5165 = vmatpush1.msra.mxu0 %v946
        %5166 = vmatprep.subr.mxu0 %v953
        %5167 = vmatpush1.msra.mxu0 %v952
        %5168 = vmatprep.subr.mxu0 %v959
        %5169 = vmatpush1.msra.mxu0 %v958
        %5170 = vmatprep.subr.mxu0 %v965
        %5171 = vmatpush1.msra.mxu0 %v964
        %5172 = vmatprep.subr.mxu0 %v971
        %5173 = vmatpush1.msra.mxu0 %v970
        %5174 = vmatprep.subr.mxu0 %v977
        %5175 = vmatpush1.msra.mxu0 %v976
        %5176 = vmatprep.subr.mxu0 %v983
        %5177 = vmatpush1.msra.mxu0 %v982
        %5178 = vmatprep.subr.mxu0 %v989
        %5179 = vmatpush1.msra.mxu0 %v988
        %5180 = vmatprep.subr.mxu0 %v995
        %5181 = vmatpush1.msra.mxu0 %v994
        %5182 = vmatprep.subr.mxu0 %v1001
        %5183 = vmatpush1.msra.mxu0 %v1000
        %5184 = vmatprep.mubr.f32.mxu0 %v4975
        %5185 = vmatmul.mubr.f32.gmra.mrb[0].mxu0 %v4974
        %v5186 = vpop.f32.mrb[0].mxu0
        %v5187 = vadd.f32 %v1034, %v5186
        %v5188 = vpop.f32.mrb[0].mxu0
        %v5189 = vadd.f32 %v1038, %v5188
        %5190 = vdwg.mxu0
        %v5193 = vrot.slane %v5045, 2
        %v5194 = vrot.slane %v5047, 2
        %v5197 = vadd.f32 %v651, %v5193
        %v5198 = vadd.f32 %v653, %v5194
        %v5199 = vxor.u32 %v5197, 2147483648
        %v5200 = vxor.u32 %v5198, 2147483648
        %v5201 = vmul.f32 %v5199, 1.442695
        %v5202 = vpow.pop %v5201
        %v5203 = vmul.f32 %v5200, 1.442695
        %v5204 = vpow.pop %v5203
        %v5205 = vadd.f32 %v5202, 1.0
        %v5206 = vadd.f32 %v5204, 1.0
        %v5207 = vrcp.pop %v5205
        %v5208 = vmul.f32 1.0, %v5207
        %v5209 = vrcp.pop %v5206
        %v5210 = vmul.f32 1.0, %v5209
        %v5213 = vrot.slane %v5116, 2
        %v5214 = vrot.slane %v5118, 2
        %v5217 = vadd.f32 %v728, %v5213
        %v5218 = vadd.f32 %v730, %v5214
        %v5219 = vxor.u32 %v5217, 2147483648
        %v5220 = vxor.u32 %v5218, 2147483648
        %v5221 = vmul.f32 %v5219, 1.442695
        %v5222 = vpow.pop %v5221
        %v5223 = vmul.f32 %v5220, 1.442695
        %v5224 = vpow.pop %v5223
        %v5225 = vadd.f32 %v5222, 1.0
        %v5226 = vadd.f32 %v5224, 1.0
        %v5227 = vrcp.pop %v5225
        %v5228 = vmul.f32 1.0, %v5227
        %v5229 = vrcp.pop %v5226
        %v5230 = vmul.f32 1.0, %v5229
        %v5233 = vrot.slane %v5187, 2
        %v5234 = vrot.slane %v5189, 2
        %v5237 = vmul.f32 %v5208, %v5233
        %v5238 = vmul.f32 %v5210, %v5234
        %v5239 = vadd.f32 %v805, %v5237
        %v5240 = vadd.f32 %v807, %v5238
        %v5241 = vtanh.pop %v5239
        %v5242 = vtanh.pop %v5240
        %v5243 = vsub.f32 1.0, %v5228
        %v5244 = vsub.f32 1.0, %v5230
        %v5245 = vmul.f32 %v5243, %v5241
        %v5246 = vmul.f32 %v5244, %v5242
        %v5247 = vrot.slane %v4970, 7
        %v5248 = vrot.slane %v4971, 7
        %v5251 = vmul.f32 %v5228, %v5247
        %v5252 = vmul.f32 %v5230, %v5248
        %v5253 = vadd.f32 %v5245, %v5251
        %v5254 = vadd.f32 %v5246, %v5252
        %v5257 = vrot.slane %v5253, 6
        %v5258 = vrot.slane %v5254, 6
        %5261 = vmatprep.subr.mxu0 %v811
        %5262 = vmatpush1.msra.mxu0 %v810
        %5263 = vmatprep.subr.mxu0 %v817
        %5264 = vmatpush1.msra.mxu0 %v816
        %5265 = vmatprep.subr.mxu0 %v823
        %5266 = vmatpush1.msra.mxu0 %v822
        %5267 = vmatprep.subr.mxu0 %v829
        %5268 = vmatpush1.msra.mxu0 %v828
        %5269 = vmatprep.subr.mxu0 %v835
        %5270 = vmatpush1.msra.mxu0 %v834
        %5271 = vmatprep.subr.mxu0 %v841
        %5272 = vmatpush1.msra.mxu0 %v840
        %5273 = vmatprep.subr.mxu0 %v847
        %5274 = vmatpush1.msra.mxu0 %v846
        %5275 = vmatprep.subr.mxu0 %v853
        %5276 = vmatpush1.msra.mxu0 %v852
        %5277 = vmatprep.subr.mxu0 %v859
        %5278 = vmatpush1.msra.mxu0 %v858
        %5279 = vmatprep.subr.mxu0 %v865
        %5280 = vmatpush1.msra.mxu0 %v864
        %5281 = vmatprep.subr.mxu0 %v871
        %5282 = vmatpush1.msra.mxu0 %v870
        %5283 = vmatprep.subr.mxu0 %v877
        %5284 = vmatpush1.msra.mxu0 %v876
        %5285 = vmatprep.subr.mxu0 %v883
        %5286 = vmatpush1.msra.mxu0 %v882
        %5287 = vmatprep.subr.mxu0 %v889
        %5288 = vmatpush1.msra.mxu0 %v888
        %5289 = vmatprep.subr.mxu0 %v895
        %5290 = vmatpush1.msra.mxu0 %v894
        %5291 = vmatprep.subr.mxu0 %v901
        %5292 = vmatpush1.msra.mxu0 %v900
        %5293 = vmatprep.subr.mxu0 %v907
        %5294 = vmatpush1.msra.mxu0 %v906
        %5295 = vmatprep.subr.mxu0 %v913
        %5296 = vmatpush1.msra.mxu0 %v912
        %5297 = vmatprep.subr.mxu0 %v919
        %5298 = vmatpush1.msra.mxu0 %v918
        %5299 = vmatprep.subr.mxu0 %v925
        %5300 = vmatpush1.msra.mxu0 %v924
        %5301 = vmatprep.subr.mxu0 %v931
        %5302 = vmatpush1.msra.mxu0 %v930
        %5303 = vmatprep.subr.mxu0 %v937
        %5304 = vmatpush1.msra.mxu0 %v936
        %5305 = vmatprep.subr.mxu0 %v943
        %5306 = vmatpush1.msra.mxu0 %v942
        %5307 = vmatprep.subr.mxu0 %v949
        %5308 = vmatpush1.msra.mxu0 %v948
        %5309 = vmatprep.subr.mxu0 %v955
        %5310 = vmatpush1.msra.mxu0 %v954
        %5311 = vmatprep.subr.mxu0 %v961
        %5312 = vmatpush1.msra.mxu0 %v960
        %5313 = vmatprep.subr.mxu0 %v967
        %5314 = vmatpush1.msra.mxu0 %v966
        %5315 = vmatprep.subr.mxu0 %v973
        %5316 = vmatpush1.msra.mxu0 %v972
        %5317 = vmatprep.subr.mxu0 %v979
        %5318 = vmatpush1.msra.mxu0 %v978
        %5319 = vmatprep.subr.mxu0 %v985
        %5320 = vmatpush1.msra.mxu0 %v984
        %5321 = vmatprep.subr.mxu0 %v991
        %5322 = vmatpush1.msra.mxu0 %v990
        %5323 = vmatprep.subr.mxu0 %v997
        %5324 = vmatpush1.msra.mxu0 %v996
        %5325 = vmatprep.mubr.f32.mxu0 %v5258
        %5326 = vmatmul.mubr.f32.gmra.mrb[0].mxu0 %v5257
        %v5327 = vpop.f32.mrb[0].mxu0
        %v5328 = vadd.f32 %v1018, %v5327
        %v5329 = vpop.f32.mrb[0].mxu0
        %v5330 = vadd.f32 %v1022, %v5329
        %5331 = vdwg.mxu0
        %5332 = vmatprep.subr.mxu0 %v813
        %5333 = vmatpush1.msra.mxu0 %v812
        %5334 = vmatprep.subr.mxu0 %v819
        %5335 = vmatpush1.msra.mxu0 %v818
        %5336 = vmatprep.subr.mxu0 %v825
        %5337 = vmatpush1.msra.mxu0 %v824
        %5338 = vmatprep.subr.mxu0 %v831
        %5339 = vmatpush1.msra.mxu0 %v830
        %5340 = vmatprep.subr.mxu0 %v837
        %5341 = vmatpush1.msra.mxu0 %v836
        %5342 = vmatprep.subr.mxu0 %v843
        %5343 = vmatpush1.msra.mxu0 %v842
        %5344 = vmatprep.subr.mxu0 %v849
        %5345 = vmatpush1.msra.mxu0 %v848
        %5346 = vmatprep.subr.mxu0 %v855
        %5347 = vmatpush1.msra.mxu0 %v854
        %5348 = vmatprep.subr.mxu0 %v861
        %5349 = vmatpush1.msra.mxu0 %v860
        %5350 = vmatprep.subr.mxu0 %v867
        %5351 = vmatpush1.msra.mxu0 %v866
        %5352 = vmatprep.subr.mxu0 %v873
        %5353 = vmatpush1.msra.mxu0 %v872
        %5354 = vmatprep.subr.mxu0 %v879
        %5355 = vmatpush1.msra.mxu0 %v878
        %5356 = vmatprep.subr.mxu0 %v885
        %5357 = vmatpush1.msra.mxu0 %v884
        %5358 = vmatprep.subr.mxu0 %v891
        %5359 = vmatpush1.msra.mxu0 %v890
        %5360 = vmatprep.subr.mxu0 %v897
        %5361 = vmatpush1.msra.mxu0 %v896
        %5362 = vmatprep.subr.mxu0 %v903
        %5363 = vmatpush1.msra.mxu0 %v902
        %5364 = vmatprep.subr.mxu0 %v909
        %5365 = vmatpush1.msra.mxu0 %v908
        %5366 = vmatprep.subr.mxu0 %v915
        %5367 = vmatpush1.msra.mxu0 %v914
        %5368 = vmatprep.subr.mxu0 %v921
        %5369 = vmatpush1.msra.mxu0 %v920
        %5370 = vmatprep.subr.mxu0 %v927
        %5371 = vmatpush1.msra.mxu0 %v926
        %5372 = vmatprep.subr.mxu0 %v933
        %5373 = vmatpush1.msra.mxu0 %v932
        %5374 = vmatprep.subr.mxu0 %v939
        %5375 = vmatpush1.msra.mxu0 %v938
        %5376 = vmatprep.subr.mxu0 %v945
        %5377 = vmatpush1.msra.mxu0 %v944
        %5378 = vmatprep.subr.mxu0 %v951
        %5379 = vmatpush1.msra.mxu0 %v950
        %5380 = vmatprep.subr.mxu0 %v957
        %5381 = vmatpush1.msra.mxu0 %v956
        %5382 = vmatprep.subr.mxu0 %v963
        %5383 = vmatpush1.msra.mxu0 %v962
        %5384 = vmatprep.subr.mxu0 %v969
        %5385 = vmatpush1.msra.mxu0 %v968
        %5386 = vmatprep.subr.mxu0 %v975
        %5387 = vmatpush1.msra.mxu0 %v974
        %5388 = vmatprep.subr.mxu0 %v981
        %5389 = vmatpush1.msra.mxu0 %v980
        %5390 = vmatprep.subr.mxu0 %v987
        %5391 = vmatpush1.msra.mxu0 %v986
        %5392 = vmatprep.subr.mxu0 %v993
        %5393 = vmatpush1.msra.mxu0 %v992
        %5394 = vmatprep.subr.mxu0 %v999
        %5395 = vmatpush1.msra.mxu0 %v998
        %5396 = vmatprep.mubr.f32.mxu0 %v5258
        %5397 = vmatmul.mubr.f32.gmra.mrb[0].mxu0 %v5257
        %v5398 = vpop.f32.mrb[0].mxu0
        %v5399 = vadd.f32 %v1026, %v5398
        %v5400 = vpop.f32.mrb[0].mxu0
        %v5401 = vadd.f32 %v1030, %v5400
        %5402 = vdwg.mxu0
        %5403 = vmatprep.subr.mxu0 %v815
        %5404 = vmatpush1.msra.mxu0 %v814
        %5405 = vmatprep.subr.mxu0 %v821
        %5406 = vmatpush1.msra.mxu0 %v820
        %5407 = vmatprep.subr.mxu0 %v827
        %5408 = vmatpush1.msra.mxu0 %v826
        %5409 = vmatprep.subr.mxu0 %v833
        %5410 = vmatpush1.msra.mxu0 %v832
        %5411 = vmatprep.subr.mxu0 %v839
        %5412 = vmatpush1.msra.mxu0 %v838
        %5413 = vmatprep.subr.mxu0 %v845
        %5414 = vmatpush1.msra.mxu0 %v844
        %5415 = vmatprep.subr.mxu0 %v851
        %5416 = vmatpush1.msra.mxu0 %v850
        %5417 = vmatprep.subr.mxu0 %v857
        %5418 = vmatpush1.msra.mxu0 %v856
        %5419 = vmatprep.subr.mxu0 %v863
        %5420 = vmatpush1.msra.mxu0 %v862
        %5421 = vmatprep.subr.mxu0 %v869
        %5422 = vmatpush1.msra.mxu0 %v868
        %5423 = vmatprep.subr.mxu0 %v875
        %5424 = vmatpush1.msra.mxu0 %v874
        %5425 = vmatprep.subr.mxu0 %v881
        %5426 = vmatpush1.msra.mxu0 %v880
        %5427 = vmatprep.subr.mxu0 %v887
        %5428 = vmatpush1.msra.mxu0 %v886
        %5429 = vmatprep.subr.mxu0 %v893
        %5430 = vmatpush1.msra.mxu0 %v892
        %5431 = vmatprep.subr.mxu0 %v899
        %5432 = vmatpush1.msra.mxu0 %v898
        %5433 = vmatprep.subr.mxu0 %v905
        %5434 = vmatpush1.msra.mxu0 %v904
        %5435 = vmatprep.subr.mxu0 %v911
        %5436 = vmatpush1.msra.mxu0 %v910
        %5437 = vmatprep.subr.mxu0 %v917
        %5438 = vmatpush1.msra.mxu0 %v916
        %5439 = vmatprep.subr.mxu0 %v923
        %5440 = vmatpush1.msra.mxu0 %v922
        %5441 = vmatprep.subr.mxu0 %v929
        %5442 = vmatpush1.msra.mxu0 %v928
        %5443 = vmatprep.subr.mxu0 %v935
        %5444 = vmatpush1.msra.mxu0 %v934
        %5445 = vmatprep.subr.mxu0 %v941
        %5446 = vmatpush1.msra.mxu0 %v940
        %5447 = vmatprep.subr.mxu0 %v947
        %5448 = vmatpush1.msra.mxu0 %v946
        %5449 = vmatprep.subr.mxu0 %v953
        %5450 = vmatpush1.msra.mxu0 %v952
        %5451 = vmatprep.subr.mxu0 %v959
        %5452 = vmatpush1.msra.mxu0 %v958
        %5453 = vmatprep.subr.mxu0 %v965
        %5454 = vmatpush1.msra.mxu0 %v964
        %5455 = vmatprep.subr.mxu0 %v971
        %5456 = vmatpush1.msra.mxu0 %v970
        %5457 = vmatprep.subr.mxu0 %v977
        %5458 = vmatpush1.msra.mxu0 %v976
        %5459 = vmatprep.subr.mxu0 %v983
        %5460 = vmatpush1.msra.mxu0 %v982
        %5461 = vmatprep.subr.mxu0 %v989
        %5462 = vmatpush1.msra.mxu0 %v988
        %5463 = vmatprep.subr.mxu0 %v995
        %5464 = vmatpush1.msra.mxu0 %v994
        %5465 = vmatprep.subr.mxu0 %v1001
        %5466 = vmatpush1.msra.mxu0 %v1000
        %5467 = vmatprep.mubr.f32.mxu0 %v5258
        %5468 = vmatmul.mubr.f32.gmra.mrb[0].mxu0 %v5257
        %v5469 = vpop.f32.mrb[0].mxu0
        %v5470 = vadd.f32 %v1034, %v5469
        %v5471 = vpop.f32.mrb[0].mxu0
        %v5472 = vadd.f32 %v1038, %v5471
        %5473 = vdwg.mxu0
        %v5476 = vrot.slane %v5328, 1
        %v5477 = vrot.slane %v5330, 1
        %v5480 = vadd.f32 %v651, %v5476
        %v5481 = vadd.f32 %v653, %v5477
        %v5482 = vxor.u32 %v5480, 2147483648
        %v5483 = vxor.u32 %v5481, 2147483648
        %v5484 = vmul.f32 %v5482, 1.442695
        %v5485 = vpow.pop %v5484
        %v5486 = vmul.f32 %v5483, 1.442695
        %v5487 = vpow.pop %v5486
        %v5488 = vadd.f32 %v5485, 1.0
        %v5489 = vadd.f32 %v5487, 1.0
        %v5490 = vrcp.pop %v5488
        %v5491 = vmul.f32 1.0, %v5490
        %v5492 = vrcp.pop %v5489
        %v5493 = vmul.f32 1.0, %v5492
        %v5496 = vrot.slane %v5399, 1
        %v5497 = vrot.slane %v5401, 1
        %v5500 = vadd.f32 %v728, %v5496
        %v5501 = vadd.f32 %v730, %v5497
        %v5502 = vxor.u32 %v5500, 2147483648
        %v5503 = vxor.u32 %v5501, 2147483648
        %v5504 = vmul.f32 %v5502, 1.442695
        %v5505 = vpow.pop %v5504
        %v5506 = vmul.f32 %v5503, 1.442695
        %v5507 = vpow.pop %v5506
        %v5508 = vadd.f32 %v5505, 1.0
        %v5509 = vadd.f32 %v5507, 1.0
        %v5510 = vrcp.pop %v5508
        %v5511 = vmul.f32 1.0, %v5510
        %v5512 = vrcp.pop %v5509
        %v5513 = vmul.f32 1.0, %v5512
        %v5516 = vrot.slane %v5470, 1
        %v5517 = vrot.slane %v5472, 1
        %v5520 = vmul.f32 %v5491, %v5516
        %v5521 = vmul.f32 %v5493, %v5517
        %v5522 = vadd.f32 %v805, %v5520
        %v5523 = vadd.f32 %v807, %v5521
        %v5524 = vtanh.pop %v5522
        %v5525 = vtanh.pop %v5523
        %v5526 = vsub.f32 1.0, %v5511
        %v5527 = vsub.f32 1.0, %v5513
        %v5528 = vmul.f32 %v5526, %v5524
        %v5529 = vmul.f32 %v5527, %v5525
        %v5530 = vrot.slane %v5253, 7
        %v5531 = vrot.slane %v5254, 7
        %v5534 = vmul.f32 %v5511, %v5530
        %v5535 = vmul.f32 %v5513, %v5531
        %v5536 = vadd.f32 %v5528, %v5534
        %v5537 = vadd.f32 %v5529, %v5535
        %v5538 = vsel %vm3277, %v3559, %v3838
        %v5539 = vsel %vm3277, %v3560, %v3839
        %v5540 = vsel %vm3280, %v5538, %v4121
        %v5541 = vsel %vm3280, %v5539, %v4122
        %v5542 = vsel %vm3283, %v5540, %v4404
        %v5543 = vsel %vm3283, %v5541, %v4405
        %v5544 = vsel %vm3286, %v5542, %v4687
        %v5545 = vsel %vm3286, %v5543, %v4688
        %v5546 = vsel %vm3289, %v5544, %v4970
        %v5547 = vsel %vm3289, %v5545, %v4971
        %v5548 = vsel %vm3292, %v5546, %v5253
        %v5549 = vsel %vm3292, %v5547, %v5254
        %v5550 = vsel %vm3295, %v5548, %v5536
        %v5551 = vsel %vm3295, %v5549, %v5537
        %5552 = vst [vmem:[%s337 + $0x10] sm:$0xff] %v5550
        %5553 = vst [vmem:[%s337 + $0x18] sm:$0xff] %v5551
        %v5556 = vcombine.high %v5536, %v5537
        %v5558 = vunpack.c.l.s4 1966171168
        %v5559 = vunpack.c.0.s8 %v5558
        %v5560 = vlaneseq
        %v5561 = vshrl.u32 %v5560, 7
        %v5562 = vsub.s32 %v5559, %v5561
        %v5563 = vrot.slane %v5556, %v5562
        %v5564 = vcombine.high %v5563, %v5563
        %v5566 = vunpack.c.l.s4 1966171168
        %v5567 = vunpack.c.0.s8 %v5566
        %v5568 = vlaneseq
        %v5569 = vshrl.u32 %v5568, 7
        %v5570 = vsub.s32 %v5567, %v5569
        %v5571 = vrot.slane %v5564, %v5570
        %v5572 = vcombine.high %v5571, %v5571
        %v5574 = vlaneseq
        %vm5575 = vcmp.ge.s32.totalorder %v5574, 0
        %vm5576 = vcmp.lt.s32.totalorder %v5574, 256
        %vm5577 = vmand %vm5575, %vm5576
        %5578 = vst.msk [vmem:[#allocation2] sm:$0x3] %vm5577, %v5572
        %s5579 = sand.u32 %s165, 1
        %s5580 = scalar_lea.sflag [#allocation5], %s5579
        %s5581 = sand.u32 %s165, 1
        %s5582 = smul.addr %s5581, 32
        %s5583 = scalar_lea.vmem [#allocation14], %s5582
        // Predicated region
        $region73: #{_encode_sequence.1} parent=43 // pred_check
          %p5584 = pneg %p175
        $region74: #{_encode_sequence.1} parent=43 // pred_check_branch
          %5586 = sbr.rel (%p5584) target = $region76
        $region75: #{_encode_sequence.1} parent=43 // pred_region
          %s5587 = smul.u32 2, %s26
          %s5589 = ssub.s32 512, 512
          %5590 = vsyncadd %s5580, %s5589
          %s5591 = smul.addr %s5587, 2
          %s5592 = smul.addr %s5591, 128
          %s5593 = scalar_lea.hbm %s6, %s5592
          %s5594 = sshll.u32 %s5583, 4
          %s5595 = int_to_ptr.vmem [resolvable:$true] %s5594
          %5600 = dma.vmem_to_hbm [thread:$0]  %s5595, 512, %s5593, %s5580, 256, 256, 16
        $region76: #{_encode_sequence.1} parent=43 // pred_fallthru
          _
      $region44: #{_encode_sequence.1} parent=5 // pred_fallthru
        _
      %p5601 = scmp.le.s32.totalorder 2, %s21
      // Predicated region
      $region77: #{_encode_sequence.1} parent=5 // pred_check
        %p5602 = pneg %p5601
      $region78: #{_encode_sequence.1} parent=5 // pred_check_branch
        %5604 = sbr.rel (%p5602) target = $region80
      $region79: #{_encode_sequence.1} parent=5 // pred_region
        %s5605 = ssub.s32 %s21, 2
        // Predicated region
        $region81: #{_encode_sequence.1} parent=79 // pred_check
          %p5606 = pneg %p181
        $region82: #{_encode_sequence.1} parent=79 // pred_check_branch
          %5608 = sbr.rel (%p5606) target = $region84
        $region83: #{_encode_sequence.1} parent=79 // pred_region
          %s5609 = sand.u32 %s166, 1
          %s5610 = scalar_lea.sflag [#allocation5], %s5609
          %s5611 = sand.u32 %s166, 1
          %s5612 = smul.addr %s5611, 32
          %s5613 = scalar_lea.vmem [#allocation14], %s5612
          %5614 = dma.done %s5610, 512
        $region84: #{_encode_sequence.1} parent=79 // pred_fallthru
          _
      $region80: #{_encode_sequence.1} parent=5 // pred_fallthru
        _
    $region6: #{_encode_sequence.1} parent=1 // loop_footer
      %s25 = sadd.s32 1, %s21
    $region7: #{_encode_sequence.1} parent=1 // loop_footer_branch
      %20 = sbr.rel target = $region3
    $region8: #{_encode_sequence.1} parent=1 // loop_exit
      _
    %5615 = vsyncpa [#allocation4], 1
    %s5616 = scalar_lea.sflag [#allocation4], 1
    %5617 = vsyncpa %s5616, 1
    %5618 = vsyncpa [#allocation7], 1
    %5619 = vsyncpa [#allocation10], 1
    %5620 = vsyncpa [#allocation13], 1
    %5621 = vsyncpa [#allocation5], 1
    %s5622 = scalar_lea.sflag [#allocation5], 1
    %5623 = vsyncpa %s5622, 1

</llo_original>
